<compile_context>
chip_gen: v7x
topology: tpu7x:2x2x1
jax: 0.10.0
libtpu: 0.0.40
codegen_flags: <defaults>
</compile_context>

<pallas_src>
import math
from functools import partial

import jax
import jax.numpy as jnp
from jax import lax
from jax.experimental import pallas as pl
from jax.experimental.pallas import tpu as pltpu

LANE = 128


# ----------------------------- helpers -----------------------------

def _round_up(x, m):
    return (x + m - 1) // m * m


def _pad_axis(x, axis, target):
    pad = target - x.shape[axis]
    if pad <= 0:
        return x
    widths = [(0, 0)] * x.ndim
    widths[axis] = (0, pad)
    return jnp.pad(x, widths)            # zero padding (required for exactness)


# ----------------------------- fused kernel -----------------------------

def _fused_transformer_kernel(emb_ref, pe_ref, mask_ref, *refs,
                              nlayers, nhead, d_model, dh_pad,
                              emb_scale, attn_scale, ln_eps=1e-5):
    """One grid step == one batch element, end-to-end forward in VMEM/vregs."""
    layer_refs = refs[:nlayers * 12]
    wdec_ref, bdec_ref, out_ref = refs[nlayers * 12:]

    S, Dp = pe_ref.shape
    H = nhead
    inv_d = 1.0 / d_model
    mask = mask_ref[...]                                        # [S, S] f32

    def layer_norm(z, g_ref, b_ref):
        # Padded lanes of z are exactly zero, so statistics over the REAL
        # d_model lanes are sum(.)/d_model (not /Dp).  gamma/beta are padded
        # with zeros so padded output lanes stay zero.
        mu = jnp.sum(z, axis=-1, keepdims=True) * inv_d
        var = jnp.sum(z * z, axis=-1, keepdims=True) * inv_d - mu * mu
        return (z - mu) * lax.rsqrt(var + ln_eps) * g_ref[...] + b_ref[...]

    # Prologue: token embedding * sqrt(d_model) + positional encoding.
    # TODO(synk): dropout layers are identity here (eval-mode forward).
    x = emb_ref[0].astype(jnp.float32) * emb_scale + pe_ref[...]     # [S, Dp] f32

    for l in range(nlayers):
        (wqkv, bqkv, wout, bout, ln1g, ln1b,
         w1, b1, w2, b2, ln2g, ln2b) = layer_refs[l * 12:(l + 1) * 12]

        # ---- multi-head self-attention, all heads batched (no lane concat) ----
        xb = x.astype(jnp.bfloat16)
        xh = jnp.broadcast_to(xb[None], (H, S, Dp))                  # [H, S, Dp]
        qkv = lax.dot_general(xh, wqkv[...], (((2,), (1,)), ((0,), (0,))),
                              preferred_element_type=jnp.float32) + bqkv[...]
        q = (qkv[:, :, :dh_pad] * attn_scale).astype(jnp.bfloat16)   # 128-aligned
        k = qkv[:, :, dh_pad:2 * dh_pad].astype(jnp.bfloat16)        # lane slices
        v = qkv[:, :, 2 * dh_pad:].astype(jnp.bfloat16)

        # TODO(synk): full [S,S] scores per head; switch to flash-style KV tiling
        #             (online softmax) before scaling S into the thousands.
        s = lax.dot_general(q, k, (((2,), (2,)), ((0,), (0,))),
                            preferred_element_type=jnp.float32) + mask[None]
        s = s - jnp.max(s, axis=-1, keepdims=True)
        p = jnp.exp(s)
        p = p / jnp.sum(p, axis=-1, keepdims=True)                   # exact softmax

        attn = lax.dot_general(p.astype(jnp.bfloat16), v,
                               (((2,), (1,)), ((0,), (0,))),
                               preferred_element_type=jnp.float32)   # [H, S, dhp]
        # head-major out-projection absorbs the head concat: sum_h attn_h @ W_h
        proj = lax.dot_general(attn.astype(jnp.bfloat16), wout[...],
                               (((2,), (1,)), ((0,), (0,))),
                               preferred_element_type=jnp.float32)   # [H, S, Dp]
        z = x + jnp.sum(proj, axis=0) + bout[...]
        x = layer_norm(z, ln1g, ln1b)

        # ---- feed-forward: the [S, d_hid] intermediate never leaves vregs ----
        h1 = jnp.dot(x.astype(jnp.bfloat16), w1[...],
                     preferred_element_type=jnp.float32) + b1[...]
        h1 = jnp.maximum(h1, 0.0)
        y = jnp.dot(h1.astype(jnp.bfloat16), w2[...],
                    preferred_element_type=jnp.float32) + b2[...]
        x = layer_norm(x + y, ln2g, ln2b)

    # ---- vocab decoder, written lane-dense straight into the [S, B*Vp] slab ----
    out_ref[...] = jnp.dot(x.astype(jnp.bfloat16), wdec_ref[...],
                           preferred_element_type=jnp.float32) + bdec_ref[...]


# ----------------------------- wrapper -----------------------------

def _const_spec(arr):
    # Full-array block, constant index_map -> DMA'd once, never re-fetched.
    nd = arr.ndim
    return pl.BlockSpec(arr.shape, lambda b, _nd=nd: (0,) * _nd)


def transformer_forward(kp, src, src_mask, *, d_model, nhead, nlayers, ntoken):
    # src: [S, B] int32, src_mask: [S, S] additive f32 mask -> [S, B, ntoken] f32
    S, B = src.shape
    Dp = kp["emb_table"].shape[1]
    Vp = kp["wdec"].shape[1]
    dh = d_model // nhead
    dh_pad = _round_up(dh, LANE)

    # Embedding gather in bf16 (XLA); scale + PE are the kernel's prologue.
    emb = jnp.take(kp["emb_table"], src.T, axis=0)          # [B, S, Dp] bf16
    pe_s = kp["pe"][:S]                                     # [S, Dp] f32
    mask = src_mask.astype(jnp.float32)

    flat_layer_params = [p for layer in kp["layers"] for p in layer]

    in_specs = ([pl.BlockSpec((1, S, Dp), lambda b: (b, 0, 0)),   # emb, per-batch
                 pl.BlockSpec((S, Dp), lambda b: (0, 0)),         # PE (shared)
                 pl.BlockSpec((S, S), lambda b: (0, 0))]          # mask (shared)
                + [_const_spec(p) for p in flat_layer_params]
                + [_const_spec(kp["wdec"]), _const_spec(kp["bdec"])])

    logits = pl.pallas_call(
        partial(_fused_transformer_kernel,
                nlayers=nlayers, nhead=nhead, d_model=d_model, dh_pad=dh_pad,
                emb_scale=math.sqrt(d_model), attn_scale=1.0 / math.sqrt(dh)),
        out_shape=jax.ShapeDtypeStruct((S, B * Vp), jnp.float32),
        grid=(B,),
        in_specs=in_specs,
        out_specs=pl.BlockSpec((S, Vp), lambda b: (0, b)),        # [S, B*Vp] slab
        compiler_params=pltpu.CompilerParams(
            dimension_semantics=("parallel",),                    # >=2 iters -> both v7x TCs
            # Explicit scoped-VMEM budget; at scaled configs (large D/d_hid/vocab)
            # re-tile the decoder / FFN weights or raise this accordingly.
            vmem_limit_bytes=32 * 1024 * 1024),
    )(emb, pe_s, mask, *flat_layer_params, kp["wdec"], kp["bdec"])

    # Free reshape + strip lane padding (no [B,S,V]->[S,B,V] transpose needed).
    return logits.reshape(S, B, Vp)[:, :, :ntoken]


# ----------------------------- model setup -----------------------------

def make_positional_encoding(max_len, d_model):
    position = jnp.arange(max_len, dtype=jnp.float32)[:, None]
    div_term = jnp.exp(jnp.arange(0, d_model, 2, dtype=jnp.float32)
                       * (-math.log(10000.0) / d_model))
    pe = jnp.zeros((max_len, d_model), jnp.float32)
    pe = pe.at[:, 0::2].set(jnp.sin(position * div_term))
    pe = pe.at[:, 1::2].set(jnp.cos(position * div_term))
    return pe


def init_params(key, ntoken, d_model, d_hid, nlayers):
    """PyTorch-layout (f32) logical parameters."""
    keys = jax.random.split(key, 2 + nlayers)
    initrange = 0.1
    D = d_model
    params = {
        "emb": jax.random.uniform(keys[0], (ntoken, D), jnp.float32, -initrange, initrange),
        "dec_w": jax.random.uniform(keys[1], (ntoken, D), jnp.float32, -initrange, initrange),
        "dec_b": jnp.zeros((ntoken,), jnp.float32),
        "layers": [],
    }
    for l in range(nlayers):
        ks = jax.random.split(keys[2 + l], 4)
        params["layers"].append(dict(
            in_proj_w=jax.random.normal(ks[0], (3 * D, D), jnp.float32) / math.sqrt(D),
            in_proj_b=jnp.zeros((3 * D,), jnp.float32),
            out_proj_w=jax.random.normal(ks[1], (D, D), jnp.float32) / math.sqrt(D),
            out_proj_b=jnp.zeros((D,), jnp.float32),
            lin1_w=jax.random.normal(ks[2], (d_hid, D), jnp.float32) / math.sqrt(D),
            lin1_b=jnp.zeros((d_hid,), jnp.float32),
            lin2_w=jax.random.normal(ks[3], (D, d_hid), jnp.float32) / math.sqrt(d_hid),
            lin2_b=jnp.zeros((D,), jnp.float32),
            ln1_g=jnp.ones((D,), jnp.float32), ln1_b=jnp.zeros((D,), jnp.float32),
            ln2_g=jnp.ones((D,), jnp.float32), ln2_b=jnp.zeros((D,), jnp.float32),
        ))
    return params


def prepare_kernel_params(params, *, d_model, d_hid, nhead, ntoken, max_len=5000):
    """Pad to lane-dense (128-multiple) shapes, pre-transpose, cast matmul
    operands to bf16, and lay attention weights out head-major."""
    D, H = d_model, nhead
    dh = D // H
    Dp = _round_up(D, LANE)
    Hp = _round_up(d_hid, LANE)
    Vp = _round_up(ntoken, LANE)
    dhp = _round_up(dh, LANE)

    def pad2(x, r, c):
        return _pad_axis(_pad_axis(x, 0, r), 1, c)

    kp = {
        # bf16 embedding table: halves the gather's HBM traffic.
        "emb_table": _pad_axis(params["emb"], 1, Dp).astype(jnp.bfloat16),
        "pe": _pad_axis(make_positional_encoding(max_len, D), 1, Dp),
        "wdec": pad2(params["dec_w"].T, Dp, Vp).astype(jnp.bfloat16),   # [Dp, Vp]
        "bdec": _pad_axis(params["dec_b"], 0, Vp).reshape(1, Vp),
        "layers": [],
    }

    for lp in params["layers"]:
        W = lp["in_proj_w"]      # [3D, D] rows = [q; k; v], per-head groups of dh
        b = lp["in_proj_b"]      # [3D]

        def head_major_w(Wi):    # [D, D] (rows=out per head) -> [H, Dp, dhp]
            Wi = Wi.reshape(H, dh, D)
            Wi = jnp.transpose(Wi, (0, 2, 1))             # [H, D_in, dh]
            return _pad_axis(_pad_axis(Wi, 1, Dp), 2, dhp)

        def head_major_b(bi):    # [D] -> [H, 1, dhp]
            return _pad_axis(bi.reshape(H, dh), 1, dhp)[:, None, :]

        wqkv = jnp.concatenate([head_major_w(W[0:D]),
                                head_major_w(W[D:2 * D]),
                                head_major_w(W[2 * D:3 * D])],
                               axis=2).astype(jnp.bfloat16)           # [H, Dp, 3*dhp]
        bqkv = jnp.concatenate([head_major_b(b[0:D]),
                                head_major_b(b[D:2 * D]),
                                head_major_b(b[2 * D:3 * D])], axis=2)  # [H, 1, 3*dhp]

        # out_proj: concat-heads @ Wo.T == sum_h (head_h @ Wo.T[h*dh:(h+1)*dh, :])
        WoT = lp["out_proj_w"].T.reshape(H, dh, D)                    # [H, dh, D]
        wout = _pad_axis(_pad_axis(WoT, 1, dhp), 2, Dp).astype(jnp.bfloat16)

        kp["layers"].append((
            wqkv, bqkv, wout,
            _pad_axis(lp["out_proj_b"], 0, Dp).reshape(1, Dp),
            _pad_axis(lp["ln1_g"], 0, Dp).reshape(1, Dp),             # padded with 0
            _pad_axis(lp["ln1_b"], 0, Dp).reshape(1, Dp),
            pad2(lp["lin1_w"].T, Dp, Hp).astype(jnp.bfloat16),        # [Dp, Hp]
            _pad_axis(lp["lin1_b"], 0, Hp).reshape(1, Hp),
            pad2(lp["lin2_w"].T, Hp, Dp).astype(jnp.bfloat16),        # [Hp, Dp]
            _pad_axis(lp["lin2_b"], 0, Dp).reshape(1, Dp),
            _pad_axis(lp["ln2_g"], 0, Dp).reshape(1, Dp),
            _pad_axis(lp["ln2_b"], 0, Dp).reshape(1, Dp),
        ))
    return kp


# --------------------------------- main --------------------------------------

if __name__ == "__main__":
    # Shapes consistent with the module (spec fixes nhead=2, nlayers=2, d_hid=200).
    ntoken, d_model, nhead, d_hid, nlayers = 40, 32, 2, 200, 2
    S, B = 8, 2

    key = jax.random.PRNGKey(0)
    k_param, k_src = jax.random.split(key)

    params = init_params(k_param, ntoken, d_model, d_hid, nlayers)
    kparams = prepare_kernel_params(params, d_model=d_model, d_hid=d_hid,
                                    nhead=nhead, ntoken=ntoken)

    src = jax.random.randint(k_src, (S, B), 0, ntoken, dtype=jnp.int32)
    # Causal additive mask, as in the PyTorch language-model tutorial.
    src_mask = jnp.where(jnp.triu(jnp.ones((S, S), bool), k=1),
                         -1e9, 0.0).astype(jnp.float32)

    fwd = jax.jit(partial(transformer_forward, d_model=d_model, nhead=nhead,
                          nlayers=nlayers, ntoken=ntoken))
    out = fwd(kparams, src, src_mask)
    out = jax.block_until_ready(out)

    assert out.shape == (S, B, ntoken), out.shape
    assert bool(jnp.all(jnp.isfinite(out)))
    print("KERNEL_OK")
</pallas_src>

<mosaic_0001>
module attributes {stable_mosaic.version = 11 : i64} {
  func.func @_fused_transformer_kernel(%arg0: i32, %arg1: memref<1x8x128xbf16, #tpu.memory_space<vmem>>, %arg2: memref<8x128xf32, #tpu.memory_space<vmem>>, %arg3: memref<8x8xf32, #tpu.memory_space<vmem>>, %arg4: memref<2x128x384xbf16, #tpu.memory_space<vmem>>, %arg5: memref<2x1x384xf32, #tpu.memory_space<vmem>>, %arg6: memref<2x128x128xbf16, #tpu.memory_space<vmem>>, %arg7: memref<1x128xf32, #tpu.memory_space<vmem>>, %arg8: memref<1x128xf32, #tpu.memory_space<vmem>>, %arg9: memref<1x128xf32, #tpu.memory_space<vmem>>, %arg10: memref<128x256xbf16, #tpu.memory_space<vmem>>, %arg11: memref<1x256xf32, #tpu.memory_space<vmem>>, %arg12: memref<256x128xbf16, #tpu.memory_space<vmem>>, %arg13: memref<1x128xf32, #tpu.memory_space<vmem>>, %arg14: memref<1x128xf32, #tpu.memory_space<vmem>>, %arg15: memref<1x128xf32, #tpu.memory_space<vmem>>, %arg16: memref<2x128x384xbf16, #tpu.memory_space<vmem>>, %arg17: memref<2x1x384xf32, #tpu.memory_space<vmem>>, %arg18: memref<2x128x128xbf16, #tpu.memory_space<vmem>>, %arg19: memref<1x128xf32, #tpu.memory_space<vmem>>, %arg20: memref<1x128xf32, #tpu.memory_space<vmem>>, %arg21: memref<1x128xf32, #tpu.memory_space<vmem>>, %arg22: memref<128x256xbf16, #tpu.memory_space<vmem>>, %arg23: memref<1x256xf32, #tpu.memory_space<vmem>>, %arg24: memref<256x128xbf16, #tpu.memory_space<vmem>>, %arg25: memref<1x128xf32, #tpu.memory_space<vmem>>, %arg26: memref<1x128xf32, #tpu.memory_space<vmem>>, %arg27: memref<1x128xf32, #tpu.memory_space<vmem>>, %arg28: memref<128x128xbf16, #tpu.memory_space<vmem>>, %arg29: memref<1x128xf32, #tpu.memory_space<vmem>>, %arg30: memref<8x128xf32, #tpu.memory_space<vmem>>) attributes {dimension_semantics = [#tpu.dimension_semantics<parallel>], iteration_bounds = array<i64: 2>, scalar_prefetch = 0 : i64, scratch_operands = 0 : i64, tpu.core_type = #tpu.core_type<tc>, window_params = [{transform_indices = @transform_0, window_bounds = array<i64: 1, 8, 128>}, {pipeline_mode = #tpu.pipeline_mode<synchronous>, transform_indices = @transform_1, window_bounds = array<i64: 8, 128>}, {pipeline_mode = #tpu.pipeline_mode<synchronous>, transform_indices = @transform_2, window_bounds = array<i64: 8, 8>}, {pipeline_mode = #tpu.pipeline_mode<synchronous>, transform_indices = @transform_3, window_bounds = array<i64: 2, 128, 384>}, {pipeline_mode = #tpu.pipeline_mode<synchronous>, transform_indices = @transform_4, window_bounds = array<i64: 2, 1, 384>}, {pipeline_mode = #tpu.pipeline_mode<synchronous>, transform_indices = @transform_5, window_bounds = array<i64: 2, 128, 128>}, {pipeline_mode = #tpu.pipeline_mode<synchronous>, transform_indices = @transform_6, window_bounds = array<i64: 1, 128>}, {pipeline_mode = #tpu.pipeline_mode<synchronous>, transform_indices = @transform_7, window_bounds = array<i64: 1, 128>}, {pipeline_mode = #tpu.pipeline_mode<synchronous>, transform_indices = @transform_8, window_bounds = array<i64: 1, 128>}, {pipeline_mode = #tpu.pipeline_mode<synchronous>, transform_indices = @transform_9, window_bounds = array<i64: 128, 256>}, {pipeline_mode = #tpu.pipeline_mode<synchronous>, transform_indices = @transform_10, window_bounds = array<i64: 1, 256>}, {pipeline_mode = #tpu.pipeline_mode<synchronous>, transform_indices = @transform_11, window_bounds = array<i64: 256, 128>}, {pipeline_mode = #tpu.pipeline_mode<synchronous>, transform_indices = @transform_12, window_bounds = array<i64: 1, 128>}, {pipeline_mode = #tpu.pipeline_mode<synchronous>, transform_indices = @transform_13, window_bounds = array<i64: 1, 128>}, {pipeline_mode = #tpu.pipeline_mode<synchronous>, transform_indices = @transform_14, window_bounds = array<i64: 1, 128>}, {pipeline_mode = #tpu.pipeline_mode<synchronous>, transform_indices = @transform_15, window_bounds = array<i64: 2, 128, 384>}, {pipeline_mode = #tpu.pipeline_mode<synchronous>, transform_indices = @transform_16, window_bounds = array<i64: 2, 1, 384>}, {pipeline_mode = #tpu.pipeline_mode<synchronous>, transform_indices = @transform_17, window_bounds = array<i64: 2, 128, 128>}, {pipeline_mode = #tpu.pipeline_mode<synchronous>, transform_indices = @transform_18, window_bounds = array<i64: 1, 128>}, {pipeline_mode = #tpu.pipeline_mode<synchronous>, transform_indices = @transform_19, window_bounds = array<i64: 1, 128>}, {pipeline_mode = #tpu.pipeline_mode<synchronous>, transform_indices = @transform_20, window_bounds = array<i64: 1, 128>}, {pipeline_mode = #tpu.pipeline_mode<synchronous>, transform_indices = @transform_21, window_bounds = array<i64: 128, 256>}, {pipeline_mode = #tpu.pipeline_mode<synchronous>, transform_indices = @transform_22, window_bounds = array<i64: 1, 256>}, {pipeline_mode = #tpu.pipeline_mode<synchronous>, transform_indices = @transform_23, window_bounds = array<i64: 256, 128>}, {pipeline_mode = #tpu.pipeline_mode<synchronous>, transform_indices = @transform_24, window_bounds = array<i64: 1, 128>}, {pipeline_mode = #tpu.pipeline_mode<synchronous>, transform_indices = @transform_25, window_bounds = array<i64: 1, 128>}, {pipeline_mode = #tpu.pipeline_mode<synchronous>, transform_indices = @transform_26, window_bounds = array<i64: 1, 128>}, {pipeline_mode = #tpu.pipeline_mode<synchronous>, transform_indices = @transform_27, window_bounds = array<i64: 128, 128>}, {pipeline_mode = #tpu.pipeline_mode<synchronous>, transform_indices = @transform_28, window_bounds = array<i64: 1, 128>}, {transform_indices = @transform_29, window_bounds = array<i64: 8, 128>}]} {
    %c0 = arith.constant 0 : index
    %c0_0 = arith.constant 0 : index
    %0 = vector.load %arg3[%c0, %c0_0] : memref<8x8xf32, #tpu.memory_space<vmem>>, vector<8x8xf32>
    %c0_1 = arith.constant 0 : index
    %c0_2 = arith.constant 0 : index
    %c0_3 = arith.constant 0 : index
    %1 = vector.load %arg1[%c0_1, %c0_2, %c0_3] : memref<1x8x128xbf16, #tpu.memory_space<vmem>>, vector<1x8x128xbf16>
    %2 = vector.shape_cast %1 : vector<1x8x128xbf16> to vector<8x128xbf16>
    %3 = arith.extf %2 : vector<8x128xbf16> to vector<8x128xf32>
    %cst = arith.constant 5.65685415 : f32
    %4 = vector.broadcast %cst : f32 to vector<8x128xf32>
    %5 = arith.mulf %3, %4 : vector<8x128xf32>
    %c0_4 = arith.constant 0 : index
    %c0_5 = arith.constant 0 : index
    %6 = vector.load %arg2[%c0_4, %c0_5] : memref<8x128xf32, #tpu.memory_space<vmem>>, vector<8x128xf32>
    %7 = arith.addf %5, %6 : vector<8x128xf32>
    %8 = arith.truncf %7 : vector<8x128xf32> to vector<8x128xbf16>
    %9 = vector.shape_cast %8 : vector<8x128xbf16> to vector<1x8x128xbf16>
    %10 = vector.shape_cast %9 : vector<1x8x128xbf16> to vector<1x8x128xbf16>
    %11 = vector.broadcast %10 : vector<1x8x128xbf16> to vector<2x8x128xbf16>
    %c0_6 = arith.constant 0 : index
    %c0_7 = arith.constant 0 : index
    %c0_8 = arith.constant 0 : index
    %12 = vector.load %arg4[%c0_6, %c0_7, %c0_8] : memref<2x128x384xbf16, #tpu.memory_space<vmem>>, vector<2x128x384xbf16>
    %cst_9 = arith.constant dense<0.000000e+00> : vector<2x8x384xf32>
    %13 = tpu.matmul %11, %12, %cst_9 {dimension_numbers = #tpu.dot_dimension_numbers<[2], [1], [1], [2], [0, 0, 0, 1, 1, 2], [0], [0]>} : vector<2x8x128xbf16>, vector<2x128x384xbf16>, vector<2x8x384xf32> -> vector<2x8x384xf32>
    %c0_10 = arith.constant 0 : index
    %c0_11 = arith.constant 0 : index
    %c0_12 = arith.constant 0 : index
    %14 = vector.load %arg5[%c0_10, %c0_11, %c0_12] : memref<2x1x384xf32, #tpu.memory_space<vmem>>, vector<2x1x384xf32>
    %15 = vector.broadcast %14 : vector<2x1x384xf32> to vector<2x8x384xf32>
    %16 = arith.addf %13, %15 : vector<2x8x384xf32>
    %17 = vector.extract_strided_slice %16 {offsets = [0, 0, 0], sizes = [2, 8, 128], strides = [1, 1, 1]} : vector<2x8x384xf32> to vector<2x8x128xf32>
    %cst_13 = arith.constant 2.500000e-01 : f32
    %18 = vector.broadcast %cst_13 : f32 to vector<2x8x128xf32>
    %19 = arith.mulf %17, %18 : vector<2x8x128xf32>
    %20 = arith.truncf %19 : vector<2x8x128xf32> to vector<2x8x128xbf16>
    %21 = vector.extract_strided_slice %16 {offsets = [0, 0, 128], sizes = [2, 8, 128], strides = [1, 1, 1]} : vector<2x8x384xf32> to vector<2x8x128xf32>
    %22 = arith.truncf %21 : vector<2x8x128xf32> to vector<2x8x128xbf16>
    %23 = vector.extract_strided_slice %16 {offsets = [0, 0, 256], sizes = [2, 8, 128], strides = [1, 1, 1]} : vector<2x8x384xf32> to vector<2x8x128xf32>
    %24 = arith.truncf %23 : vector<2x8x128xf32> to vector<2x8x128xbf16>
    %cst_14 = arith.constant dense<0.000000e+00> : vector<2x8x8xf32>
    %25 = tpu.matmul %20, %22, %cst_14 {dimension_numbers = #tpu.dot_dimension_numbers<[2], [2], [1], [1], [0, 0, 0, 1, 1, 1], [0], [0]>} : vector<2x8x128xbf16>, vector<2x8x128xbf16>, vector<2x8x8xf32> -> vector<2x8x8xf32>
    %26 = vector.shape_cast %0 : vector<8x8xf32> to vector<1x8x8xf32>
    %27 = vector.broadcast %26 : vector<1x8x8xf32> to vector<2x8x8xf32>
    %28 = arith.addf %25, %27 : vector<2x8x8xf32>
    %cst_15 = arith.constant dense<0xFF800000> : vector<2x8xf32>
    %29 = vector.multi_reduction <maximumf>, %28, %cst_15 [2] : vector<2x8x8xf32> to vector<2x8xf32>
    %30 = vector.shape_cast %29 : vector<2x8xf32> to vector<2x8x1xf32>
    %31 = vector.broadcast %30 : vector<2x8x1xf32> to vector<2x8x8xf32>
    %32 = arith.subf %28, %31 : vector<2x8x8xf32>
    %33 = math.exp %32 : vector<2x8x8xf32>
    %cst_16 = arith.constant dense<0.000000e+00> : vector<2x8xf32>
    %34 = vector.multi_reduction <add>, %33, %cst_16 [2] : vector<2x8x8xf32> to vector<2x8xf32>
    %35 = vector.shape_cast %34 : vector<2x8xf32> to vector<2x8x1xf32>
    %36 = vector.broadcast %35 : vector<2x8x1xf32> to vector<2x8x8xf32>
    %37 = arith.divf %33, %36 : vector<2x8x8xf32>
    %38 = arith.truncf %37 : vector<2x8x8xf32> to vector<2x8x8xbf16>
    %cst_17 = arith.constant dense<0.000000e+00> : vector<2x8x128xf32>
    %39 = tpu.matmul %38, %24, %cst_17 {dimension_numbers = #tpu.dot_dimension_numbers<[2], [1], [1], [2], [0, 0, 0, 1, 1, 2], [0], [0]>} : vector<2x8x8xbf16>, vector<2x8x128xbf16>, vector<2x8x128xf32> -> vector<2x8x128xf32>
    %40 = arith.truncf %39 : vector<2x8x128xf32> to vector<2x8x128xbf16>
    %c0_18 = arith.constant 0 : index
    %c0_19 = arith.constant 0 : index
    %c0_20 = arith.constant 0 : index
    %41 = vector.load %arg6[%c0_18, %c0_19, %c0_20] : memref<2x128x128xbf16, #tpu.memory_space<vmem>>, vector<2x128x128xbf16>
    %cst_21 = arith.constant dense<0.000000e+00> : vector<2x8x128xf32>
    %42 = tpu.matmul %40, %41, %cst_21 {dimension_numbers = #tpu.dot_dimension_numbers<[2], [1], [1], [2], [0, 0, 0, 1, 1, 2], [0], [0]>} : vector<2x8x128xbf16>, vector<2x128x128xbf16>, vector<2x8x128xf32> -> vector<2x8x128xf32>
    %cst_22 = arith.constant dense<0.000000e+00> : vector<8x128xf32>
    %43 = vector.multi_reduction <add>, %42, %cst_22 [0] : vector<2x8x128xf32> to vector<8x128xf32>
    %44 = arith.addf %7, %43 : vector<8x128xf32>
    %c0_23 = arith.constant 0 : index
    %c0_24 = arith.constant 0 : index
    %45 = vector.load %arg7[%c0_23, %c0_24] : memref<1x128xf32, #tpu.memory_space<vmem>>, vector<1x128xf32>
    %46 = vector.broadcast %45 : vector<1x128xf32> to vector<8x128xf32>
    %47 = arith.addf %44, %46 : vector<8x128xf32>
    %cst_25 = arith.constant dense<0.000000e+00> : vector<8xf32>
    %48 = vector.multi_reduction <add>, %47, %cst_25 [1] : vector<8x128xf32> to vector<8xf32>
    %49 = vector.shape_cast %48 : vector<8xf32> to vector<8x1xf32>
    %cst_26 = arith.constant 3.125000e-02 : f32
    %50 = vector.broadcast %cst_26 : f32 to vector<8x1xf32>
    %51 = arith.mulf %49, %50 : vector<8x1xf32>
    %52 = arith.mulf %47, %47 : vector<8x128xf32>
    %cst_27 = arith.constant dense<0.000000e+00> : vector<8xf32>
    %53 = vector.multi_reduction <add>, %52, %cst_27 [1] : vector<8x128xf32> to vector<8xf32>
    %54 = vector.shape_cast %53 : vector<8xf32> to vector<8x1xf32>
    %cst_28 = arith.constant 3.125000e-02 : f32
    %55 = vector.broadcast %cst_28 : f32 to vector<8x1xf32>
    %56 = arith.mulf %54, %55 : vector<8x1xf32>
    %57 = arith.mulf %51, %51 : vector<8x1xf32>
    %58 = arith.subf %56, %57 : vector<8x1xf32>
    %59 = vector.broadcast %51 : vector<8x1xf32> to vector<8x128xf32>
    %60 = arith.subf %47, %59 : vector<8x128xf32>
    %cst_29 = arith.constant 9.99999974E-6 : f32
    %61 = vector.broadcast %cst_29 : f32 to vector<8x1xf32>
    %62 = arith.addf %58, %61 : vector<8x1xf32>
    %63 = math.rsqrt %62 : vector<8x1xf32>
    %64 = vector.broadcast %63 : vector<8x1xf32> to vector<8x128xf32>
    %65 = arith.mulf %60, %64 : vector<8x128xf32>
    %c0_30 = arith.constant 0 : index
    %c0_31 = arith.constant 0 : index
    %66 = vector.load %arg8[%c0_30, %c0_31] : memref<1x128xf32, #tpu.memory_space<vmem>>, vector<1x128xf32>
    %67 = vector.broadcast %66 : vector<1x128xf32> to vector<8x128xf32>
    %68 = arith.mulf %65, %67 : vector<8x128xf32>
    %c0_32 = arith.constant 0 : index
    %c0_33 = arith.constant 0 : index
    %69 = vector.load %arg9[%c0_32, %c0_33] : memref<1x128xf32, #tpu.memory_space<vmem>>, vector<1x128xf32>
    %70 = vector.broadcast %69 : vector<1x128xf32> to vector<8x128xf32>
    %71 = arith.addf %68, %70 : vector<8x128xf32>
    %72 = arith.truncf %71 : vector<8x128xf32> to vector<8x128xbf16>
    %c0_34 = arith.constant 0 : index
    %c0_35 = arith.constant 0 : index
    %73 = vector.load %arg10[%c0_34, %c0_35] : memref<128x256xbf16, #tpu.memory_space<vmem>>, vector<128x256xbf16>
    %cst_36 = arith.constant dense<0.000000e+00> : vector<8x256xf32>
    %74 = tpu.matmul %72, %73, %cst_36 {dimension_numbers = #tpu.dot_dimension_numbers<[1], [0], [0], [1], [0, 0, 1, 1], [], []>} : vector<8x128xbf16>, vector<128x256xbf16>, vector<8x256xf32> -> vector<8x256xf32>
    %c0_37 = arith.constant 0 : index
    %c0_38 = arith.constant 0 : index
    %75 = vector.load %arg11[%c0_37, %c0_38] : memref<1x256xf32, #tpu.memory_space<vmem>>, vector<1x256xf32>
    %76 = vector.broadcast %75 : vector<1x256xf32> to vector<8x256xf32>
    %77 = arith.addf %74, %76 : vector<8x256xf32>
    %cst_39 = arith.constant 0.000000e+00 : f32
    %78 = vector.broadcast %cst_39 : f32 to vector<8x256xf32>
    %79 = arith.maximumf %77, %78 : vector<8x256xf32>
    %80 = arith.truncf %79 : vector<8x256xf32> to vector<8x256xbf16>
    %c0_40 = arith.constant 0 : index
    %c0_41 = arith.constant 0 : index
    %81 = vector.load %arg12[%c0_40, %c0_41] : memref<256x128xbf16, #tpu.memory_space<vmem>>, vector<256x128xbf16>
    %cst_42 = arith.constant dense<0.000000e+00> : vector<8x128xf32>
    %82 = tpu.matmul %80, %81, %cst_42 {dimension_numbers = #tpu.dot_dimension_numbers<[1], [0], [0], [1], [0, 0, 1, 1], [], []>} : vector<8x256xbf16>, vector<256x128xbf16>, vector<8x128xf32> -> vector<8x128xf32>
    %c0_43 = arith.constant 0 : index
    %c0_44 = arith.constant 0 : index
    %83 = vector.load %arg13[%c0_43, %c0_44] : memref<1x128xf32, #tpu.memory_space<vmem>>, vector<1x128xf32>
    %84 = vector.broadcast %83 : vector<1x128xf32> to vector<8x128xf32>
    %85 = arith.addf %82, %84 : vector<8x128xf32>
    %86 = arith.addf %71, %85 : vector<8x128xf32>
    %cst_45 = arith.constant dense<0.000000e+00> : vector<8xf32>
    %87 = vector.multi_reduction <add>, %86, %cst_45 [1] : vector<8x128xf32> to vector<8xf32>
    %88 = vector.shape_cast %87 : vector<8xf32> to vector<8x1xf32>
    %cst_46 = arith.constant 3.125000e-02 : f32
    %89 = vector.broadcast %cst_46 : f32 to vector<8x1xf32>
    %90 = arith.mulf %88, %89 : vector<8x1xf32>
    %91 = arith.mulf %86, %86 : vector<8x128xf32>
    %cst_47 = arith.constant dense<0.000000e+00> : vector<8xf32>
    %92 = vector.multi_reduction <add>, %91, %cst_47 [1] : vector<8x128xf32> to vector<8xf32>
    %93 = vector.shape_cast %92 : vector<8xf32> to vector<8x1xf32>
    %cst_48 = arith.constant 3.125000e-02 : f32
    %94 = vector.broadcast %cst_48 : f32 to vector<8x1xf32>
    %95 = arith.mulf %93, %94 : vector<8x1xf32>
    %96 = arith.mulf %90, %90 : vector<8x1xf32>
    %97 = arith.subf %95, %96 : vector<8x1xf32>
    %98 = vector.broadcast %90 : vector<8x1xf32> to vector<8x128xf32>
    %99 = arith.subf %86, %98 : vector<8x128xf32>
    %cst_49 = arith.constant 9.99999974E-6 : f32
    %100 = vector.broadcast %cst_49 : f32 to vector<8x1xf32>
    %101 = arith.addf %97, %100 : vector<8x1xf32>
    %102 = math.rsqrt %101 : vector<8x1xf32>
    %103 = vector.broadcast %102 : vector<8x1xf32> to vector<8x128xf32>
    %104 = arith.mulf %99, %103 : vector<8x128xf32>
    %c0_50 = arith.constant 0 : index
    %c0_51 = arith.constant 0 : index
    %105 = vector.load %arg14[%c0_50, %c0_51] : memref<1x128xf32, #tpu.memory_space<vmem>>, vector<1x128xf32>
    %106 = vector.broadcast %105 : vector<1x128xf32> to vector<8x128xf32>
    %107 = arith.mulf %104, %106 : vector<8x128xf32>
    %c0_52 = arith.constant 0 : index
    %c0_53 = arith.constant 0 : index
    %108 = vector.load %arg15[%c0_52, %c0_53] : memref<1x128xf32, #tpu.memory_space<vmem>>, vector<1x128xf32>
    %109 = vector.broadcast %108 : vector<1x128xf32> to vector<8x128xf32>
    %110 = arith.addf %107, %109 : vector<8x128xf32>
    %111 = arith.truncf %110 : vector<8x128xf32> to vector<8x128xbf16>
    %112 = vector.shape_cast %111 : vector<8x128xbf16> to vector<1x8x128xbf16>
    %113 = vector.shape_cast %112 : vector<1x8x128xbf16> to vector<1x8x128xbf16>
    %114 = vector.broadcast %113 : vector<1x8x128xbf16> to vector<2x8x128xbf16>
    %c0_54 = arith.constant 0 : index
    %c0_55 = arith.constant 0 : index
    %c0_56 = arith.constant 0 : index
    %115 = vector.load %arg16[%c0_54, %c0_55, %c0_56] : memref<2x128x384xbf16, #tpu.memory_space<vmem>>, vector<2x128x384xbf16>
    %cst_57 = arith.constant dense<0.000000e+00> : vector<2x8x384xf32>
    %116 = tpu.matmul %114, %115, %cst_57 {dimension_numbers = #tpu.dot_dimension_numbers<[2], [1], [1], [2], [0, 0, 0, 1, 1, 2], [0], [0]>} : vector<2x8x128xbf16>, vector<2x128x384xbf16>, vector<2x8x384xf32> -> vector<2x8x384xf32>
    %c0_58 = arith.constant 0 : index
    %c0_59 = arith.constant 0 : index
    %c0_60 = arith.constant 0 : index
    %117 = vector.load %arg17[%c0_58, %c0_59, %c0_60] : memref<2x1x384xf32, #tpu.memory_space<vmem>>, vector<2x1x384xf32>
    %118 = vector.broadcast %117 : vector<2x1x384xf32> to vector<2x8x384xf32>
    %119 = arith.addf %116, %118 : vector<2x8x384xf32>
    %120 = vector.extract_strided_slice %119 {offsets = [0, 0, 0], sizes = [2, 8, 128], strides = [1, 1, 1]} : vector<2x8x384xf32> to vector<2x8x128xf32>
    %cst_61 = arith.constant 2.500000e-01 : f32
    %121 = vector.broadcast %cst_61 : f32 to vector<2x8x128xf32>
    %122 = arith.mulf %120, %121 : vector<2x8x128xf32>
    %123 = arith.truncf %122 : vector<2x8x128xf32> to vector<2x8x128xbf16>
    %124 = vector.extract_strided_slice %119 {offsets = [0, 0, 128], sizes = [2, 8, 128], strides = [1, 1, 1]} : vector<2x8x384xf32> to vector<2x8x128xf32>
    %125 = arith.truncf %124 : vector<2x8x128xf32> to vector<2x8x128xbf16>
    %126 = vector.extract_strided_slice %119 {offsets = [0, 0, 256], sizes = [2, 8, 128], strides = [1, 1, 1]} : vector<2x8x384xf32> to vector<2x8x128xf32>
    %127 = arith.truncf %126 : vector<2x8x128xf32> to vector<2x8x128xbf16>
    %cst_62 = arith.constant dense<0.000000e+00> : vector<2x8x8xf32>
    %128 = tpu.matmul %123, %125, %cst_62 {dimension_numbers = #tpu.dot_dimension_numbers<[2], [2], [1], [1], [0, 0, 0, 1, 1, 1], [0], [0]>} : vector<2x8x128xbf16>, vector<2x8x128xbf16>, vector<2x8x8xf32> -> vector<2x8x8xf32>
    %129 = vector.shape_cast %0 : vector<8x8xf32> to vector<1x8x8xf32>
    %130 = vector.broadcast %129 : vector<1x8x8xf32> to vector<2x8x8xf32>
    %131 = arith.addf %128, %130 : vector<2x8x8xf32>
    %cst_63 = arith.constant dense<0xFF800000> : vector<2x8xf32>
    %132 = vector.multi_reduction <maximumf>, %131, %cst_63 [2] : vector<2x8x8xf32> to vector<2x8xf32>
    %133 = vector.shape_cast %132 : vector<2x8xf32> to vector<2x8x1xf32>
    %134 = vector.broadcast %133 : vector<2x8x1xf32> to vector<2x8x8xf32>
    %135 = arith.subf %131, %134 : vector<2x8x8xf32>
    %136 = math.exp %135 : vector<2x8x8xf32>
    %cst_64 = arith.constant dense<0.000000e+00> : vector<2x8xf32>
    %137 = vector.multi_reduction <add>, %136, %cst_64 [2] : vector<2x8x8xf32> to vector<2x8xf32>
    %138 = vector.shape_cast %137 : vector<2x8xf32> to vector<2x8x1xf32>
    %139 = vector.broadcast %138 : vector<2x8x1xf32> to vector<2x8x8xf32>
    %140 = arith.divf %136, %139 : vector<2x8x8xf32>
    %141 = arith.truncf %140 : vector<2x8x8xf32> to vector<2x8x8xbf16>
    %cst_65 = arith.constant dense<0.000000e+00> : vector<2x8x128xf32>
    %142 = tpu.matmul %141, %127, %cst_65 {dimension_numbers = #tpu.dot_dimension_numbers<[2], [1], [1], [2], [0, 0, 0, 1, 1, 2], [0], [0]>} : vector<2x8x8xbf16>, vector<2x8x128xbf16>, vector<2x8x128xf32> -> vector<2x8x128xf32>
    %143 = arith.truncf %142 : vector<2x8x128xf32> to vector<2x8x128xbf16>
    %c0_66 = arith.constant 0 : index
    %c0_67 = arith.constant 0 : index
    %c0_68 = arith.constant 0 : index
    %144 = vector.load %arg18[%c0_66, %c0_67, %c0_68] : memref<2x128x128xbf16, #tpu.memory_space<vmem>>, vector<2x128x128xbf16>
    %cst_69 = arith.constant dense<0.000000e+00> : vector<2x8x128xf32>
    %145 = tpu.matmul %143, %144, %cst_69 {dimension_numbers = #tpu.dot_dimension_numbers<[2], [1], [1], [2], [0, 0, 0, 1, 1, 2], [0], [0]>} : vector<2x8x128xbf16>, vector<2x128x128xbf16>, vector<2x8x128xf32> -> vector<2x8x128xf32>
    %cst_70 = arith.constant dense<0.000000e+00> : vector<8x128xf32>
    %146 = vector.multi_reduction <add>, %145, %cst_70 [0] : vector<2x8x128xf32> to vector<8x128xf32>
    %147 = arith.addf %110, %146 : vector<8x128xf32>
    %c0_71 = arith.constant 0 : index
    %c0_72 = arith.constant 0 : index
    %148 = vector.load %arg19[%c0_71, %c0_72] : memref<1x128xf32, #tpu.memory_space<vmem>>, vector<1x128xf32>
    %149 = vector.broadcast %148 : vector<1x128xf32> to vector<8x128xf32>
    %150 = arith.addf %147, %149 : vector<8x128xf32>
    %cst_73 = arith.constant dense<0.000000e+00> : vector<8xf32>
    %151 = vector.multi_reduction <add>, %150, %cst_73 [1] : vector<8x128xf32> to vector<8xf32>
    %152 = vector.shape_cast %151 : vector<8xf32> to vector<8x1xf32>
    %cst_74 = arith.constant 3.125000e-02 : f32
    %153 = vector.broadcast %cst_74 : f32 to vector<8x1xf32>
    %154 = arith.mulf %152, %153 : vector<8x1xf32>
    %155 = arith.mulf %150, %150 : vector<8x128xf32>
    %cst_75 = arith.constant dense<0.000000e+00> : vector<8xf32>
    %156 = vector.multi_reduction <add>, %155, %cst_75 [1] : vector<8x128xf32> to vector<8xf32>
    %157 = vector.shape_cast %156 : vector<8xf32> to vector<8x1xf32>
    %cst_76 = arith.constant 3.125000e-02 : f32
    %158 = vector.broadcast %cst_76 : f32 to vector<8x1xf32>
    %159 = arith.mulf %157, %158 : vector<8x1xf32>
    %160 = arith.mulf %154, %154 : vector<8x1xf32>
    %161 = arith.subf %159, %160 : vector<8x1xf32>
    %162 = vector.broadcast %154 : vector<8x1xf32> to vector<8x128xf32>
    %163 = arith.subf %150, %162 : vector<8x128xf32>
    %cst_77 = arith.constant 9.99999974E-6 : f32
    %164 = vector.broadcast %cst_77 : f32 to vector<8x1xf32>
    %165 = arith.addf %161, %164 : vector<8x1xf32>
    %166 = math.rsqrt %165 : vector<8x1xf32>
    %167 = vector.broadcast %166 : vector<8x1xf32> to vector<8x128xf32>
    %168 = arith.mulf %163, %167 : vector<8x128xf32>
    %c0_78 = arith.constant 0 : index
    %c0_79 = arith.constant 0 : index
    %169 = vector.load %arg20[%c0_78, %c0_79] : memref<1x128xf32, #tpu.memory_space<vmem>>, vector<1x128xf32>
    %170 = vector.broadcast %169 : vector<1x128xf32> to vector<8x128xf32>
    %171 = arith.mulf %168, %170 : vector<8x128xf32>
    %c0_80 = arith.constant 0 : index
    %c0_81 = arith.constant 0 : index
    %172 = vector.load %arg21[%c0_80, %c0_81] : memref<1x128xf32, #tpu.memory_space<vmem>>, vector<1x128xf32>
    %173 = vector.broadcast %172 : vector<1x128xf32> to vector<8x128xf32>
    %174 = arith.addf %171, %173 : vector<8x128xf32>
    %175 = arith.truncf %174 : vector<8x128xf32> to vector<8x128xbf16>
    %c0_82 = arith.constant 0 : index
    %c0_83 = arith.constant 0 : index
    %176 = vector.load %arg22[%c0_82, %c0_83] : memref<128x256xbf16, #tpu.memory_space<vmem>>, vector<128x256xbf16>
    %cst_84 = arith.constant dense<0.000000e+00> : vector<8x256xf32>
    %177 = tpu.matmul %175, %176, %cst_84 {dimension_numbers = #tpu.dot_dimension_numbers<[1], [0], [0], [1], [0, 0, 1, 1], [], []>} : vector<8x128xbf16>, vector<128x256xbf16>, vector<8x256xf32> -> vector<8x256xf32>
    %c0_85 = arith.constant 0 : index
    %c0_86 = arith.constant 0 : index
    %178 = vector.load %arg23[%c0_85, %c0_86] : memref<1x256xf32, #tpu.memory_space<vmem>>, vector<1x256xf32>
    %179 = vector.broadcast %178 : vector<1x256xf32> to vector<8x256xf32>
    %180 = arith.addf %177, %179 : vector<8x256xf32>
    %cst_87 = arith.constant 0.000000e+00 : f32
    %181 = vector.broadcast %cst_87 : f32 to vector<8x256xf32>
    %182 = arith.maximumf %180, %181 : vector<8x256xf32>
    %183 = arith.truncf %182 : vector<8x256xf32> to vector<8x256xbf16>
    %c0_88 = arith.constant 0 : index
    %c0_89 = arith.constant 0 : index
    %184 = vector.load %arg24[%c0_88, %c0_89] : memref<256x128xbf16, #tpu.memory_space<vmem>>, vector<256x128xbf16>
    %cst_90 = arith.constant dense<0.000000e+00> : vector<8x128xf32>
    %185 = tpu.matmul %183, %184, %cst_90 {dimension_numbers = #tpu.dot_dimension_numbers<[1], [0], [0], [1], [0, 0, 1, 1], [], []>} : vector<8x256xbf16>, vector<256x128xbf16>, vector<8x128xf32> -> vector<8x128xf32>
    %c0_91 = arith.constant 0 : index
    %c0_92 = arith.constant 0 : index
    %186 = vector.load %arg25[%c0_91, %c0_92] : memref<1x128xf32, #tpu.memory_space<vmem>>, vector<1x128xf32>
    %187 = vector.broadcast %186 : vector<1x128xf32> to vector<8x128xf32>
    %188 = arith.addf %185, %187 : vector<8x128xf32>
    %189 = arith.addf %174, %188 : vector<8x128xf32>
    %cst_93 = arith.constant dense<0.000000e+00> : vector<8xf32>
    %190 = vector.multi_reduction <add>, %189, %cst_93 [1] : vector<8x128xf32> to vector<8xf32>
    %191 = vector.shape_cast %190 : vector<8xf32> to vector<8x1xf32>
    %cst_94 = arith.constant 3.125000e-02 : f32
    %192 = vector.broadcast %cst_94 : f32 to vector<8x1xf32>
    %193 = arith.mulf %191, %192 : vector<8x1xf32>
    %194 = arith.mulf %189, %189 : vector<8x128xf32>
    %cst_95 = arith.constant dense<0.000000e+00> : vector<8xf32>
    %195 = vector.multi_reduction <add>, %194, %cst_95 [1] : vector<8x128xf32> to vector<8xf32>
    %196 = vector.shape_cast %195 : vector<8xf32> to vector<8x1xf32>
    %cst_96 = arith.constant 3.125000e-02 : f32
    %197 = vector.broadcast %cst_96 : f32 to vector<8x1xf32>
    %198 = arith.mulf %196, %197 : vector<8x1xf32>
    %199 = arith.mulf %193, %193 : vector<8x1xf32>
    %200 = arith.subf %198, %199 : vector<8x1xf32>
    %201 = vector.broadcast %193 : vector<8x1xf32> to vector<8x128xf32>
    %202 = arith.subf %189, %201 : vector<8x128xf32>
    %cst_97 = arith.constant 9.99999974E-6 : f32
    %203 = vector.broadcast %cst_97 : f32 to vector<8x1xf32>
    %204 = arith.addf %200, %203 : vector<8x1xf32>
    %205 = math.rsqrt %204 : vector<8x1xf32>
    %206 = vector.broadcast %205 : vector<8x1xf32> to vector<8x128xf32>
    %207 = arith.mulf %202, %206 : vector<8x128xf32>
    %c0_98 = arith.constant 0 : index
    %c0_99 = arith.constant 0 : index
    %208 = vector.load %arg26[%c0_98, %c0_99] : memref<1x128xf32, #tpu.memory_space<vmem>>, vector<1x128xf32>
    %209 = vector.broadcast %208 : vector<1x128xf32> to vector<8x128xf32>
    %210 = arith.mulf %207, %209 : vector<8x128xf32>
    %c0_100 = arith.constant 0 : index
    %c0_101 = arith.constant 0 : index
    %211 = vector.load %arg27[%c0_100, %c0_101] : memref<1x128xf32, #tpu.memory_space<vmem>>, vector<1x128xf32>
    %212 = vector.broadcast %211 : vector<1x128xf32> to vector<8x128xf32>
    %213 = arith.addf %210, %212 : vector<8x128xf32>
    %214 = arith.truncf %213 : vector<8x128xf32> to vector<8x128xbf16>
    %c0_102 = arith.constant 0 : index
    %c0_103 = arith.constant 0 : index
    %215 = vector.load %arg28[%c0_102, %c0_103] : memref<128x128xbf16, #tpu.memory_space<vmem>>, vector<128x128xbf16>
    %cst_104 = arith.constant dense<0.000000e+00> : vector<8x128xf32>
    %216 = tpu.matmul %214, %215, %cst_104 {dimension_numbers = #tpu.dot_dimension_numbers<[1], [0], [0], [1], [0, 0, 1, 1], [], []>} : vector<8x128xbf16>, vector<128x128xbf16>, vector<8x128xf32> -> vector<8x128xf32>
    %c0_105 = arith.constant 0 : index
    %c0_106 = arith.constant 0 : index
    %217 = vector.load %arg29[%c0_105, %c0_106] : memref<1x128xf32, #tpu.memory_space<vmem>>, vector<1x128xf32>
    %218 = vector.broadcast %217 : vector<1x128xf32> to vector<8x128xf32>
    %219 = arith.addf %216, %218 : vector<8x128xf32>
    %c0_107 = arith.constant 0 : index
    %c0_108 = arith.constant 0 : index
    %220 = vector.load %arg30[%c0_107, %c0_108] : memref<8x128xf32, #tpu.memory_space<vmem>>, vector<8x128xf32>
    tpu.vector_store %arg30[%c0_107, %c0_108], %219 {strides = array<i32>} : memref<8x128xf32, #tpu.memory_space<vmem>>, vector<8x128xf32>,
    return
  }
  func.func @transform_0(%arg0: i32) -> (i32, i32, i32) {
    %c0_i32 = arith.constant 0 : i32
    %c0_i32_0 = arith.constant 0 : i32
    %c0_i32_1 = arith.constant 0 : i32
    return %arg0, %c0_i32, %c0_i32_0 : i32, i32, i32
  }
  func.func @transform_1(%arg0: i32) -> (i32, i32) {
    %c0_i32 = arith.constant 0 : i32
    %c0_i32_0 = arith.constant 0 : i32
    %c0_i32_1 = arith.constant 0 : i32
    return %c0_i32, %c0_i32_0 : i32, i32
  }
  func.func @transform_2(%arg0: i32) -> (i32, i32) {
    %c0_i32 = arith.constant 0 : i32
    %c0_i32_0 = arith.constant 0 : i32
    %c0_i32_1 = arith.constant 0 : i32
    return %c0_i32, %c0_i32_0 : i32, i32
  }
  func.func @transform_3(%arg0: i32) -> (i32, i32, i32) {
    %c0_i32 = arith.constant 0 : i32
    %c0_i32_0 = arith.constant 0 : i32
    %c0_i32_1 = arith.constant 0 : i32
    %c0_i32_2 = arith.constant 0 : i32
    return %c0_i32, %c0_i32_0, %c0_i32_1 : i32, i32, i32
  }
  func.func @transform_4(%arg0: i32) -> (i32, i32, i32) {
    %c0_i32 = arith.constant 0 : i32
    %c0_i32_0 = arith.constant 0 : i32
    %c0_i32_1 = arith.constant 0 : i32
    %c0_i32_2 = arith.constant 0 : i32
    return %c0_i32, %c0_i32_0, %c0_i32_1 : i32, i32, i32
  }
  func.func @transform_5(%arg0: i32) -> (i32, i32, i32) {
    %c0_i32 = arith.constant 0 : i32
    %c0_i32_0 = arith.constant 0 : i32
    %c0_i32_1 = arith.constant 0 : i32
    %c0_i32_2 = arith.constant 0 : i32
    return %c0_i32, %c0_i32_0, %c0_i32_1 : i32, i32, i32
  }
  func.func @transform_6(%arg0: i32) -> (i32, i32) {
    %c0_i32 = arith.constant 0 : i32
    %c0_i32_0 = arith.constant 0 : i32
    %c0_i32_1 = arith.constant 0 : i32
    return %c0_i32, %c0_i32_0 : i32, i32
  }
  func.func @transform_7(%arg0: i32) -> (i32, i32) {
    %c0_i32 = arith.constant 0 : i32
    %c0_i32_0 = arith.constant 0 : i32
    %c0_i32_1 = arith.constant 0 : i32
    return %c0_i32, %c0_i32_0 : i32, i32
  }
  func.func @transform_8(%arg0: i32) -> (i32, i32) {
    %c0_i32 = arith.constant 0 : i32
    %c0_i32_0 = arith.constant 0 : i32
    %c0_i32_1 = arith.constant 0 : i32
    return %c0_i32, %c0_i32_0 : i32, i32
  }
  func.func @transform_9(%arg0: i32) -> (i32, i32) {
    %c0_i32 = arith.constant 0 : i32
    %c0_i32_0 = arith.constant 0 : i32
    %c0_i32_1 = arith.constant 0 : i32
    return %c0_i32, %c0_i32_0 : i32, i32
  }
  func.func @transform_10(%arg0: i32) -> (i32, i32) {
    %c0_i32 = arith.constant 0 : i32
    %c0_i32_0 = arith.constant 0 : i32
    %c0_i32_1 = arith.constant 0 : i32
    return %c0_i32, %c0_i32_0 : i32, i32
  }
  func.func @transform_11(%arg0: i32) -> (i32, i32) {
    %c0_i32 = arith.constant 0 : i32
    %c0_i32_0 = arith.constant 0 : i32
    %c0_i32_1 = arith.constant 0 : i32
    return %c0_i32, %c0_i32_0 : i32, i32
  }
  func.func @transform_12(%arg0: i32) -> (i32, i32) {
    %c0_i32 = arith.constant 0 : i32
    %c0_i32_0 = arith.constant 0 : i32
    %c0_i32_1 = arith.constant 0 : i32
    return %c0_i32, %c0_i32_0 : i32, i32
  }
  func.func @transform_13(%arg0: i32) -> (i32, i32) {
    %c0_i32 = arith.constant 0 : i32
    %c0_i32_0 = arith.constant 0 : i32
    %c0_i32_1 = arith.constant 0 : i32
    return %c0_i32, %c0_i32_0 : i32, i32
  }
  func.func @transform_14(%arg0: i32) -> (i32, i32) {
    %c0_i32 = arith.constant 0 : i32
    %c0_i32_0 = arith.constant 0 : i32
    %c0_i32_1 = arith.constant 0 : i32
    return %c0_i32, %c0_i32_0 : i32, i32
  }
  func.func @transform_15(%arg0: i32) -> (i32, i32, i32) {
    %c0_i32 = arith.constant 0 : i32
    %c0_i32_0 = arith.constant 0 : i32
    %c0_i32_1 = arith.constant 0 : i32
    %c0_i32_2 = arith.constant 0 : i32
    return %c0_i32, %c0_i32_0, %c0_i32_1 : i32, i32, i32
  }
  func.func @transform_16(%arg0: i32) -> (i32, i32, i32) {
    %c0_i32 = arith.constant 0 : i32
    %c0_i32_0 = arith.constant 0 : i32
    %c0_i32_1 = arith.constant 0 : i32
    %c0_i32_2 = arith.constant 0 : i32
    return %c0_i32, %c0_i32_0, %c0_i32_1 : i32, i32, i32
  }
  func.func @transform_17(%arg0: i32) -> (i32, i32, i32) {
    %c0_i32 = arith.constant 0 : i32
    %c0_i32_0 = arith.constant 0 : i32
    %c0_i32_1 = arith.constant 0 : i32
    %c0_i32_2 = arith.constant 0 : i32
    return %c0_i32, %c0_i32_0, %c0_i32_1 : i32, i32, i32
  }
  func.func @transform_18(%arg0: i32) -> (i32, i32) {
    %c0_i32 = arith.constant 0 : i32
    %c0_i32_0 = arith.constant 0 : i32
    %c0_i32_1 = arith.constant 0 : i32
    return %c0_i32, %c0_i32_0 : i32, i32
  }
  func.func @transform_19(%arg0: i32) -> (i32, i32) {
    %c0_i32 = arith.constant 0 : i32
    %c0_i32_0 = arith.constant 0 : i32
    %c0_i32_1 = arith.constant 0 : i32
    return %c0_i32, %c0_i32_0 : i32, i32
  }
  func.func @transform_20(%arg0: i32) -> (i32, i32) {
    %c0_i32 = arith.constant 0 : i32
    %c0_i32_0 = arith.constant 0 : i32
    %c0_i32_1 = arith.constant 0 : i32
    return %c0_i32, %c0_i32_0 : i32, i32
  }
  func.func @transform_21(%arg0: i32) -> (i32, i32) {
    %c0_i32 = arith.constant 0 : i32
    %c0_i32_0 = arith.constant 0 : i32
    %c0_i32_1 = arith.constant 0 : i32
    return %c0_i32, %c0_i32_0 : i32, i32
  }
  func.func @transform_22(%arg0: i32) -> (i32, i32) {
    %c0_i32 = arith.constant 0 : i32
    %c0_i32_0 = arith.constant 0 : i32
    %c0_i32_1 = arith.constant 0 : i32
    return %c0_i32, %c0_i32_0 : i32, i32
  }
  func.func @transform_23(%arg0: i32) -> (i32, i32) {
    %c0_i32 = arith.constant 0 : i32
    %c0_i32_0 = arith.constant 0 : i32
    %c0_i32_1 = arith.constant 0 : i32
    return %c0_i32, %c0_i32_0 : i32, i32
  }
  func.func @transform_24(%arg0: i32) -> (i32, i32) {
    %c0_i32 = arith.constant 0 : i32
    %c0_i32_0 = arith.constant 0 : i32
    %c0_i32_1 = arith.constant 0 : i32
    return %c0_i32, %c0_i32_0 : i32, i32
  }
  func.func @transform_25(%arg0: i32) -> (i32, i32) {
    %c0_i32 = arith.constant 0 : i32
    %c0_i32_0 = arith.constant 0 : i32
    %c0_i32_1 = arith.constant 0 : i32
    return %c0_i32, %c0_i32_0 : i32, i32
  }
  func.func @transform_26(%arg0: i32) -> (i32, i32) {
    %c0_i32 = arith.constant 0 : i32
    %c0_i32_0 = arith.constant 0 : i32
    %c0_i32_1 = arith.constant 0 : i32
    return %c0_i32, %c0_i32_0 : i32, i32
  }
  func.func @transform_27(%arg0: i32) -> (i32, i32) {
    %c0_i32 = arith.constant 0 : i32
    %c0_i32_0 = arith.constant 0 : i32
    %c0_i32_1 = arith.constant 0 : i32
    return %c0_i32, %c0_i32_0 : i32, i32
  }
  func.func @transform_28(%arg0: i32) -> (i32, i32) {
    %c0_i32 = arith.constant 0 : i32
    %c0_i32_0 = arith.constant 0 : i32
    %c0_i32_1 = arith.constant 0 : i32
    return %c0_i32, %c0_i32_0 : i32, i32
  }
  func.func @transform_29(%arg0: i32) -> (i32, i32) {
    %c0_i32 = arith.constant 0 : i32
    %c0_i32_0 = arith.constant 0 : i32
    return %c0_i32, %arg0 : i32, i32
  }
}

</mosaic_0001>

<llo_original>
// kernel: transformer_forward.1
$region0: #{transformer_forward.1}
  #allocation0 [shape = 'u32[]', space=smem, size = 0x4, offset = 0x4, fixed_abs, tag = 'smem constant byte address 0x4 - core index']
  #allocation1 [shape = 'u32[144,128]{1,0:T(1,128)}', space=vmem, size = 0x12000, scoped, tag = 'internal scratch']
  %s0 = inlined_call_operand.smem [shape: u32[30], index: -1, kind: input, shape index: {}]
  %s1 = sld [smem:[%s0]]
  %s2 = scalar_lea.smem %s0, 1
  %s3 = sld [smem:[%s2]]
  %s4 = scalar_lea.smem %s0, 2
  %s5 = sld [smem:[%s4]]
  %s6 = scalar_lea.smem %s0, 3
  %s7 = sld [smem:[%s6]]
  %s8 = scalar_lea.smem %s0, 4
  %s9 = sld [smem:[%s8]]
  %s10 = scalar_lea.smem %s0, 5
  %s11 = sld [smem:[%s10]]
  %s12 = scalar_lea.smem %s0, 6
  %s13 = sld [smem:[%s12]]
  %s14 = scalar_lea.smem %s0, 7
  %s15 = sld [smem:[%s14]]
  %s16 = scalar_lea.smem %s0, 8
  %s17 = sld [smem:[%s16]]
  %s18 = scalar_lea.smem %s0, 9
  %s19 = sld [smem:[%s18]]
  %s20 = scalar_lea.smem %s0, 10
  %s21 = sld [smem:[%s20]]
  %s22 = scalar_lea.smem %s0, 11
  %s23 = sld [smem:[%s22]]
  %s24 = scalar_lea.smem %s0, 12
  %s25 = sld [smem:[%s24]]
  %s26 = scalar_lea.smem %s0, 13
  %s27 = sld [smem:[%s26]]
  %s28 = scalar_lea.smem %s0, 14
  %s29 = sld [smem:[%s28]]
  %s30 = scalar_lea.smem %s0, 15
  %s31 = sld [smem:[%s30]]
  %s32 = scalar_lea.smem %s0, 16
  %s33 = sld [smem:[%s32]]
  %s34 = scalar_lea.smem %s0, 17
  %s35 = sld [smem:[%s34]]
  %s36 = scalar_lea.smem %s0, 18
  %s37 = sld [smem:[%s36]]
  %s38 = scalar_lea.smem %s0, 19
  %s39 = sld [smem:[%s38]]
  %s40 = scalar_lea.smem %s0, 20
  %s41 = sld [smem:[%s40]]
  %s42 = scalar_lea.smem %s0, 21
  %s43 = sld [smem:[%s42]]
  %s44 = scalar_lea.smem %s0, 22
  %s45 = sld [smem:[%s44]]
  %s46 = scalar_lea.smem %s0, 23
  %s47 = sld [smem:[%s46]]
  %s48 = scalar_lea.smem %s0, 24
  %s49 = sld [smem:[%s48]]
  %s50 = scalar_lea.smem %s0, 25
  %s51 = sld [smem:[%s50]]
  %s52 = scalar_lea.smem %s0, 26
  %s53 = sld [smem:[%s52]]
  %s54 = scalar_lea.smem %s0, 27
  %s55 = sld [smem:[%s54]]
  %s56 = scalar_lea.smem %s0, 28
  %s57 = sld [smem:[%s56]]
  %s58 = scalar_lea.smem %s0, 29
  %s59 = sld [smem:[%s58]]
  %s60 = sld [smem:[#allocation0]]
  $region257: #{transformer_forward.1} parent=0
    _
  %s62 = ssub.s32 1, %s60
  %s63 = scalar_select 0, %s62, %s60
  $region1: #{transformer_forward.1} parent=0
    #allocation2 [shape = 'u8[4096]{0}', space=vmem, size = 0x1000, scoped, tag = 'input window, operand 2, single buffered']
    #allocation3 [shape = 's32[2]{0}', space=sflag, size = 0x8, scoped, tag = 'scoped memory for transformer_forward.1']
    #allocation4 [shape = 'u8[196608]{0}', space=vmem, size = 0x30000, scoped, tag = 'input window, operand 3, single buffered']
    #allocation5 [shape = 's32[1]{0}', space=sflag, size = 0x4, scoped, tag = 'scoped memory for transformer_forward.1']
    #allocation6 [shape = 'u8[3072]{0}', space=vmem, size = 0xc00, scoped, tag = 'input window, operand 4, single buffered']
    #allocation7 [shape = 'u8[65536]{0}', space=vmem, size = 0x10000, scoped, tag = 'input window, operand 5, single buffered']
    #allocation8 [shape = 's32[1]{0}', space=sflag, size = 0x4, scoped, tag = 'scoped memory for transformer_forward.1']
    #allocation9 [shape = 'u8[512]{0}', space=vmem, size = 0x400, scoped, tag = 'input window, operand 6, single buffered']
    #allocation10 [shape = 'u8[512]{0}', space=vmem, size = 0x400, scoped, tag = 'input window, operand 7, single buffered']
    #allocation11 [shape = 's32[1]{0}', space=sflag, size = 0x4, scoped, tag = 'scoped memory for transformer_forward.1']
    #allocation12 [shape = 'u8[512]{0}', space=vmem, size = 0x400, scoped, tag = 'input window, operand 8, single buffered']
    #allocation13 [shape = 'u8[65536]{0}', space=vmem, size = 0x10000, scoped, tag = 'input window, operand 9, single buffered']
    #allocation14 [shape = 's32[1]{0}', space=sflag, size = 0x4, scoped, tag = 'scoped memory for transformer_forward.1']
    #allocation15 [shape = 'u8[1024]{0}', space=vmem, size = 0x400, scoped, tag = 'input window, operand 10, single buffered']
    #allocation16 [shape = 'u8[65536]{0}', space=vmem, size = 0x10000, scoped, tag = 'input window, operand 11, single buffered']
    #allocation17 [shape = 's32[1]{0}', space=sflag, size = 0x4, scoped, tag = 'scoped memory for transformer_forward.1']
    #allocation18 [shape = 'u8[512]{0}', space=vmem, size = 0x400, scoped, tag = 'input window, operand 12, single buffered']
    #allocation19 [shape = 'u8[512]{0}', space=vmem, size = 0x400, scoped, tag = 'input window, operand 13, single buffered']
    #allocation20 [shape = 's32[1]{0}', space=sflag, size = 0x4, scoped, tag = 'scoped memory for transformer_forward.1']
    #allocation21 [shape = 'u8[512]{0}', space=vmem, size = 0x400, scoped, tag = 'input window, operand 14, single buffered']
    #allocation22 [shape = 'u8[196608]{0}', space=vmem, size = 0x30000, scoped, tag = 'input window, operand 15, single buffered']
    #allocation23 [shape = 's32[1]{0}', space=sflag, size = 0x4, scoped, tag = 'scoped memory for transformer_forward.1']
    #allocation24 [shape = 'u8[3072]{0}', space=vmem, size = 0xc00, scoped, tag = 'input window, operand 16, single buffered']
    #allocation25 [shape = 'u8[65536]{0}', space=vmem, size = 0x10000, scoped, tag = 'input window, operand 17, single buffered']
    #allocation26 [shape = 's32[1]{0}', space=sflag, size = 0x4, scoped, tag = 'scoped memory for transformer_forward.1']
    #allocation27 [shape = 'u8[512]{0}', space=vmem, size = 0x400, scoped, tag = 'input window, operand 18, single buffered']
    #allocation28 [shape = 'u8[512]{0}', space=vmem, size = 0x400, scoped, tag = 'input window, operand 19, single buffered']
    #allocation29 [shape = 's32[1]{0}', space=sflag, size = 0x4, scoped, tag = 'scoped memory for transformer_forward.1']
    #allocation30 [shape = 'u8[512]{0}', space=vmem, size = 0x400, scoped, tag = 'input window, operand 20, single buffered']
    #allocation31 [shape = 'u8[65536]{0}', space=vmem, size = 0x10000, scoped, tag = 'input window, operand 21, single buffered']
    #allocation32 [shape = 's32[1]{0}', space=sflag, size = 0x4, scoped, tag = 'scoped memory for transformer_forward.1']
    #allocation33 [shape = 'u8[1024]{0}', space=vmem, size = 0x400, scoped, tag = 'input window, operand 22, single buffered']
    #allocation34 [shape = 'u8[65536]{0}', space=vmem, size = 0x10000, scoped, tag = 'input window, operand 23, single buffered']
    #allocation35 [shape = 's32[1]{0}', space=sflag, size = 0x4, scoped, tag = 'scoped memory for transformer_forward.1']
    #allocation36 [shape = 'u8[512]{0}', space=vmem, size = 0x400, scoped, tag = 'input window, operand 24, single buffered']
    #allocation37 [shape = 'u8[512]{0}', space=vmem, size = 0x400, scoped, tag = 'input window, operand 25, single buffered']
    #allocation38 [shape = 's32[1]{0}', space=sflag, size = 0x4, scoped, tag = 'scoped memory for transformer_forward.1']
    #allocation39 [shape = 'u8[512]{0}', space=vmem, size = 0x400, scoped, tag = 'input window, operand 26, single buffered']
    #allocation40 [shape = 'u8[32768]{0}', space=vmem, size = 0x8000, scoped, tag = 'input window, operand 27, single buffered']
    #allocation41 [shape = 's32[1]{0}', space=sflag, size = 0x4, scoped, tag = 'scoped memory for transformer_forward.1']
    #allocation42 [shape = 'u8[512]{0}', space=vmem, size = 0x400, scoped, tag = 'input window, operand 28, single buffered']
    %64 = vsyncpa [#allocation3], 0
    %65 = vsyncpa [#allocation5], 0
    %66 = vsyncpa [#allocation8], 0
    %67 = vsyncpa [#allocation11], 0
    %68 = vsyncpa [#allocation14], 0
    %69 = vsyncpa [#allocation17], 0
    %70 = vsyncpa [#allocation20], 0
    %71 = vsyncpa [#allocation23], 0
    %72 = vsyncpa [#allocation26], 0
    %73 = vsyncpa [#allocation29], 0
    %74 = vsyncpa [#allocation32], 0
    %75 = vsyncpa [#allocation35], 0
    %76 = vsyncpa [#allocation38], 0
    %77 = vsyncpa [#allocation41], 0
    loop: start=0, step=1, limit=4
    $region2: #{transformer_forward.1} parent=1 // loop_pre_header
      _
    $region3: #{transformer_forward.1} parent=1 // loop_header
      %s79 = sphi 0, %s83
      %p80 = scmp.ge.s32.totalorder %s79, 4
      %s89 = sphi 0, %s91
      %s92 = sphi 0, %s89
      %s93 = sphi 0, %s92
      %s109 = sphi 0, %s93
      %s113 = sphi 0, %s113
      %s115 = sphi 0, %s113
      %s116 = sphi 0, %s115
      %s130 = sphi 0, %s116
      %s134 = sphi 0, %s134
      %s136 = sphi 0, %s134
      %s137 = sphi 0, %s136
      %s151 = sphi 0, %s137
      %s155 = sphi 0, %s155
      %s157 = sphi 0, %s155
      %s158 = sphi 0, %s157
      %s172 = sphi 0, %s158
      %s176 = sphi 0, %s176
      %s178 = sphi 0, %s176
      %s179 = sphi 0, %s178
      %s193 = sphi 0, %s179
      %s197 = sphi 0, %s197
      %s199 = sphi 0, %s197
      %s200 = sphi 0, %s199
      %s214 = sphi 0, %s200
      %s218 = sphi 0, %s218
      %s220 = sphi 0, %s218
      %s221 = sphi 0, %s220
      %s235 = sphi 0, %s221
      %s239 = sphi 0, %s239
      %s241 = sphi 0, %s239
      %s242 = sphi 0, %s241
      %s256 = sphi 0, %s242
      %s260 = sphi 0, %s260
      %s262 = sphi 0, %s260
      %s263 = sphi 0, %s262
      %s277 = sphi 0, %s263
      %s281 = sphi 0, %s281
      %s283 = sphi 0, %s281
      %s284 = sphi 0, %s283
      %s298 = sphi 0, %s284
      %s302 = sphi 0, %s302
      %s304 = sphi 0, %s302
      %s305 = sphi 0, %s304
      %s319 = sphi 0, %s305
      %s323 = sphi 0, %s323
      %s325 = sphi 0, %s323
      %s326 = sphi 0, %s325
      %s340 = sphi 0, %s326
      %s344 = sphi 0, %s344
      %s346 = sphi 0, %s344
      %s347 = sphi 0, %s346
      %s361 = sphi 0, %s347
      %s365 = sphi 0, %s365
      %s367 = sphi 0, %s365
      %s368 = sphi 0, %s367
      %s382 = sphi 0, %s368
      %s386 = sphi 0, %s386
      %s388 = sphi 0, %s386
      %s389 = sphi 0, %s388
      %s403 = sphi 0, %s389
      %s407 = sphi 0, %s407
      %s409 = sphi 0, %s407
      %s410 = sphi 0, %s409
      %s424 = sphi 0, %s410
      %s428 = sphi 0, %s428
      %s430 = sphi 0, %s428
      %s431 = sphi 0, %s430
      %s445 = sphi 0, %s431
      %s449 = sphi 0, %s449
      %s451 = sphi 0, %s449
      %s452 = sphi 0, %s451
      %s466 = sphi 0, %s452
      %s470 = sphi 0, %s470
      %s472 = sphi 0, %s470
      %s473 = sphi 0, %s472
      %s487 = sphi 0, %s473
      %s491 = sphi 0, %s491
      %s493 = sphi 0, %s491
      %s494 = sphi 0, %s493
      %s508 = sphi 0, %s494
      %s512 = sphi 0, %s512
      %s514 = sphi 0, %s512
      %s515 = sphi 0, %s514
      %s529 = sphi 0, %s515
      %s533 = sphi 0, %s533
      %s535 = sphi 0, %s533
      %s536 = sphi 0, %s535
      %s550 = sphi 0, %s536
      %s554 = sphi 0, %s554
      %s556 = sphi 0, %s554
      %s557 = sphi 0, %s556
      %s571 = sphi 0, %s557
      %s575 = sphi 0, %s575
      %s577 = sphi 0, %s575
      %s578 = sphi 0, %s577
      %s592 = sphi 0, %s578
      %s596 = sphi 0, %s596
      %s598 = sphi 0, %s596
      %s599 = sphi 0, %s598
      %s613 = sphi 0, %s599
      %s617 = sphi 0, %s617
      %s619 = sphi 0, %s617
      %s620 = sphi 0, %s619
      %s634 = sphi 0, %s620
      %s638 = sphi 0, %s638
      %s640 = sphi 0, %s638
      %s641 = sphi 0, %s640
      %s655 = sphi 0, %s641
      %s659 = sphi 0, %s659
      %s661 = sphi 0, %s659
      %s662 = sphi 0, %s661
      %s676 = sphi 0, %s662
      %s680 = sphi 0, %s680
      %s682 = sphi 0, %s680
      %s683 = sphi 0, %s682
      %s697 = sphi 0, %s683
      %s703 = sphi 0, %s705
      %s706 = sphi 0, %s703
      %s707 = sphi 0, %s706
      %s723 = sphi 0, %s707
    $region4: #{transformer_forward.1} parent=1 // loop_header_branch
      %82 = sbr.rel (%p80) target = $region8
    $region5: #{transformer_forward.1} parent=1 // loop_body
      %s84 = ssub.s32 %s79, 1
      %s85 = ssub.s32 %s79, 2
      %s86 = sadd.s32 %s79, 1
      %s87 = ssub.s32 %s79, %s86
      %p88 = scmp.eq.s32.totalorder %s87, 0
      %s90 = sadd.s32 %s89, 1
      %s91 = scalar_select %p88, %s89, %s90
      %p94 = pneg %p88
      %p95 = scmp.eq.s32.totalorder %s79, 1
      %p96 = por %p94, %p95
      %p97 = scmp.ne.s32.totalorder %s89, %s92
      %p98 = scmp.eq.s32.totalorder %s79, 0
      %p99 = por %p97, %p98
      %p100 = scmp.ne.s32.totalorder %s89, %s92
      %p101 = scmp.eq.s32.totalorder %s84, 1
      %p102 = por %p100, %p101
      %p103 = scmp.ne.s32.totalorder %s92, %s93
      %p104 = scmp.eq.s32.totalorder %s84, 0
      %p105 = por %p103, %p104
      %p106 = scmp.ne.s32.totalorder %s92, %s93
      %p107 = scmp.eq.s32.totalorder %s85, 1
      %p108 = por %p106, %p107
      %p110 = scmp.ne.s32.totalorder %s93, %s109
      %p111 = scmp.eq.s32.totalorder %s85, 0
      %p112 = por %p110, %p111
      %s114 = sadd.s32 %s113, 1
      %p117 = scmp.eq.s32.totalorder %s79, 1
      %p118 = scmp.ne.s32.totalorder %s113, %s115
      %p119 = scmp.eq.s32.totalorder %s79, 0
      %p120 = por %p118, %p119
      %p121 = scmp.ne.s32.totalorder %s113, %s115
      %p122 = scmp.eq.s32.totalorder %s84, 1
      %p123 = por %p121, %p122
      %p124 = scmp.ne.s32.totalorder %s115, %s116
      %p125 = scmp.eq.s32.totalorder %s84, 0
      %p126 = por %p124, %p125
      %p127 = scmp.ne.s32.totalorder %s115, %s116
      %p128 = scmp.eq.s32.totalorder %s85, 1
      %p129 = por %p127, %p128
      %p131 = scmp.ne.s32.totalorder %s116, %s130
      %p132 = scmp.eq.s32.totalorder %s85, 0
      %p133 = por %p131, %p132
      %s135 = sadd.s32 %s134, 1
      %p138 = scmp.eq.s32.totalorder %s79, 1
      %p139 = scmp.ne.s32.totalorder %s134, %s136
      %p140 = scmp.eq.s32.totalorder %s79, 0
      %p141 = por %p139, %p140
      %p142 = scmp.ne.s32.totalorder %s134, %s136
      %p143 = scmp.eq.s32.totalorder %s84, 1
      %p144 = por %p142, %p143
      %p145 = scmp.ne.s32.totalorder %s136, %s137
      %p146 = scmp.eq.s32.totalorder %s84, 0
      %p147 = por %p145, %p146
      %p148 = scmp.ne.s32.totalorder %s136, %s137
      %p149 = scmp.eq.s32.totalorder %s85, 1
      %p150 = por %p148, %p149
      %p152 = scmp.ne.s32.totalorder %s137, %s151
      %p153 = scmp.eq.s32.totalorder %s85, 0
      %p154 = por %p152, %p153
      %s156 = sadd.s32 %s155, 1
      %p159 = scmp.eq.s32.totalorder %s79, 1
      %p160 = scmp.ne.s32.totalorder %s155, %s157
      %p161 = scmp.eq.s32.totalorder %s79, 0
      %p162 = por %p160, %p161
      %p163 = scmp.ne.s32.totalorder %s155, %s157
      %p164 = scmp.eq.s32.totalorder %s84, 1
      %p165 = por %p163, %p164
      %p166 = scmp.ne.s32.totalorder %s157, %s158
      %p167 = scmp.eq.s32.totalorder %s84, 0
      %p168 = por %p166, %p167
      %p169 = scmp.ne.s32.totalorder %s157, %s158
      %p170 = scmp.eq.s32.totalorder %s85, 1
      %p171 = por %p169, %p170
      %p173 = scmp.ne.s32.totalorder %s158, %s172
      %p174 = scmp.eq.s32.totalorder %s85, 0
      %p175 = por %p173, %p174
      %s177 = sadd.s32 %s176, 1
      %p180 = scmp.eq.s32.totalorder %s79, 1
      %p181 = scmp.ne.s32.totalorder %s176, %s178
      %p182 = scmp.eq.s32.totalorder %s79, 0
      %p183 = por %p181, %p182
      %p184 = scmp.ne.s32.totalorder %s176, %s178
      %p185 = scmp.eq.s32.totalorder %s84, 1
      %p186 = por %p184, %p185
      %p187 = scmp.ne.s32.totalorder %s178, %s179
      %p188 = scmp.eq.s32.totalorder %s84, 0
      %p189 = por %p187, %p188
      %p190 = scmp.ne.s32.totalorder %s178, %s179
      %p191 = scmp.eq.s32.totalorder %s85, 1
      %p192 = por %p190, %p191
      %p194 = scmp.ne.s32.totalorder %s179, %s193
      %p195 = scmp.eq.s32.totalorder %s85, 0
      %p196 = por %p194, %p195
      %s198 = sadd.s32 %s197, 1
      %p201 = scmp.eq.s32.totalorder %s79, 1
      %p202 = scmp.ne.s32.totalorder %s197, %s199
      %p203 = scmp.eq.s32.totalorder %s79, 0
      %p204 = por %p202, %p203
      %p205 = scmp.ne.s32.totalorder %s197, %s199
      %p206 = scmp.eq.s32.totalorder %s84, 1
      %p207 = por %p205, %p206
      %p208 = scmp.ne.s32.totalorder %s199, %s200
      %p209 = scmp.eq.s32.totalorder %s84, 0
      %p210 = por %p208, %p209
      %p211 = scmp.ne.s32.totalorder %s199, %s200
      %p212 = scmp.eq.s32.totalorder %s85, 1
      %p213 = por %p211, %p212
      %p215 = scmp.ne.s32.totalorder %s200, %s214
      %p216 = scmp.eq.s32.totalorder %s85, 0
      %p217 = por %p215, %p216
      %s219 = sadd.s32 %s218, 1
      %p222 = scmp.eq.s32.totalorder %s79, 1
      %p223 = scmp.ne.s32.totalorder %s218, %s220
      %p224 = scmp.eq.s32.totalorder %s79, 0
      %p225 = por %p223, %p224
      %p226 = scmp.ne.s32.totalorder %s218, %s220
      %p227 = scmp.eq.s32.totalorder %s84, 1
      %p228 = por %p226, %p227
      %p229 = scmp.ne.s32.totalorder %s220, %s221
      %p230 = scmp.eq.s32.totalorder %s84, 0
      %p231 = por %p229, %p230
      %p232 = scmp.ne.s32.totalorder %s220, %s221
      %p233 = scmp.eq.s32.totalorder %s85, 1
      %p234 = por %p232, %p233
      %p236 = scmp.ne.s32.totalorder %s221, %s235
      %p237 = scmp.eq.s32.totalorder %s85, 0
      %p238 = por %p236, %p237
      %s240 = sadd.s32 %s239, 1
      %p243 = scmp.eq.s32.totalorder %s79, 1
      %p244 = scmp.ne.s32.totalorder %s239, %s241
      %p245 = scmp.eq.s32.totalorder %s79, 0
      %p246 = por %p244, %p245
      %p247 = scmp.ne.s32.totalorder %s239, %s241
      %p248 = scmp.eq.s32.totalorder %s84, 1
      %p249 = por %p247, %p248
      %p250 = scmp.ne.s32.totalorder %s241, %s242
      %p251 = scmp.eq.s32.totalorder %s84, 0
      %p252 = por %p250, %p251
      %p253 = scmp.ne.s32.totalorder %s241, %s242
      %p254 = scmp.eq.s32.totalorder %s85, 1
      %p255 = por %p253, %p254
      %p257 = scmp.ne.s32.totalorder %s242, %s256
      %p258 = scmp.eq.s32.totalorder %s85, 0
      %p259 = por %p257, %p258
      %s261 = sadd.s32 %s260, 1
      %p264 = scmp.eq.s32.totalorder %s79, 1
      %p265 = scmp.ne.s32.totalorder %s260, %s262
      %p266 = scmp.eq.s32.totalorder %s79, 0
      %p267 = por %p265, %p266
      %p268 = scmp.ne.s32.totalorder %s260, %s262
      %p269 = scmp.eq.s32.totalorder %s84, 1
      %p270 = por %p268, %p269
      %p271 = scmp.ne.s32.totalorder %s262, %s263
      %p272 = scmp.eq.s32.totalorder %s84, 0
      %p273 = por %p271, %p272
      %p274 = scmp.ne.s32.totalorder %s262, %s263
      %p275 = scmp.eq.s32.totalorder %s85, 1
      %p276 = por %p274, %p275
      %p278 = scmp.ne.s32.totalorder %s263, %s277
      %p279 = scmp.eq.s32.totalorder %s85, 0
      %p280 = por %p278, %p279
      %s282 = sadd.s32 %s281, 1
      %p285 = scmp.eq.s32.totalorder %s79, 1
      %p286 = scmp.ne.s32.totalorder %s281, %s283
      %p287 = scmp.eq.s32.totalorder %s79, 0
      %p288 = por %p286, %p287
      %p289 = scmp.ne.s32.totalorder %s281, %s283
      %p290 = scmp.eq.s32.totalorder %s84, 1
      %p291 = por %p289, %p290
      %p292 = scmp.ne.s32.totalorder %s283, %s284
      %p293 = scmp.eq.s32.totalorder %s84, 0
      %p294 = por %p292, %p293
      %p295 = scmp.ne.s32.totalorder %s283, %s284
      %p296 = scmp.eq.s32.totalorder %s85, 1
      %p297 = por %p295, %p296
      %p299 = scmp.ne.s32.totalorder %s284, %s298
      %p300 = scmp.eq.s32.totalorder %s85, 0
      %p301 = por %p299, %p300
      %s303 = sadd.s32 %s302, 1
      %p306 = scmp.eq.s32.totalorder %s79, 1
      %p307 = scmp.ne.s32.totalorder %s302, %s304
      %p308 = scmp.eq.s32.totalorder %s79, 0
      %p309 = por %p307, %p308
      %p310 = scmp.ne.s32.totalorder %s302, %s304
      %p311 = scmp.eq.s32.totalorder %s84, 1
      %p312 = por %p310, %p311
      %p313 = scmp.ne.s32.totalorder %s304, %s305
      %p314 = scmp.eq.s32.totalorder %s84, 0
      %p315 = por %p313, %p314
      %p316 = scmp.ne.s32.totalorder %s304, %s305
      %p317 = scmp.eq.s32.totalorder %s85, 1
      %p318 = por %p316, %p317
      %p320 = scmp.ne.s32.totalorder %s305, %s319
      %p321 = scmp.eq.s32.totalorder %s85, 0
      %p322 = por %p320, %p321
      %s324 = sadd.s32 %s323, 1
      %p327 = scmp.eq.s32.totalorder %s79, 1
      %p328 = scmp.ne.s32.totalorder %s323, %s325
      %p329 = scmp.eq.s32.totalorder %s79, 0
      %p330 = por %p328, %p329
      %p331 = scmp.ne.s32.totalorder %s323, %s325
      %p332 = scmp.eq.s32.totalorder %s84, 1
      %p333 = por %p331, %p332
      %p334 = scmp.ne.s32.totalorder %s325, %s326
      %p335 = scmp.eq.s32.totalorder %s84, 0
      %p336 = por %p334, %p335
      %p337 = scmp.ne.s32.totalorder %s325, %s326
      %p338 = scmp.eq.s32.totalorder %s85, 1
      %p339 = por %p337, %p338
      %p341 = scmp.ne.s32.totalorder %s326, %s340
      %p342 = scmp.eq.s32.totalorder %s85, 0
      %p343 = por %p341, %p342
      %s345 = sadd.s32 %s344, 1
      %p348 = scmp.eq.s32.totalorder %s79, 1
      %p349 = scmp.ne.s32.totalorder %s344, %s346
      %p350 = scmp.eq.s32.totalorder %s79, 0
      %p351 = por %p349, %p350
      %p352 = scmp.ne.s32.totalorder %s344, %s346
      %p353 = scmp.eq.s32.totalorder %s84, 1
      %p354 = por %p352, %p353
      %p355 = scmp.ne.s32.totalorder %s346, %s347
      %p356 = scmp.eq.s32.totalorder %s84, 0
      %p357 = por %p355, %p356
      %p358 = scmp.ne.s32.totalorder %s346, %s347
      %p359 = scmp.eq.s32.totalorder %s85, 1
      %p360 = por %p358, %p359
      %p362 = scmp.ne.s32.totalorder %s347, %s361
      %p363 = scmp.eq.s32.totalorder %s85, 0
      %p364 = por %p362, %p363
      %s366 = sadd.s32 %s365, 1
      %p369 = scmp.eq.s32.totalorder %s79, 1
      %p370 = scmp.ne.s32.totalorder %s365, %s367
      %p371 = scmp.eq.s32.totalorder %s79, 0
      %p372 = por %p370, %p371
      %p373 = scmp.ne.s32.totalorder %s365, %s367
      %p374 = scmp.eq.s32.totalorder %s84, 1
      %p375 = por %p373, %p374
      %p376 = scmp.ne.s32.totalorder %s367, %s368
      %p377 = scmp.eq.s32.totalorder %s84, 0
      %p378 = por %p376, %p377
      %p379 = scmp.ne.s32.totalorder %s367, %s368
      %p380 = scmp.eq.s32.totalorder %s85, 1
      %p381 = por %p379, %p380
      %p383 = scmp.ne.s32.totalorder %s368, %s382
      %p384 = scmp.eq.s32.totalorder %s85, 0
      %p385 = por %p383, %p384
      %s387 = sadd.s32 %s386, 1
      %p390 = scmp.eq.s32.totalorder %s79, 1
      %p391 = scmp.ne.s32.totalorder %s386, %s388
      %p392 = scmp.eq.s32.totalorder %s79, 0
      %p393 = por %p391, %p392
      %p394 = scmp.ne.s32.totalorder %s386, %s388
      %p395 = scmp.eq.s32.totalorder %s84, 1
      %p396 = por %p394, %p395
      %p397 = scmp.ne.s32.totalorder %s388, %s389
      %p398 = scmp.eq.s32.totalorder %s84, 0
      %p399 = por %p397, %p398
      %p400 = scmp.ne.s32.totalorder %s388, %s389
      %p401 = scmp.eq.s32.totalorder %s85, 1
      %p402 = por %p400, %p401
      %p404 = scmp.ne.s32.totalorder %s389, %s403
      %p405 = scmp.eq.s32.totalorder %s85, 0
      %p406 = por %p404, %p405
      %s408 = sadd.s32 %s407, 1
      %p411 = scmp.eq.s32.totalorder %s79, 1
      %p412 = scmp.ne.s32.totalorder %s407, %s409
      %p413 = scmp.eq.s32.totalorder %s79, 0
      %p414 = por %p412, %p413
      %p415 = scmp.ne.s32.totalorder %s407, %s409
      %p416 = scmp.eq.s32.totalorder %s84, 1
      %p417 = por %p415, %p416
      %p418 = scmp.ne.s32.totalorder %s409, %s410
      %p419 = scmp.eq.s32.totalorder %s84, 0
      %p420 = por %p418, %p419
      %p421 = scmp.ne.s32.totalorder %s409, %s410
      %p422 = scmp.eq.s32.totalorder %s85, 1
      %p423 = por %p421, %p422
      %p425 = scmp.ne.s32.totalorder %s410, %s424
      %p426 = scmp.eq.s32.totalorder %s85, 0
      %p427 = por %p425, %p426
      %s429 = sadd.s32 %s428, 1
      %p432 = scmp.eq.s32.totalorder %s79, 1
      %p433 = scmp.ne.s32.totalorder %s428, %s430
      %p434 = scmp.eq.s32.totalorder %s79, 0
      %p435 = por %p433, %p434
      %p436 = scmp.ne.s32.totalorder %s428, %s430
      %p437 = scmp.eq.s32.totalorder %s84, 1
      %p438 = por %p436, %p437
      %p439 = scmp.ne.s32.totalorder %s430, %s431
      %p440 = scmp.eq.s32.totalorder %s84, 0
      %p441 = por %p439, %p440
      %p442 = scmp.ne.s32.totalorder %s430, %s431
      %p443 = scmp.eq.s32.totalorder %s85, 1
      %p444 = por %p442, %p443
      %p446 = scmp.ne.s32.totalorder %s431, %s445
      %p447 = scmp.eq.s32.totalorder %s85, 0
      %p448 = por %p446, %p447
      %s450 = sadd.s32 %s449, 1
      %p453 = scmp.eq.s32.totalorder %s79, 1
      %p454 = scmp.ne.s32.totalorder %s449, %s451
      %p455 = scmp.eq.s32.totalorder %s79, 0
      %p456 = por %p454, %p455
      %p457 = scmp.ne.s32.totalorder %s449, %s451
      %p458 = scmp.eq.s32.totalorder %s84, 1
      %p459 = por %p457, %p458
      %p460 = scmp.ne.s32.totalorder %s451, %s452
      %p461 = scmp.eq.s32.totalorder %s84, 0
      %p462 = por %p460, %p461
      %p463 = scmp.ne.s32.totalorder %s451, %s452
      %p464 = scmp.eq.s32.totalorder %s85, 1
      %p465 = por %p463, %p464
      %p467 = scmp.ne.s32.totalorder %s452, %s466
      %p468 = scmp.eq.s32.totalorder %s85, 0
      %p469 = por %p467, %p468
      %s471 = sadd.s32 %s470, 1
      %p474 = scmp.eq.s32.totalorder %s79, 1
      %p475 = scmp.ne.s32.totalorder %s470, %s472
      %p476 = scmp.eq.s32.totalorder %s79, 0
      %p477 = por %p475, %p476
      %p478 = scmp.ne.s32.totalorder %s470, %s472
      %p479 = scmp.eq.s32.totalorder %s84, 1
      %p480 = por %p478, %p479
      %p481 = scmp.ne.s32.totalorder %s472, %s473
      %p482 = scmp.eq.s32.totalorder %s84, 0
      %p483 = por %p481, %p482
      %p484 = scmp.ne.s32.totalorder %s472, %s473
      %p485 = scmp.eq.s32.totalorder %s85, 1
      %p486 = por %p484, %p485
      %p488 = scmp.ne.s32.totalorder %s473, %s487
      %p489 = scmp.eq.s32.totalorder %s85, 0
      %p490 = por %p488, %p489
      %s492 = sadd.s32 %s491, 1
      %p495 = scmp.eq.s32.totalorder %s79, 1
      %p496 = scmp.ne.s32.totalorder %s491, %s493
      %p497 = scmp.eq.s32.totalorder %s79, 0
      %p498 = por %p496, %p497
      %p499 = scmp.ne.s32.totalorder %s491, %s493
      %p500 = scmp.eq.s32.totalorder %s84, 1
      %p501 = por %p499, %p500
      %p502 = scmp.ne.s32.totalorder %s493, %s494
      %p503 = scmp.eq.s32.totalorder %s84, 0
      %p504 = por %p502, %p503
      %p505 = scmp.ne.s32.totalorder %s493, %s494
      %p506 = scmp.eq.s32.totalorder %s85, 1
      %p507 = por %p505, %p506
      %p509 = scmp.ne.s32.totalorder %s494, %s508
      %p510 = scmp.eq.s32.totalorder %s85, 0
      %p511 = por %p509, %p510
      %s513 = sadd.s32 %s512, 1
      %p516 = scmp.eq.s32.totalorder %s79, 1
      %p517 = scmp.ne.s32.totalorder %s512, %s514
      %p518 = scmp.eq.s32.totalorder %s79, 0
      %p519 = por %p517, %p518
      %p520 = scmp.ne.s32.totalorder %s512, %s514
      %p521 = scmp.eq.s32.totalorder %s84, 1
      %p522 = por %p520, %p521
      %p523 = scmp.ne.s32.totalorder %s514, %s515
      %p524 = scmp.eq.s32.totalorder %s84, 0
      %p525 = por %p523, %p524
      %p526 = scmp.ne.s32.totalorder %s514, %s515
      %p527 = scmp.eq.s32.totalorder %s85, 1
      %p528 = por %p526, %p527
      %p530 = scmp.ne.s32.totalorder %s515, %s529
      %p531 = scmp.eq.s32.totalorder %s85, 0
      %p532 = por %p530, %p531
      %s534 = sadd.s32 %s533, 1
      %p537 = scmp.eq.s32.totalorder %s79, 1
      %p538 = scmp.ne.s32.totalorder %s533, %s535
      %p539 = scmp.eq.s32.totalorder %s79, 0
      %p540 = por %p538, %p539
      %p541 = scmp.ne.s32.totalorder %s533, %s535
      %p542 = scmp.eq.s32.totalorder %s84, 1
      %p543 = por %p541, %p542
      %p544 = scmp.ne.s32.totalorder %s535, %s536
      %p545 = scmp.eq.s32.totalorder %s84, 0
      %p546 = por %p544, %p545
      %p547 = scmp.ne.s32.totalorder %s535, %s536
      %p548 = scmp.eq.s32.totalorder %s85, 1
      %p549 = por %p547, %p548
      %p551 = scmp.ne.s32.totalorder %s536, %s550
      %p552 = scmp.eq.s32.totalorder %s85, 0
      %p553 = por %p551, %p552
      %s555 = sadd.s32 %s554, 1
      %p558 = scmp.eq.s32.totalorder %s79, 1
      %p559 = scmp.ne.s32.totalorder %s554, %s556
      %p560 = scmp.eq.s32.totalorder %s79, 0
      %p561 = por %p559, %p560
      %p562 = scmp.ne.s32.totalorder %s554, %s556
      %p563 = scmp.eq.s32.totalorder %s84, 1
      %p564 = por %p562, %p563
      %p565 = scmp.ne.s32.totalorder %s556, %s557
      %p566 = scmp.eq.s32.totalorder %s84, 0
      %p567 = por %p565, %p566
      %p568 = scmp.ne.s32.totalorder %s556, %s557
      %p569 = scmp.eq.s32.totalorder %s85, 1
      %p570 = por %p568, %p569
      %p572 = scmp.ne.s32.totalorder %s557, %s571
      %p573 = scmp.eq.s32.totalorder %s85, 0
      %p574 = por %p572, %p573
      %s576 = sadd.s32 %s575, 1
      %p579 = scmp.eq.s32.totalorder %s79, 1
      %p580 = scmp.ne.s32.totalorder %s575, %s577
      %p581 = scmp.eq.s32.totalorder %s79, 0
      %p582 = por %p580, %p581
      %p583 = scmp.ne.s32.totalorder %s575, %s577
      %p584 = scmp.eq.s32.totalorder %s84, 1
      %p585 = por %p583, %p584
      %p586 = scmp.ne.s32.totalorder %s577, %s578
      %p587 = scmp.eq.s32.totalorder %s84, 0
      %p588 = por %p586, %p587
      %p589 = scmp.ne.s32.totalorder %s577, %s578
      %p590 = scmp.eq.s32.totalorder %s85, 1
      %p591 = por %p589, %p590
      %p593 = scmp.ne.s32.totalorder %s578, %s592
      %p594 = scmp.eq.s32.totalorder %s85, 0
      %p595 = por %p593, %p594
      %s597 = sadd.s32 %s596, 1
      %p600 = scmp.eq.s32.totalorder %s79, 1
      %p601 = scmp.ne.s32.totalorder %s596, %s598
      %p602 = scmp.eq.s32.totalorder %s79, 0
      %p603 = por %p601, %p602
      %p604 = scmp.ne.s32.totalorder %s596, %s598
      %p605 = scmp.eq.s32.totalorder %s84, 1
      %p606 = por %p604, %p605
      %p607 = scmp.ne.s32.totalorder %s598, %s599
      %p608 = scmp.eq.s32.totalorder %s84, 0
      %p609 = por %p607, %p608
      %p610 = scmp.ne.s32.totalorder %s598, %s599
      %p611 = scmp.eq.s32.totalorder %s85, 1
      %p612 = por %p610, %p611
      %p614 = scmp.ne.s32.totalorder %s599, %s613
      %p615 = scmp.eq.s32.totalorder %s85, 0
      %p616 = por %p614, %p615
      %s618 = sadd.s32 %s617, 1
      %p621 = scmp.eq.s32.totalorder %s79, 1
      %p622 = scmp.ne.s32.totalorder %s617, %s619
      %p623 = scmp.eq.s32.totalorder %s79, 0
      %p624 = por %p622, %p623
      %p625 = scmp.ne.s32.totalorder %s617, %s619
      %p626 = scmp.eq.s32.totalorder %s84, 1
      %p627 = por %p625, %p626
      %p628 = scmp.ne.s32.totalorder %s619, %s620
      %p629 = scmp.eq.s32.totalorder %s84, 0
      %p630 = por %p628, %p629
      %p631 = scmp.ne.s32.totalorder %s619, %s620
      %p632 = scmp.eq.s32.totalorder %s85, 1
      %p633 = por %p631, %p632
      %p635 = scmp.ne.s32.totalorder %s620, %s634
      %p636 = scmp.eq.s32.totalorder %s85, 0
      %p637 = por %p635, %p636
      %s639 = sadd.s32 %s638, 1
      %p642 = scmp.eq.s32.totalorder %s79, 1
      %p643 = scmp.ne.s32.totalorder %s638, %s640
      %p644 = scmp.eq.s32.totalorder %s79, 0
      %p645 = por %p643, %p644
      %p646 = scmp.ne.s32.totalorder %s638, %s640
      %p647 = scmp.eq.s32.totalorder %s84, 1
      %p648 = por %p646, %p647
      %p649 = scmp.ne.s32.totalorder %s640, %s641
      %p650 = scmp.eq.s32.totalorder %s84, 0
      %p651 = por %p649, %p650
      %p652 = scmp.ne.s32.totalorder %s640, %s641
      %p653 = scmp.eq.s32.totalorder %s85, 1
      %p654 = por %p652, %p653
      %p656 = scmp.ne.s32.totalorder %s641, %s655
      %p657 = scmp.eq.s32.totalorder %s85, 0
      %p658 = por %p656, %p657
      %s660 = sadd.s32 %s659, 1
      %p663 = scmp.eq.s32.totalorder %s79, 1
      %p664 = scmp.ne.s32.totalorder %s659, %s661
      %p665 = scmp.eq.s32.totalorder %s79, 0
      %p666 = por %p664, %p665
      %p667 = scmp.ne.s32.totalorder %s659, %s661
      %p668 = scmp.eq.s32.totalorder %s84, 1
      %p669 = por %p667, %p668
      %p670 = scmp.ne.s32.totalorder %s661, %s662
      %p671 = scmp.eq.s32.totalorder %s84, 0
      %p672 = por %p670, %p671
      %p673 = scmp.ne.s32.totalorder %s661, %s662
      %p674 = scmp.eq.s32.totalorder %s85, 1
      %p675 = por %p673, %p674
      %p677 = scmp.ne.s32.totalorder %s662, %s676
      %p678 = scmp.eq.s32.totalorder %s85, 0
      %p679 = por %p677, %p678
      %s681 = sadd.s32 %s680, 1
      %p684 = scmp.eq.s32.totalorder %s79, 1
      %p685 = scmp.ne.s32.totalorder %s680, %s682
      %p686 = scmp.eq.s32.totalorder %s79, 0
      %p687 = por %p685, %p686
      %p688 = scmp.ne.s32.totalorder %s680, %s682
      %p689 = scmp.eq.s32.totalorder %s84, 1
      %p690 = por %p688, %p689
      %p691 = scmp.ne.s32.totalorder %s682, %s683
      %p692 = scmp.eq.s32.totalorder %s84, 0
      %p693 = por %p691, %p692
      %p694 = scmp.ne.s32.totalorder %s682, %s683
      %p695 = scmp.eq.s32.totalorder %s85, 1
      %p696 = por %p694, %p695
      %p698 = scmp.ne.s32.totalorder %s683, %s697
      %p699 = scmp.eq.s32.totalorder %s85, 0
      %p700 = por %p698, %p699
      %s701 = ssub.s32 %s79, %s86
      %p702 = scmp.eq.s32.totalorder %s701, 0
      %s704 = sadd.s32 %s703, 1
      %s705 = scalar_select %p702, %s703, %s704
      %p708 = pneg %p702
      %p709 = scmp.eq.s32.totalorder %s79, 1
      %p710 = por %p708, %p709
      %p711 = scmp.ne.s32.totalorder %s703, %s706
      %p712 = scmp.eq.s32.totalorder %s79, 0
      %p713 = por %p711, %p712
      %p714 = scmp.ne.s32.totalorder %s703, %s706
      %p715 = scmp.eq.s32.totalorder %s84, 1
      %p716 = por %p714, %p715
      %p717 = scmp.ne.s32.totalorder %s706, %s707
      %p718 = scmp.eq.s32.totalorder %s84, 0
      %p719 = por %p717, %p718
      %p720 = scmp.ne.s32.totalorder %s706, %s707
      %p721 = scmp.eq.s32.totalorder %s85, 1
      %p722 = por %p720, %p721
      %p724 = scmp.ne.s32.totalorder %s707, %s723
      %p725 = scmp.eq.s32.totalorder %s85, 0
      %p726 = por %p724, %p725
      %p727 = scmp.le.s32.totalorder 1, %s79
      %p728 = scmp.lt.s32.totalorder %s79, 3
      %p729 = pnand %p727, %p728
      %p730 = pneg %p729
      // Predicated region
      $region9: #{transformer_forward.1} parent=5 // pred_check
        _
      $region10: #{transformer_forward.1} parent=5 // pred_check_branch
        %732 = sbr.rel (%p729) target = $region12
      $region11: #{transformer_forward.1} parent=5 // pred_region
        %s733 = ssub.s32 %s79, 1
        // Predicated region
        $region13: #{transformer_forward.1} parent=11 // pred_check
          %p734 = pneg %p126
        $region14: #{transformer_forward.1} parent=11 // pred_check_branch
          %736 = sbr.rel (%p734) target = $region16
        $region15: #{transformer_forward.1} parent=11 // pred_region
          _
        $region16: #{transformer_forward.1} parent=11 // pred_fallthru
          _
        // Predicated region
        $region17: #{transformer_forward.1} parent=11 // pred_check
          %p737 = pneg %p147
        $region18: #{transformer_forward.1} parent=11 // pred_check_branch
          %739 = sbr.rel (%p737) target = $region20
        $region19: #{transformer_forward.1} parent=11 // pred_region
          %s741 = ssub.s32 128, 128
          %742 = vsyncadd [#allocation3], %s741
          %s744 = sshll.u32 [#allocation2], 4
          %s745 = int_to_ptr.vmem [resolvable:$true] %s744
          %747 = dma.hbm_to_vmem [thread:$0]  %s5, 128, %s745, [#allocation3]
        $region20: #{transformer_forward.1} parent=11 // pred_fallthru
          _
        // Predicated region
        $region21: #{transformer_forward.1} parent=11 // pred_check
          %p748 = pneg %p168
        $region22: #{transformer_forward.1} parent=11 // pred_check_branch
          %750 = sbr.rel (%p748) target = $region24
        $region23: #{transformer_forward.1} parent=11 // pred_region
          %s752 = ssub.s32 6144, 6144
          %753 = vsyncadd [#allocation5], %s752
          %s754 = sshll.u32 [#allocation4], 4
          %s755 = int_to_ptr.vmem [resolvable:$true] %s754
          %760 = dma.hbm_to_vmem [thread:$0]  %s7, 6144, %s755, [#allocation5], 192, 192, 12
        $region24: #{transformer_forward.1} parent=11 // pred_fallthru
          _
        // Predicated region
        $region25: #{transformer_forward.1} parent=11 // pred_check
          %p761 = pneg %p189
        $region26: #{transformer_forward.1} parent=11 // pred_check_branch
          %763 = sbr.rel (%p761) target = $region28
        $region27: #{transformer_forward.1} parent=11 // pred_region
          %s765 = ssub.s32 96, 96
          %766 = vsyncadd [#allocation5], %s765
          %s767 = sshll.u32 [#allocation6], 4
          %s768 = int_to_ptr.vmem [resolvable:$true] %s767
          %773 = dma.hbm_to_vmem [thread:$0]  %s9, 96, %s768, [#allocation5], 48, 48, 3
        $region28: #{transformer_forward.1} parent=11 // pred_fallthru
          _
        // Predicated region
        $region29: #{transformer_forward.1} parent=11 // pred_check
          %p774 = pneg %p210
        $region30: #{transformer_forward.1} parent=11 // pred_check_branch
          %776 = sbr.rel (%p774) target = $region32
        $region31: #{transformer_forward.1} parent=11 // pred_region
          %s778 = ssub.s32 2048, 2048
          %779 = vsyncadd [#allocation8], %s778
          %s780 = sshll.u32 [#allocation7], 4
          %s781 = int_to_ptr.vmem [resolvable:$true] %s780
          %786 = dma.hbm_to_vmem [thread:$0]  %s11, 2048, %s781, [#allocation8], 64, 64, 4
        $region32: #{transformer_forward.1} parent=11 // pred_fallthru
          _
        // Predicated region
        $region33: #{transformer_forward.1} parent=11 // pred_check
          %p787 = pneg %p231
        $region34: #{transformer_forward.1} parent=11 // pred_check_branch
          %789 = sbr.rel (%p787) target = $region36
        $region35: #{transformer_forward.1} parent=11 // pred_region
          %s791 = ssub.s32 16, 16
          %792 = vsyncadd [#allocation8], %s791
          %s794 = sshll.u32 [#allocation9], 4
          %s795 = int_to_ptr.vmem [resolvable:$true] %s794
          %797 = dma.hbm_to_vmem [thread:$0]  %s13, 16, %s795, [#allocation8]
        $region36: #{transformer_forward.1} parent=11 // pred_fallthru
          _
        // Predicated region
        $region37: #{transformer_forward.1} parent=11 // pred_check
          %p798 = pneg %p252
        $region38: #{transformer_forward.1} parent=11 // pred_check_branch
          %800 = sbr.rel (%p798) target = $region40
        $region39: #{transformer_forward.1} parent=11 // pred_region
          %s802 = ssub.s32 16, 16
          %803 = vsyncadd [#allocation11], %s802
          %s805 = sshll.u32 [#allocation10], 4
          %s806 = int_to_ptr.vmem [resolvable:$true] %s805
          %808 = dma.hbm_to_vmem [thread:$0]  %s15, 16, %s806, [#allocation11]
        $region40: #{transformer_forward.1} parent=11 // pred_fallthru
          _
        // Predicated region
        $region41: #{transformer_forward.1} parent=11 // pred_check
          %p809 = pneg %p273
        $region42: #{transformer_forward.1} parent=11 // pred_check_branch
          %811 = sbr.rel (%p809) target = $region44
        $region43: #{transformer_forward.1} parent=11 // pred_region
          %s813 = ssub.s32 16, 16
          %814 = vsyncadd [#allocation11], %s813
          %s816 = sshll.u32 [#allocation12], 4
          %s817 = int_to_ptr.vmem [resolvable:$true] %s816
          %819 = dma.hbm_to_vmem [thread:$0]  %s17, 16, %s817, [#allocation11]
        $region44: #{transformer_forward.1} parent=11 // pred_fallthru
          _
        // Predicated region
        $region45: #{transformer_forward.1} parent=11 // pred_check
          %p820 = pneg %p294
        $region46: #{transformer_forward.1} parent=11 // pred_check_branch
          %822 = sbr.rel (%p820) target = $region48
        $region47: #{transformer_forward.1} parent=11 // pred_region
          %s824 = ssub.s32 2048, 2048
          %825 = vsyncadd [#allocation14], %s824
          %s826 = sshll.u32 [#allocation13], 4
          %s827 = int_to_ptr.vmem [resolvable:$true] %s826
          %832 = dma.hbm_to_vmem [thread:$0]  %s19, 2048, %s827, [#allocation14], 128, 128, 8
        $region48: #{transformer_forward.1} parent=11 // pred_fallthru
          _
        // Predicated region
        $region49: #{transformer_forward.1} parent=11 // pred_check
          %p833 = pneg %p315
        $region50: #{transformer_forward.1} parent=11 // pred_check_branch
          %835 = sbr.rel (%p833) target = $region52
        $region51: #{transformer_forward.1} parent=11 // pred_region
          %s837 = ssub.s32 32, 32
          %838 = vsyncadd [#allocation14], %s837
          %s840 = sshll.u32 [#allocation15], 4
          %s841 = int_to_ptr.vmem [resolvable:$true] %s840
          %843 = dma.hbm_to_vmem [thread:$0]  %s21, 32, %s841, [#allocation14]
        $region52: #{transformer_forward.1} parent=11 // pred_fallthru
          _
        // Predicated region
        $region53: #{transformer_forward.1} parent=11 // pred_check
          %p844 = pneg %p336
        $region54: #{transformer_forward.1} parent=11 // pred_check_branch
          %846 = sbr.rel (%p844) target = $region56
        $region55: #{transformer_forward.1} parent=11 // pred_region
          %s848 = ssub.s32 2048, 2048
          %849 = vsyncadd [#allocation17], %s848
          %s850 = sshll.u32 [#allocation16], 4
          %s851 = int_to_ptr.vmem [resolvable:$true] %s850
          %856 = dma.hbm_to_vmem [thread:$0]  %s23, 2048, %s851, [#allocation17], 64, 64, 4
        $region56: #{transformer_forward.1} parent=11 // pred_fallthru
          _
        // Predicated region
        $region57: #{transformer_forward.1} parent=11 // pred_check
          %p857 = pneg %p357
        $region58: #{transformer_forward.1} parent=11 // pred_check_branch
          %859 = sbr.rel (%p857) target = $region60
        $region59: #{transformer_forward.1} parent=11 // pred_region
          %s861 = ssub.s32 16, 16
          %862 = vsyncadd [#allocation17], %s861
          %s864 = sshll.u32 [#allocation18], 4
          %s865 = int_to_ptr.vmem [resolvable:$true] %s864
          %867 = dma.hbm_to_vmem [thread:$0]  %s25, 16, %s865, [#allocation17]
        $region60: #{transformer_forward.1} parent=11 // pred_fallthru
          _
        // Predicated region
        $region61: #{transformer_forward.1} parent=11 // pred_check
          %p868 = pneg %p378
        $region62: #{transformer_forward.1} parent=11 // pred_check_branch
          %870 = sbr.rel (%p868) target = $region64
        $region63: #{transformer_forward.1} parent=11 // pred_region
          %s872 = ssub.s32 16, 16
          %873 = vsyncadd [#allocation20], %s872
          %s875 = sshll.u32 [#allocation19], 4
          %s876 = int_to_ptr.vmem [resolvable:$true] %s875
          %878 = dma.hbm_to_vmem [thread:$0]  %s27, 16, %s876, [#allocation20]
        $region64: #{transformer_forward.1} parent=11 // pred_fallthru
          _
        // Predicated region
        $region65: #{transformer_forward.1} parent=11 // pred_check
          %p879 = pneg %p399
        $region66: #{transformer_forward.1} parent=11 // pred_check_branch
          %881 = sbr.rel (%p879) target = $region68
        $region67: #{transformer_forward.1} parent=11 // pred_region
          %s883 = ssub.s32 16, 16
          %884 = vsyncadd [#allocation20], %s883
          %s886 = sshll.u32 [#allocation21], 4
          %s887 = int_to_ptr.vmem [resolvable:$true] %s886
          %889 = dma.hbm_to_vmem [thread:$0]  %s29, 16, %s887, [#allocation20]
        $region68: #{transformer_forward.1} parent=11 // pred_fallthru
          _
        // Predicated region
        $region69: #{transformer_forward.1} parent=11 // pred_check
          %p890 = pneg %p420
        $region70: #{transformer_forward.1} parent=11 // pred_check_branch
          %892 = sbr.rel (%p890) target = $region72
        $region71: #{transformer_forward.1} parent=11 // pred_region
          %s894 = ssub.s32 6144, 6144
          %895 = vsyncadd [#allocation23], %s894
          %s896 = sshll.u32 [#allocation22], 4
          %s897 = int_to_ptr.vmem [resolvable:$true] %s896
          %902 = dma.hbm_to_vmem [thread:$0]  %s31, 6144, %s897, [#allocation23], 192, 192, 12
        $region72: #{transformer_forward.1} parent=11 // pred_fallthru
          _
        // Predicated region
        $region73: #{transformer_forward.1} parent=11 // pred_check
          %p903 = pneg %p441
        $region74: #{transformer_forward.1} parent=11 // pred_check_branch
          %905 = sbr.rel (%p903) target = $region76
        $region75: #{transformer_forward.1} parent=11 // pred_region
          %s907 = ssub.s32 96, 96
          %908 = vsyncadd [#allocation23], %s907
          %s909 = sshll.u32 [#allocation24], 4
          %s910 = int_to_ptr.vmem [resolvable:$true] %s909
          %915 = dma.hbm_to_vmem [thread:$0]  %s33, 96, %s910, [#allocation23], 48, 48, 3
        $region76: #{transformer_forward.1} parent=11 // pred_fallthru
          _
        // Predicated region
        $region77: #{transformer_forward.1} parent=11 // pred_check
          %p916 = pneg %p462
        $region78: #{transformer_forward.1} parent=11 // pred_check_branch
          %918 = sbr.rel (%p916) target = $region80
        $region79: #{transformer_forward.1} parent=11 // pred_region
          %s920 = ssub.s32 2048, 2048
          %921 = vsyncadd [#allocation26], %s920
          %s922 = sshll.u32 [#allocation25], 4
          %s923 = int_to_ptr.vmem [resolvable:$true] %s922
          %928 = dma.hbm_to_vmem [thread:$0]  %s35, 2048, %s923, [#allocation26], 64, 64, 4
        $region80: #{transformer_forward.1} parent=11 // pred_fallthru
          _
        // Predicated region
        $region81: #{transformer_forward.1} parent=11 // pred_check
          %p929 = pneg %p483
        $region82: #{transformer_forward.1} parent=11 // pred_check_branch
          %931 = sbr.rel (%p929) target = $region84
        $region83: #{transformer_forward.1} parent=11 // pred_region
          %s933 = ssub.s32 16, 16
          %934 = vsyncadd [#allocation26], %s933
          %s936 = sshll.u32 [#allocation27], 4
          %s937 = int_to_ptr.vmem [resolvable:$true] %s936
          %939 = dma.hbm_to_vmem [thread:$0]  %s37, 16, %s937, [#allocation26]
        $region84: #{transformer_forward.1} parent=11 // pred_fallthru
          _
        // Predicated region
        $region85: #{transformer_forward.1} parent=11 // pred_check
          %p940 = pneg %p504
        $region86: #{transformer_forward.1} parent=11 // pred_check_branch
          %942 = sbr.rel (%p940) target = $region88
        $region87: #{transformer_forward.1} parent=11 // pred_region
          %s944 = ssub.s32 16, 16
          %945 = vsyncadd [#allocation29], %s944
          %s947 = sshll.u32 [#allocation28], 4
          %s948 = int_to_ptr.vmem [resolvable:$true] %s947
          %950 = dma.hbm_to_vmem [thread:$0]  %s39, 16, %s948, [#allocation29]
        $region88: #{transformer_forward.1} parent=11 // pred_fallthru
          _
        // Predicated region
        $region89: #{transformer_forward.1} parent=11 // pred_check
          %p951 = pneg %p525
        $region90: #{transformer_forward.1} parent=11 // pred_check_branch
          %953 = sbr.rel (%p951) target = $region92
        $region91: #{transformer_forward.1} parent=11 // pred_region
          %s955 = ssub.s32 16, 16
          %956 = vsyncadd [#allocation29], %s955
          %s958 = sshll.u32 [#allocation30], 4
          %s959 = int_to_ptr.vmem [resolvable:$true] %s958
          %961 = dma.hbm_to_vmem [thread:$0]  %s41, 16, %s959, [#allocation29]
        $region92: #{transformer_forward.1} parent=11 // pred_fallthru
          _
        // Predicated region
        $region93: #{transformer_forward.1} parent=11 // pred_check
          %p962 = pneg %p546
        $region94: #{transformer_forward.1} parent=11 // pred_check_branch
          %964 = sbr.rel (%p962) target = $region96
        $region95: #{transformer_forward.1} parent=11 // pred_region
          %s966 = ssub.s32 2048, 2048
          %967 = vsyncadd [#allocation32], %s966
          %s968 = sshll.u32 [#allocation31], 4
          %s969 = int_to_ptr.vmem [resolvable:$true] %s968
          %974 = dma.hbm_to_vmem [thread:$0]  %s43, 2048, %s969, [#allocation32], 128, 128, 8
        $region96: #{transformer_forward.1} parent=11 // pred_fallthru
          _
        // Predicated region
        $region97: #{transformer_forward.1} parent=11 // pred_check
          %p975 = pneg %p567
        $region98: #{transformer_forward.1} parent=11 // pred_check_branch
          %977 = sbr.rel (%p975) target = $region100
        $region99: #{transformer_forward.1} parent=11 // pred_region
          %s979 = ssub.s32 32, 32
          %980 = vsyncadd [#allocation32], %s979
          %s982 = sshll.u32 [#allocation33], 4
          %s983 = int_to_ptr.vmem [resolvable:$true] %s982
          %985 = dma.hbm_to_vmem [thread:$0]  %s45, 32, %s983, [#allocation32]
        $region100: #{transformer_forward.1} parent=11 // pred_fallthru
          _
        // Predicated region
        $region101: #{transformer_forward.1} parent=11 // pred_check
          %p986 = pneg %p588
        $region102: #{transformer_forward.1} parent=11 // pred_check_branch
          %988 = sbr.rel (%p986) target = $region104
        $region103: #{transformer_forward.1} parent=11 // pred_region
          %s990 = ssub.s32 2048, 2048
          %991 = vsyncadd [#allocation35], %s990
          %s992 = sshll.u32 [#allocation34], 4
          %s993 = int_to_ptr.vmem [resolvable:$true] %s992
          %998 = dma.hbm_to_vmem [thread:$0]  %s47, 2048, %s993, [#allocation35], 64, 64, 4
        $region104: #{transformer_forward.1} parent=11 // pred_fallthru
          _
        // Predicated region
        $region105: #{transformer_forward.1} parent=11 // pred_check
          %p999 = pneg %p609
        $region106: #{transformer_forward.1} parent=11 // pred_check_branch
          %1001 = sbr.rel (%p999) target = $region108
        $region107: #{transformer_forward.1} parent=11 // pred_region
          %s1003 = ssub.s32 16, 16
          %1004 = vsyncadd [#allocation35], %s1003
          %s1006 = sshll.u32 [#allocation36], 4
          %s1007 = int_to_ptr.vmem [resolvable:$true] %s1006
          %1009 = dma.hbm_to_vmem [thread:$0]  %s49, 16, %s1007, [#allocation35]
        $region108: #{transformer_forward.1} parent=11 // pred_fallthru
          _
        // Predicated region
        $region109: #{transformer_forward.1} parent=11 // pred_check
          %p1010 = pneg %p630
        $region110: #{transformer_forward.1} parent=11 // pred_check_branch
          %1012 = sbr.rel (%p1010) target = $region112
        $region111: #{transformer_forward.1} parent=11 // pred_region
          %s1014 = ssub.s32 16, 16
          %1015 = vsyncadd [#allocation38], %s1014
          %s1017 = sshll.u32 [#allocation37], 4
          %s1018 = int_to_ptr.vmem [resolvable:$true] %s1017
          %1020 = dma.hbm_to_vmem [thread:$0]  %s51, 16, %s1018, [#allocation38]
        $region112: #{transformer_forward.1} parent=11 // pred_fallthru
          _
        // Predicated region
        $region113: #{transformer_forward.1} parent=11 // pred_check
          %p1021 = pneg %p651
        $region114: #{transformer_forward.1} parent=11 // pred_check_branch
          %1023 = sbr.rel (%p1021) target = $region116
        $region115: #{transformer_forward.1} parent=11 // pred_region
          %s1025 = ssub.s32 16, 16
          %1026 = vsyncadd [#allocation38], %s1025
          %s1028 = sshll.u32 [#allocation39], 4
          %s1029 = int_to_ptr.vmem [resolvable:$true] %s1028
          %1031 = dma.hbm_to_vmem [thread:$0]  %s53, 16, %s1029, [#allocation38]
        $region116: #{transformer_forward.1} parent=11 // pred_fallthru
          _
        // Predicated region
        $region117: #{transformer_forward.1} parent=11 // pred_check
          %p1032 = pneg %p672
        $region118: #{transformer_forward.1} parent=11 // pred_check_branch
          %1034 = sbr.rel (%p1032) target = $region120
        $region119: #{transformer_forward.1} parent=11 // pred_region
          %s1036 = ssub.s32 1024, 1024
          %1037 = vsyncadd [#allocation41], %s1036
          %s1038 = sshll.u32 [#allocation40], 4
          %s1039 = int_to_ptr.vmem [resolvable:$true] %s1038
          %1044 = dma.hbm_to_vmem [thread:$0]  %s55, 1024, %s1039, [#allocation41], 64, 64, 4
        $region120: #{transformer_forward.1} parent=11 // pred_fallthru
          _
        // Predicated region
        $region121: #{transformer_forward.1} parent=11 // pred_check
          %p1045 = pneg %p693
        $region122: #{transformer_forward.1} parent=11 // pred_check_branch
          %1047 = sbr.rel (%p1045) target = $region124
        $region123: #{transformer_forward.1} parent=11 // pred_region
          %s1049 = ssub.s32 16, 16
          %1050 = vsyncadd [#allocation41], %s1049
          %s1052 = sshll.u32 [#allocation42], 4
          %s1053 = int_to_ptr.vmem [resolvable:$true] %s1052
          %1055 = dma.hbm_to_vmem [thread:$0]  %s57, 16, %s1053, [#allocation41]
        $region124: #{transformer_forward.1} parent=11 // pred_fallthru
          _
      $region12: #{transformer_forward.1} parent=5 // pred_fallthru
        _
      %p1056 = scmp.lt.s32.totalorder %s79, 2
      // Predicated region
      $region125: #{transformer_forward.1} parent=5 // pred_check
        %p1057 = pneg %p1056
      $region126: #{transformer_forward.1} parent=5 // pred_check_branch
        %1059 = sbr.rel (%p1057) target = $region128
      $region127: #{transformer_forward.1} parent=5 // pred_region
        // Predicated region
        $region129: #{transformer_forward.1} parent=127 // pred_check
          %p1060 = pneg %p99
        $region130: #{transformer_forward.1} parent=127 // pred_check_branch
          %1062 = sbr.rel (%p1060) target = $region132
        $region131: #{transformer_forward.1} parent=127 // pred_region
          %p1063 = scmp.lt.s32.totalorder %s79, 1
          %s1064 = scalar_select %p1063, %s79, 1
          %s1065 = smul.addr %s1064, 4
          %s1066 = scalar_lea.vmem %s1, %s1065
        $region132: #{transformer_forward.1} parent=127 // pred_fallthru
          _
      $region128: #{transformer_forward.1} parent=5 // pred_fallthru
        _
      %p1067 = scmp.le.s32.totalorder 1, %s79
      %p1068 = scmp.lt.s32.totalorder %s79, 3
      %p1069 = pnand %p1067, %p1068
      %p1070 = pneg %p1069
      // Predicated region
      $region133: #{transformer_forward.1} parent=5 // pred_check
        _
      $region134: #{transformer_forward.1} parent=5 // pred_check_branch
        %1072 = sbr.rel (%p1069) target = $region136
      $region135: #{transformer_forward.1} parent=5 // pred_region
        %s1073 = ssub.s32 %s79, 1
        // Predicated region
        $region137: #{transformer_forward.1} parent=135 // pred_check
          %p1074 = pneg %p147
        $region138: #{transformer_forward.1} parent=135 // pred_check_branch
          %1076 = sbr.rel (%p1074) target = $region140
        $region139: #{transformer_forward.1} parent=135 // pred_region
          %1077 = dma.done [#allocation3], 128
        $region140: #{transformer_forward.1} parent=135 // pred_fallthru
          _
        // Predicated region
        $region141: #{transformer_forward.1} parent=135 // pred_check
          %p1078 = pneg %p168
        $region142: #{transformer_forward.1} parent=135 // pred_check_branch
          %1080 = sbr.rel (%p1078) target = $region144
        $region143: #{transformer_forward.1} parent=135 // pred_region
          %1081 = dma.done [#allocation5], 6144
        $region144: #{transformer_forward.1} parent=135 // pred_fallthru
          _
        // Predicated region
        $region145: #{transformer_forward.1} parent=135 // pred_check
          %p1082 = pneg %p189
        $region146: #{transformer_forward.1} parent=135 // pred_check_branch
          %1084 = sbr.rel (%p1082) target = $region148
        $region147: #{transformer_forward.1} parent=135 // pred_region
          %1085 = dma.done [#allocation5], 96
        $region148: #{transformer_forward.1} parent=135 // pred_fallthru
          _
        // Predicated region
        $region149: #{transformer_forward.1} parent=135 // pred_check
          %p1086 = pneg %p210
        $region150: #{transformer_forward.1} parent=135 // pred_check_branch
          %1088 = sbr.rel (%p1086) target = $region152
        $region151: #{transformer_forward.1} parent=135 // pred_region
          %1089 = dma.done [#allocation8], 2048
        $region152: #{transformer_forward.1} parent=135 // pred_fallthru
          _
        // Predicated region
        $region153: #{transformer_forward.1} parent=135 // pred_check
          %p1090 = pneg %p231
        $region154: #{transformer_forward.1} parent=135 // pred_check_branch
          %1092 = sbr.rel (%p1090) target = $region156
        $region155: #{transformer_forward.1} parent=135 // pred_region
          %1093 = dma.done [#allocation8], 16
        $region156: #{transformer_forward.1} parent=135 // pred_fallthru
          _
        // Predicated region
        $region157: #{transformer_forward.1} parent=135 // pred_check
          %p1094 = pneg %p252
        $region158: #{transformer_forward.1} parent=135 // pred_check_branch
          %1096 = sbr.rel (%p1094) target = $region160
        $region159: #{transformer_forward.1} parent=135 // pred_region
          %1097 = dma.done [#allocation11], 16
        $region160: #{transformer_forward.1} parent=135 // pred_fallthru
          _
        // Predicated region
        $region161: #{transformer_forward.1} parent=135 // pred_check
          %p1098 = pneg %p273
        $region162: #{transformer_forward.1} parent=135 // pred_check_branch
          %1100 = sbr.rel (%p1098) target = $region164
        $region163: #{transformer_forward.1} parent=135 // pred_region
          %1101 = dma.done [#allocation11], 16
        $region164: #{transformer_forward.1} parent=135 // pred_fallthru
          _
        // Predicated region
        $region165: #{transformer_forward.1} parent=135 // pred_check
          %p1102 = pneg %p294
        $region166: #{transformer_forward.1} parent=135 // pred_check_branch
          %1104 = sbr.rel (%p1102) target = $region168
        $region167: #{transformer_forward.1} parent=135 // pred_region
          %1105 = dma.done [#allocation14], 2048
        $region168: #{transformer_forward.1} parent=135 // pred_fallthru
          _
        // Predicated region
        $region169: #{transformer_forward.1} parent=135 // pred_check
          %p1106 = pneg %p315
        $region170: #{transformer_forward.1} parent=135 // pred_check_branch
          %1108 = sbr.rel (%p1106) target = $region172
        $region171: #{transformer_forward.1} parent=135 // pred_region
          %1109 = dma.done [#allocation14], 32
        $region172: #{transformer_forward.1} parent=135 // pred_fallthru
          _
        // Predicated region
        $region173: #{transformer_forward.1} parent=135 // pred_check
          %p1110 = pneg %p336
        $region174: #{transformer_forward.1} parent=135 // pred_check_branch
          %1112 = sbr.rel (%p1110) target = $region176
        $region175: #{transformer_forward.1} parent=135 // pred_region
          %1113 = dma.done [#allocation17], 2048
        $region176: #{transformer_forward.1} parent=135 // pred_fallthru
          _
        // Predicated region
        $region177: #{transformer_forward.1} parent=135 // pred_check
          %p1114 = pneg %p357
        $region178: #{transformer_forward.1} parent=135 // pred_check_branch
          %1116 = sbr.rel (%p1114) target = $region180
        $region179: #{transformer_forward.1} parent=135 // pred_region
          %1117 = dma.done [#allocation17], 16
        $region180: #{transformer_forward.1} parent=135 // pred_fallthru
          _
        // Predicated region
        $region181: #{transformer_forward.1} parent=135 // pred_check
          %p1118 = pneg %p378
        $region182: #{transformer_forward.1} parent=135 // pred_check_branch
          %1120 = sbr.rel (%p1118) target = $region184
        $region183: #{transformer_forward.1} parent=135 // pred_region
          %1121 = dma.done [#allocation20], 16
        $region184: #{transformer_forward.1} parent=135 // pred_fallthru
          _
        // Predicated region
        $region185: #{transformer_forward.1} parent=135 // pred_check
          %p1122 = pneg %p399
        $region186: #{transformer_forward.1} parent=135 // pred_check_branch
          %1124 = sbr.rel (%p1122) target = $region188
        $region187: #{transformer_forward.1} parent=135 // pred_region
          %1125 = dma.done [#allocation20], 16
        $region188: #{transformer_forward.1} parent=135 // pred_fallthru
          _
        // Predicated region
        $region189: #{transformer_forward.1} parent=135 // pred_check
          %p1126 = pneg %p420
        $region190: #{transformer_forward.1} parent=135 // pred_check_branch
          %1128 = sbr.rel (%p1126) target = $region192
        $region191: #{transformer_forward.1} parent=135 // pred_region
          %1129 = dma.done [#allocation23], 6144
        $region192: #{transformer_forward.1} parent=135 // pred_fallthru
          _
        // Predicated region
        $region193: #{transformer_forward.1} parent=135 // pred_check
          %p1130 = pneg %p441
        $region194: #{transformer_forward.1} parent=135 // pred_check_branch
          %1132 = sbr.rel (%p1130) target = $region196
        $region195: #{transformer_forward.1} parent=135 // pred_region
          %1133 = dma.done [#allocation23], 96
        $region196: #{transformer_forward.1} parent=135 // pred_fallthru
          _
        // Predicated region
        $region197: #{transformer_forward.1} parent=135 // pred_check
          %p1134 = pneg %p462
        $region198: #{transformer_forward.1} parent=135 // pred_check_branch
          %1136 = sbr.rel (%p1134) target = $region200
        $region199: #{transformer_forward.1} parent=135 // pred_region
          %1137 = dma.done [#allocation26], 2048
        $region200: #{transformer_forward.1} parent=135 // pred_fallthru
          _
        // Predicated region
        $region201: #{transformer_forward.1} parent=135 // pred_check
          %p1138 = pneg %p483
        $region202: #{transformer_forward.1} parent=135 // pred_check_branch
          %1140 = sbr.rel (%p1138) target = $region204
        $region203: #{transformer_forward.1} parent=135 // pred_region
          %1141 = dma.done [#allocation26], 16
        $region204: #{transformer_forward.1} parent=135 // pred_fallthru
          _
        // Predicated region
        $region205: #{transformer_forward.1} parent=135 // pred_check
          %p1142 = pneg %p504
        $region206: #{transformer_forward.1} parent=135 // pred_check_branch
          %1144 = sbr.rel (%p1142) target = $region208
        $region207: #{transformer_forward.1} parent=135 // pred_region
          %1145 = dma.done [#allocation29], 16
        $region208: #{transformer_forward.1} parent=135 // pred_fallthru
          _
        // Predicated region
        $region209: #{transformer_forward.1} parent=135 // pred_check
          %p1146 = pneg %p525
        $region210: #{transformer_forward.1} parent=135 // pred_check_branch
          %1148 = sbr.rel (%p1146) target = $region212
        $region211: #{transformer_forward.1} parent=135 // pred_region
          %1149 = dma.done [#allocation29], 16
        $region212: #{transformer_forward.1} parent=135 // pred_fallthru
          _
        // Predicated region
        $region213: #{transformer_forward.1} parent=135 // pred_check
          %p1150 = pneg %p546
        $region214: #{transformer_forward.1} parent=135 // pred_check_branch
          %1152 = sbr.rel (%p1150) target = $region216
        $region215: #{transformer_forward.1} parent=135 // pred_region
          %1153 = dma.done [#allocation32], 2048
        $region216: #{transformer_forward.1} parent=135 // pred_fallthru
          _
        // Predicated region
        $region217: #{transformer_forward.1} parent=135 // pred_check
          %p1154 = pneg %p567
        $region218: #{transformer_forward.1} parent=135 // pred_check_branch
          %1156 = sbr.rel (%p1154) target = $region220
        $region219: #{transformer_forward.1} parent=135 // pred_region
          %1157 = dma.done [#allocation32], 32
        $region220: #{transformer_forward.1} parent=135 // pred_fallthru
          _
        // Predicated region
        $region221: #{transformer_forward.1} parent=135 // pred_check
          %p1158 = pneg %p588
        $region222: #{transformer_forward.1} parent=135 // pred_check_branch
          %1160 = sbr.rel (%p1158) target = $region224
        $region223: #{transformer_forward.1} parent=135 // pred_region
          %1161 = dma.done [#allocation35], 2048
        $region224: #{transformer_forward.1} parent=135 // pred_fallthru
          _
        // Predicated region
        $region225: #{transformer_forward.1} parent=135 // pred_check
          %p1162 = pneg %p609
        $region226: #{transformer_forward.1} parent=135 // pred_check_branch
          %1164 = sbr.rel (%p1162) target = $region228
        $region227: #{transformer_forward.1} parent=135 // pred_region
          %1165 = dma.done [#allocation35], 16
        $region228: #{transformer_forward.1} parent=135 // pred_fallthru
          _
        // Predicated region
        $region229: #{transformer_forward.1} parent=135 // pred_check
          %p1166 = pneg %p630
        $region230: #{transformer_forward.1} parent=135 // pred_check_branch
          %1168 = sbr.rel (%p1166) target = $region232
        $region231: #{transformer_forward.1} parent=135 // pred_region
          %1169 = dma.done [#allocation38], 16
        $region232: #{transformer_forward.1} parent=135 // pred_fallthru
          _
        // Predicated region
        $region233: #{transformer_forward.1} parent=135 // pred_check
          %p1170 = pneg %p651
        $region234: #{transformer_forward.1} parent=135 // pred_check_branch
          %1172 = sbr.rel (%p1170) target = $region236
        $region235: #{transformer_forward.1} parent=135 // pred_region
          %1173 = dma.done [#allocation38], 16
        $region236: #{transformer_forward.1} parent=135 // pred_fallthru
          _
        // Predicated region
        $region237: #{transformer_forward.1} parent=135 // pred_check
          %p1174 = pneg %p672
        $region238: #{transformer_forward.1} parent=135 // pred_check_branch
          %1176 = sbr.rel (%p1174) target = $region240
        $region239: #{transformer_forward.1} parent=135 // pred_region
          %1177 = dma.done [#allocation41], 1024
        $region240: #{transformer_forward.1} parent=135 // pred_fallthru
          _
        // Predicated region
        $region241: #{transformer_forward.1} parent=135 // pred_check
          %p1178 = pneg %p693
        $region242: #{transformer_forward.1} parent=135 // pred_check_branch
          %1180 = sbr.rel (%p1178) target = $region244
        $region243: #{transformer_forward.1} parent=135 // pred_region
          %1181 = dma.done [#allocation41], 16
        $region244: #{transformer_forward.1} parent=135 // pred_fallthru
          _
        %p1182 = scmp.lt.s32.totalorder %s84, 1
        %s1183 = scalar_select %p1182, %s84, 1
        %s1184 = smul.addr %s1183, 4
        %s1185 = scalar_lea.vmem %s1, %s1184
        %p1186 = pneg %p105
        %p1187 = pneg %p102
        %p1188 = pneg %p126
        %p1189 = pneg %p123
        %p1190 = pneg %p147
        %p1191 = pneg %p144
        %p1192 = pneg %p168
        %p1193 = pneg %p165
        %p1194 = pneg %p189
        %p1195 = pneg %p186
        %p1196 = pneg %p210
        %p1197 = pneg %p207
        %p1198 = pneg %p231
        %p1199 = pneg %p228
        %p1200 = pneg %p252
        %p1201 = pneg %p249
        %p1202 = pneg %p273
        %p1203 = pneg %p270
        %p1204 = pneg %p294
        %p1205 = pneg %p291
        %p1206 = pneg %p315
        %p1207 = pneg %p312
        %p1208 = pneg %p336
        %p1209 = pneg %p333
        %p1210 = pneg %p357
        %p1211 = pneg %p354
        %p1212 = pneg %p378
        %p1213 = pneg %p375
        %p1214 = pneg %p399
        %p1215 = pneg %p396
        %p1216 = pneg %p420
        %p1217 = pneg %p417
        %p1218 = pneg %p441
        %p1219 = pneg %p438
        %p1220 = pneg %p462
        %p1221 = pneg %p459
        %p1222 = pneg %p483
        %p1223 = pneg %p480
        %p1224 = pneg %p504
        %p1225 = pneg %p501
        %p1226 = pneg %p525
        %p1227 = pneg %p522
        %p1228 = pneg %p546
        %p1229 = pneg %p543
        %p1230 = pneg %p567
        %p1231 = pneg %p564
        %p1232 = pneg %p588
        %p1233 = pneg %p585
        %p1234 = pneg %p609
        %p1235 = pneg %p606
        %p1236 = pneg %p630
        %p1237 = pneg %p627
        %p1238 = pneg %p651
        %p1239 = pneg %p648
        %p1240 = pneg %p672
        %p1241 = pneg %p669
        %p1242 = pneg %p693
        %p1243 = pneg %p690
        %p1244 = pneg %p719
        %p1245 = pneg %p716
        %p1246 = scmp.lt.s32.totalorder %s84, 1
        %s1247 = scalar_select %p1246, %s84, 1
        %s1248 = smul.addr %s1247, 8
        %s1249 = scalar_lea.vmem %s59, %s1248
        %p1250 = scmp.lt.s32.totalorder %s84, 1
        %s1251 = scalar_select %p1250, %s84, 1
        %s1252 = smul.addr %s1251, 4
        %s1253 = scalar_lea.vmem %s1, %s1252
        %p1254 = scmp.lt.s32.totalorder %s84, 1
        %s1255 = scalar_select %p1254, %s84, 1
        %s1256 = smul.addr %s1255, 8
        %s1257 = scalar_lea.vmem %s59, %s1256
        %v1259 = vld [vmem:[#allocation2] sm:$0xff]
        %v1260 = vld [vmem:[%s1253] sm:$0xf]
        %v1261 = vunpack.c.l.bf16 %v1260
        %v1262 = vmul.f32 %v1261, 5.656854
        %v1263 = vld [vmem:[%s3] sm:$0xff]
        %v1264 = vadd.f32 %v1262, %v1263
        %v1265 = vpack.c.bf16 %v1264, %v1264
        %v1266 = vld [vmem:[#allocation4] sm:$0xff]
        %v1267 = vld [vmem:[#allocation4 + $0x8] sm:$0xf]
        %v1268 = vld [vmem:[#allocation4 + $0xc] sm:$0xff]
        %v1269 = vld [vmem:[#allocation4 + $0x14] sm:$0xf]
        %v1270 = vld [vmem:[#allocation4 + $0x18] sm:$0xff]
        %v1271 = vld [vmem:[#allocation4 + $0x20] sm:$0xf]
        %v1272 = vld [vmem:[#allocation4 + $0x24] sm:$0xff]
        %v1273 = vld [vmem:[#allocation4 + $0x2c] sm:$0xf]
        %v1274 = vld [vmem:[#allocation4 + $0x30] sm:$0xff]
        %v1275 = vld [vmem:[#allocation4 + $0x38] sm:$0xf]
        %v1276 = vld [vmem:[#allocation4 + $0x3c] sm:$0xff]
        %v1277 = vld [vmem:[#allocation4 + $0x44] sm:$0xf]
        %v1278 = vld [vmem:[#allocation4 + $0x48] sm:$0xff]
        %v1279 = vld [vmem:[#allocation4 + $0x50] sm:$0xf]
        %v1280 = vld [vmem:[#allocation4 + $0x54] sm:$0xff]
        %v1281 = vld [vmem:[#allocation4 + $0x5c] sm:$0xf]
        %v1282 = vld [vmem:[#allocation4 + $0x60] sm:$0xff]
        %v1283 = vld [vmem:[#allocation4 + $0x68] sm:$0xf]
        %v1284 = vld [vmem:[#allocation4 + $0x6c] sm:$0xff]
        %v1285 = vld [vmem:[#allocation4 + $0x74] sm:$0xf]
        %v1286 = vld [vmem:[#allocation4 + $0x78] sm:$0xff]
        %v1287 = vld [vmem:[#allocation4 + $0x80] sm:$0xf]
        %v1288 = vld [vmem:[#allocation4 + $0x84] sm:$0xff]
        %v1289 = vld [vmem:[#allocation4 + $0x8c] sm:$0xf]
        %v1290 = vld [vmem:[#allocation4 + $0x90] sm:$0xff]
        %v1291 = vld [vmem:[#allocation4 + $0x98] sm:$0xf]
        %v1292 = vld [vmem:[#allocation4 + $0x9c] sm:$0xff]
        %v1293 = vld [vmem:[#allocation4 + $0xa4] sm:$0xf]
        %v1294 = vld [vmem:[#allocation4 + $0xa8] sm:$0xff]
        %v1295 = vld [vmem:[#allocation4 + $0xb0] sm:$0xf]
        %v1296 = vld [vmem:[#allocation4 + $0xb4] sm:$0xff]
        %v1297 = vld [vmem:[#allocation4 + $0xbc] sm:$0xf]
        %v1298 = vld [vmem:[#allocation4 + $0xc0] sm:$0xff]
        %v1299 = vld [vmem:[#allocation4 + $0xc8] sm:$0xf]
        %v1300 = vld [vmem:[#allocation4 + $0xcc] sm:$0xff]
        %v1301 = vld [vmem:[#allocation4 + $0xd4] sm:$0xf]
        %v1302 = vld [vmem:[#allocation4 + $0xd8] sm:$0xff]
        %v1303 = vld [vmem:[#allocation4 + $0xe0] sm:$0xf]
        %v1304 = vld [vmem:[#allocation4 + $0xe4] sm:$0xff]
        %v1305 = vld [vmem:[#allocation4 + $0xec] sm:$0xf]
        %v1306 = vld [vmem:[#allocation4 + $0xf0] sm:$0xff]
        %v1307 = vld [vmem:[#allocation4 + $0xf8] sm:$0xf]
        %v1308 = vld [vmem:[#allocation4 + $0xfc] sm:$0xff]
        %v1309 = vld [vmem:[#allocation4 + $0x104] sm:$0xf]
        %v1310 = vld [vmem:[#allocation4 + $0x108] sm:$0xff]
        %v1311 = vld [vmem:[#allocation4 + $0x110] sm:$0xf]
        %v1312 = vld [vmem:[#allocation4 + $0x114] sm:$0xff]
        %v1313 = vld [vmem:[#allocation4 + $0x11c] sm:$0xf]
        %v1314 = vld [vmem:[#allocation4 + $0x120] sm:$0xff]
        %v1315 = vld [vmem:[#allocation4 + $0x128] sm:$0xf]
        %v1316 = vld [vmem:[#allocation4 + $0x12c] sm:$0xff]
        %v1317 = vld [vmem:[#allocation4 + $0x134] sm:$0xf]
        %v1318 = vld [vmem:[#allocation4 + $0x138] sm:$0xff]
        %v1319 = vld [vmem:[#allocation4 + $0x140] sm:$0xf]
        %v1320 = vld [vmem:[#allocation4 + $0x144] sm:$0xff]
        %v1321 = vld [vmem:[#allocation4 + $0x14c] sm:$0xf]
        %v1322 = vld [vmem:[#allocation4 + $0x150] sm:$0xff]
        %v1323 = vld [vmem:[#allocation4 + $0x158] sm:$0xf]
        %v1324 = vld [vmem:[#allocation4 + $0x15c] sm:$0xff]
        %v1325 = vld [vmem:[#allocation4 + $0x164] sm:$0xf]
        %v1326 = vld [vmem:[#allocation4 + $0x168] sm:$0xff]
        %v1327 = vld [vmem:[#allocation4 + $0x170] sm:$0xf]
        %v1328 = vld [vmem:[#allocation4 + $0x174] sm:$0xff]
        %v1329 = vld [vmem:[#allocation4 + $0x17c] sm:$0xf]
        %v1330 = vld [vmem:[#allocation6] sm:$0x7]
        %v1331 = vld [vmem:[#allocation6 + $0x3] sm:$0x7]
        %v1334 = vlaneseq
        %v1335 = vshrl.u32 %v1334, 7
        %v1336 = vsub.s32 0, %v1335
        %v1337 = vrot.slane %v1330, %v1336
        %v1338 = vlaneseq
        %v1339 = vshrl.u32 %v1338, 7
        %v1340 = vsub.s32 1, %v1339
        %v1341 = vrot.slane %v1330, %v1340
        %v1342 = vlaneseq
        %v1343 = vshrl.u32 %v1342, 7
        %v1344 = vsub.s32 2, %v1343
        %v1345 = vrot.slane %v1330, %v1344
        %v1346 = vlaneseq
        %v1347 = vshrl.u32 %v1346, 7
        %v1348 = vsub.s32 0, %v1347
        %v1349 = vrot.slane %v1331, %v1348
        %v1350 = vlaneseq
        %v1351 = vshrl.u32 %v1350, 7
        %v1352 = vsub.s32 1, %v1351
        %v1353 = vrot.slane %v1331, %v1352
        %v1354 = vlaneseq
        %v1355 = vshrl.u32 %v1354, 7
        %v1356 = vsub.s32 2, %v1355
        %v1357 = vrot.slane %v1331, %v1356
        %v1396 = vunpack.c.l.b16 %v1266
        %v1397 = vunpack.c.h.b16 %v1266
        %v1398 = vunpack.c.l.b16 %v1267
        %v1399 = vunpack.c.l.b16 %v1268
        %v1400 = vunpack.c.h.b16 %v1268
        %v1401 = vunpack.c.l.b16 %v1269
        %v1402 = vunpack.c.l.b16 %v1270
        %v1403 = vunpack.c.h.b16 %v1270
        %v1404 = vunpack.c.l.b16 %v1271
        %v1405 = vunpack.c.l.b16 %v1272
        %v1406 = vunpack.c.h.b16 %v1272
        %v1407 = vunpack.c.l.b16 %v1273
        %v1408 = vunpack.c.l.b16 %v1274
        %v1409 = vunpack.c.h.b16 %v1274
        %v1410 = vunpack.c.l.b16 %v1275
        %v1411 = vunpack.c.l.b16 %v1276
        %v1412 = vunpack.c.h.b16 %v1276
        %v1413 = vunpack.c.l.b16 %v1277
        %v1414 = vunpack.c.l.b16 %v1278
        %v1415 = vunpack.c.h.b16 %v1278
        %v1416 = vunpack.c.l.b16 %v1279
        %v1417 = vunpack.c.l.b16 %v1280
        %v1418 = vunpack.c.h.b16 %v1280
        %v1419 = vunpack.c.l.b16 %v1281
        %v1420 = vunpack.c.l.b16 %v1282
        %v1421 = vunpack.c.h.b16 %v1282
        %v1422 = vunpack.c.l.b16 %v1283
        %v1423 = vunpack.c.l.b16 %v1284
        %v1424 = vunpack.c.h.b16 %v1284
        %v1425 = vunpack.c.l.b16 %v1285
        %v1426 = vunpack.c.l.b16 %v1286
        %v1427 = vunpack.c.h.b16 %v1286
        %v1428 = vunpack.c.l.b16 %v1287
        %v1429 = vunpack.c.l.b16 %v1288
        %v1430 = vunpack.c.h.b16 %v1288
        %v1431 = vunpack.c.l.b16 %v1289
        %v1432 = vunpack.c.l.b16 %v1290
        %v1433 = vunpack.c.h.b16 %v1290
        %v1434 = vunpack.c.l.b16 %v1291
        %v1435 = vunpack.c.l.b16 %v1292
        %v1436 = vunpack.c.h.b16 %v1292
        %v1437 = vunpack.c.l.b16 %v1293
        %v1438 = vunpack.c.l.b16 %v1294
        %v1439 = vunpack.c.h.b16 %v1294
        %v1440 = vunpack.c.l.b16 %v1295
        %v1441 = vunpack.c.l.b16 %v1296
        %v1442 = vunpack.c.h.b16 %v1296
        %v1443 = vunpack.c.l.b16 %v1297
        %v1444 = vpack.c.b16 %v1399, %v1396
        %v1445 = vpack.c.b16 %v1400, %v1397
        %v1446 = vpack.c.b16 %v1401, %v1398
        %v1447 = vpack.c.b16 %v1405, %v1402
        %v1448 = vpack.c.b16 %v1406, %v1403
        %v1449 = vpack.c.b16 %v1407, %v1404
        %v1450 = vpack.c.b16 %v1411, %v1408
        %v1451 = vpack.c.b16 %v1412, %v1409
        %v1452 = vpack.c.b16 %v1413, %v1410
        %v1453 = vpack.c.b16 %v1417, %v1414
        %v1454 = vpack.c.b16 %v1418, %v1415
        %v1455 = vpack.c.b16 %v1419, %v1416
        %v1456 = vpack.c.b16 %v1423, %v1420
        %v1457 = vpack.c.b16 %v1424, %v1421
        %v1458 = vpack.c.b16 %v1425, %v1422
        %v1459 = vpack.c.b16 %v1429, %v1426
        %v1460 = vpack.c.b16 %v1430, %v1427
        %v1461 = vpack.c.b16 %v1431, %v1428
        %v1462 = vpack.c.b16 %v1435, %v1432
        %v1463 = vpack.c.b16 %v1436, %v1433
        %v1464 = vpack.c.b16 %v1437, %v1434
        %v1465 = vpack.c.b16 %v1441, %v1438
        %v1466 = vpack.c.b16 %v1442, %v1439
        %v1467 = vpack.c.b16 %v1443, %v1440
        %1492 = vmatprep.subr.bf16.mxu0 %v1445
        %1493 = vmatpush1.bf16.msra.mxu0 %v1444
        %1494 = vmatprep.subr.bf16.mxu0 %v1448
        %1495 = vmatpush1.bf16.msra.mxu0 %v1447
        %1496 = vmatprep.subr.bf16.mxu0 %v1451
        %1497 = vmatpush1.bf16.msra.mxu0 %v1450
        %1498 = vmatprep.subr.bf16.mxu0 %v1454
        %1499 = vmatpush1.bf16.msra.mxu0 %v1453
        %1500 = vmatprep.subr.bf16.mxu0 %v1457
        %1501 = vmatpush1.bf16.msra.mxu0 %v1456
        %1502 = vmatprep.subr.bf16.mxu0 %v1460
        %1503 = vmatpush1.bf16.msra.mxu0 %v1459
        %1504 = vmatprep.subr.bf16.mxu0 %v1463
        %1505 = vmatpush1.bf16.msra.mxu0 %v1462
        %1506 = vmatprep.subr.bf16.mxu0 %v1466
        %1507 = vmatpush1.bf16.msra.mxu0 %v1465
        %1508 = vmatprep.subr.bf16.mxu0 0
        %1509 = vmatpush1.bf16.msra.mxu0 0
        %1510 = vmatprep.subr.bf16.mxu0 0
        %1511 = vmatpush1.bf16.msra.mxu0 0
        %1512 = vmatprep.subr.bf16.mxu0 0
        %1513 = vmatpush1.bf16.msra.mxu0 0
        %1514 = vmatprep.subr.bf16.mxu0 0
        %1515 = vmatpush1.bf16.msra.mxu0 0
        %1516 = vmatprep.subr.bf16.mxu0 0
        %1517 = vmatpush1.bf16.msra.mxu0 0
        %1518 = vmatprep.subr.bf16.mxu0 0
        %1519 = vmatpush1.bf16.msra.mxu0 0
        %1520 = vmatprep.subr.bf16.mxu0 0
        %1521 = vmatpush1.bf16.msra.mxu0 0
        %1522 = vmatprep.subr.bf16.mxu0 0
        %1523 = vmatpush1.bf16.msra.mxu0 0
        %1524 = vmatprep.mubr.bf16.mxu0 0
        %1525 = vmatmul.mubr.bf16.gmra.mrb[0].mxu0 %v1265
        %v1526 = vpop.f32.mrb[0].mxu0
        %v1527 = vadd.f32 %v1337, %v1526
        %v1528 = vpop.f32.mrb[0].mxu0
        %v1529 = vadd.f32 %v1341, %v1528
        %v1530 = vpop.f32.mrb[0].mxu0
        %v1531 = vpop.f32.mrb[0].mxu0
        %1532 = vdwg.mxu0
        %1533 = vmatprep.subr.bf16.mxu0 0
        %1534 = vmatpush1.bf16.msra.mxu0 %v1446
        %1535 = vmatprep.subr.bf16.mxu0 0
        %1536 = vmatpush1.bf16.msra.mxu0 %v1449
        %1537 = vmatprep.subr.bf16.mxu0 0
        %1538 = vmatpush1.bf16.msra.mxu0 %v1452
        %1539 = vmatprep.subr.bf16.mxu0 0
        %1540 = vmatpush1.bf16.msra.mxu0 %v1455
        %1541 = vmatprep.subr.bf16.mxu0 0
        %1542 = vmatpush1.bf16.msra.mxu0 %v1458
        %1543 = vmatprep.subr.bf16.mxu0 0
        %1544 = vmatpush1.bf16.msra.mxu0 %v1461
        %1545 = vmatprep.subr.bf16.mxu0 0
        %1546 = vmatpush1.bf16.msra.mxu0 %v1464
        %1547 = vmatprep.subr.bf16.mxu0 0
        %1548 = vmatpush1.bf16.msra.mxu0 %v1467
        %1549 = vmatprep.subr.bf16.mxu0 0
        %1550 = vmatpush1.bf16.msra.mxu0 0
        %1551 = vmatprep.subr.bf16.mxu0 0
        %1552 = vmatpush1.bf16.msra.mxu0 0
        %1553 = vmatprep.subr.bf16.mxu0 0
        %1554 = vmatpush1.bf16.msra.mxu0 0
        %1555 = vmatprep.subr.bf16.mxu0 0
        %1556 = vmatpush1.bf16.msra.mxu0 0
        %1557 = vmatprep.subr.bf16.mxu0 0
        %1558 = vmatpush1.bf16.msra.mxu0 0
        %1559 = vmatprep.subr.bf16.mxu0 0
        %1560 = vmatpush1.bf16.msra.mxu0 0
        %1561 = vmatprep.subr.bf16.mxu0 0
        %1562 = vmatpush1.bf16.msra.mxu0 0
        %1563 = vmatprep.subr.bf16.mxu0 0
        %1564 = vmatpush1.bf16.msra.mxu0 0
        %1565 = vmatprep.mubr.bf16.mxu0 0
        %1566 = vmatmul.mubr.bf16.gmra.mrb[0].mxu0 %v1265
        %v1567 = vpop.f32.mrb[0].mxu0
        %v1568 = vadd.f32 %v1345, %v1567
        %v1569 = vpop.f32.mrb[0].mxu0
        %v1570 = vpop.f32.mrb[0].mxu0
        %v1571 = vpop.f32.mrb[0].mxu0
        %1572 = vdwg.mxu0
        %v1605 = vunpack.c.l.b16 %v1298
        %v1606 = vunpack.c.h.b16 %v1298
        %v1607 = vunpack.c.l.b16 %v1299
        %v1608 = vunpack.c.l.b16 %v1300
        %v1609 = vunpack.c.h.b16 %v1300
        %v1610 = vunpack.c.l.b16 %v1301
        %v1611 = vunpack.c.l.b16 %v1302
        %v1612 = vunpack.c.h.b16 %v1302
        %v1613 = vunpack.c.l.b16 %v1303
        %v1614 = vunpack.c.l.b16 %v1304
        %v1615 = vunpack.c.h.b16 %v1304
        %v1616 = vunpack.c.l.b16 %v1305
        %v1617 = vunpack.c.l.b16 %v1306
        %v1618 = vunpack.c.h.b16 %v1306
        %v1619 = vunpack.c.l.b16 %v1307
        %v1620 = vunpack.c.l.b16 %v1308
        %v1621 = vunpack.c.h.b16 %v1308
        %v1622 = vunpack.c.l.b16 %v1309
        %v1623 = vunpack.c.l.b16 %v1310
        %v1624 = vunpack.c.h.b16 %v1310
        %v1625 = vunpack.c.l.b16 %v1311
        %v1626 = vunpack.c.l.b16 %v1312
        %v1627 = vunpack.c.h.b16 %v1312
        %v1628 = vunpack.c.l.b16 %v1313
        %v1629 = vunpack.c.l.b16 %v1314
        %v1630 = vunpack.c.h.b16 %v1314
        %v1631 = vunpack.c.l.b16 %v1315
        %v1632 = vunpack.c.l.b16 %v1316
        %v1633 = vunpack.c.h.b16 %v1316
        %v1634 = vunpack.c.l.b16 %v1317
        %v1635 = vunpack.c.l.b16 %v1318
        %v1636 = vunpack.c.h.b16 %v1318
        %v1637 = vunpack.c.l.b16 %v1319
        %v1638 = vunpack.c.l.b16 %v1320
        %v1639 = vunpack.c.h.b16 %v1320
        %v1640 = vunpack.c.l.b16 %v1321
        %v1641 = vunpack.c.l.b16 %v1322
        %v1642 = vunpack.c.h.b16 %v1322
        %v1643 = vunpack.c.l.b16 %v1323
        %v1644 = vunpack.c.l.b16 %v1324
        %v1645 = vunpack.c.h.b16 %v1324
        %v1646 = vunpack.c.l.b16 %v1325
        %v1647 = vunpack.c.l.b16 %v1326
        %v1648 = vunpack.c.h.b16 %v1326
        %v1649 = vunpack.c.l.b16 %v1327
        %v1650 = vunpack.c.l.b16 %v1328
        %v1651 = vunpack.c.h.b16 %v1328
        %v1652 = vunpack.c.l.b16 %v1329
        %v1653 = vpack.c.b16 %v1608, %v1605
        %v1654 = vpack.c.b16 %v1609, %v1606
        %v1655 = vpack.c.b16 %v1610, %v1607
        %v1656 = vpack.c.b16 %v1614, %v1611
        %v1657 = vpack.c.b16 %v1615, %v1612
        %v1658 = vpack.c.b16 %v1616, %v1613
        %v1659 = vpack.c.b16 %v1620, %v1617
        %v1660 = vpack.c.b16 %v1621, %v1618
        %v1661 = vpack.c.b16 %v1622, %v1619
        %v1662 = vpack.c.b16 %v1626, %v1623
        %v1663 = vpack.c.b16 %v1627, %v1624
        %v1664 = vpack.c.b16 %v1628, %v1625
        %v1665 = vpack.c.b16 %v1632, %v1629
        %v1666 = vpack.c.b16 %v1633, %v1630
        %v1667 = vpack.c.b16 %v1634, %v1631
        %v1668 = vpack.c.b16 %v1638, %v1635
        %v1669 = vpack.c.b16 %v1639, %v1636
        %v1670 = vpack.c.b16 %v1640, %v1637
        %v1671 = vpack.c.b16 %v1644, %v1641
        %v1672 = vpack.c.b16 %v1645, %v1642
        %v1673 = vpack.c.b16 %v1646, %v1643
        %v1674 = vpack.c.b16 %v1650, %v1647
        %v1675 = vpack.c.b16 %v1651, %v1648
        %v1676 = vpack.c.b16 %v1652, %v1649
        %1701 = vmatprep.subr.bf16.mxu0 %v1654
        %1702 = vmatpush1.bf16.msra.mxu0 %v1653
        %1703 = vmatprep.subr.bf16.mxu0 %v1657
        %1704 = vmatpush1.bf16.msra.mxu0 %v1656
        %1705 = vmatprep.subr.bf16.mxu0 %v1660
        %1706 = vmatpush1.bf16.msra.mxu0 %v1659
        %1707 = vmatprep.subr.bf16.mxu0 %v1663
        %1708 = vmatpush1.bf16.msra.mxu0 %v1662
        %1709 = vmatprep.subr.bf16.mxu0 %v1666
        %1710 = vmatpush1.bf16.msra.mxu0 %v1665
        %1711 = vmatprep.subr.bf16.mxu0 %v1669
        %1712 = vmatpush1.bf16.msra.mxu0 %v1668
        %1713 = vmatprep.subr.bf16.mxu0 %v1672
        %1714 = vmatpush1.bf16.msra.mxu0 %v1671
        %1715 = vmatprep.subr.bf16.mxu0 %v1675
        %1716 = vmatpush1.bf16.msra.mxu0 %v1674
        %1717 = vmatprep.subr.bf16.mxu0 0
        %1718 = vmatpush1.bf16.msra.mxu0 0
        %1719 = vmatprep.subr.bf16.mxu0 0
        %1720 = vmatpush1.bf16.msra.mxu0 0
        %1721 = vmatprep.subr.bf16.mxu0 0
        %1722 = vmatpush1.bf16.msra.mxu0 0
        %1723 = vmatprep.subr.bf16.mxu0 0
        %1724 = vmatpush1.bf16.msra.mxu0 0
        %1725 = vmatprep.subr.bf16.mxu0 0
        %1726 = vmatpush1.bf16.msra.mxu0 0
        %1727 = vmatprep.subr.bf16.mxu0 0
        %1728 = vmatpush1.bf16.msra.mxu0 0
        %1729 = vmatprep.subr.bf16.mxu0 0
        %1730 = vmatpush1.bf16.msra.mxu0 0
        %1731 = vmatprep.subr.bf16.mxu0 0
        %1732 = vmatpush1.bf16.msra.mxu0 0
        %1733 = vmatprep.mubr.bf16.mxu0 0
        %1734 = vmatmul.mubr.bf16.gmra.mrb[0].mxu0 %v1265
        %v1735 = vpop.f32.mrb[0].mxu0
        %v1736 = vadd.f32 %v1349, %v1735
        %v1737 = vpop.f32.mrb[0].mxu0
        %v1738 = vadd.f32 %v1353, %v1737
        %v1739 = vpop.f32.mrb[0].mxu0
        %v1740 = vpop.f32.mrb[0].mxu0
        %1741 = vdwg.mxu0
        %1742 = vmatprep.subr.bf16.mxu0 0
        %1743 = vmatpush1.bf16.msra.mxu0 %v1655
        %1744 = vmatprep.subr.bf16.mxu0 0
        %1745 = vmatpush1.bf16.msra.mxu0 %v1658
        %1746 = vmatprep.subr.bf16.mxu0 0
        %1747 = vmatpush1.bf16.msra.mxu0 %v1661
        %1748 = vmatprep.subr.bf16.mxu0 0
        %1749 = vmatpush1.bf16.msra.mxu0 %v1664
        %1750 = vmatprep.subr.bf16.mxu0 0
        %1751 = vmatpush1.bf16.msra.mxu0 %v1667
        %1752 = vmatprep.subr.bf16.mxu0 0
        %1753 = vmatpush1.bf16.msra.mxu0 %v1670
        %1754 = vmatprep.subr.bf16.mxu0 0
        %1755 = vmatpush1.bf16.msra.mxu0 %v1673
        %1756 = vmatprep.subr.bf16.mxu0 0
        %1757 = vmatpush1.bf16.msra.mxu0 %v1676
        %1758 = vmatprep.subr.bf16.mxu0 0
        %1759 = vmatpush1.bf16.msra.mxu0 0
        %1760 = vmatprep.subr.bf16.mxu0 0
        %1761 = vmatpush1.bf16.msra.mxu0 0
        %1762 = vmatprep.subr.bf16.mxu0 0
        %1763 = vmatpush1.bf16.msra.mxu0 0
        %1764 = vmatprep.subr.bf16.mxu0 0
        %1765 = vmatpush1.bf16.msra.mxu0 0
        %1766 = vmatprep.subr.bf16.mxu0 0
        %1767 = vmatpush1.bf16.msra.mxu0 0
        %1768 = vmatprep.subr.bf16.mxu0 0
        %1769 = vmatpush1.bf16.msra.mxu0 0
        %1770 = vmatprep.subr.bf16.mxu0 0
        %1771 = vmatpush1.bf16.msra.mxu0 0
        %1772 = vmatprep.subr.bf16.mxu0 0
        %1773 = vmatpush1.bf16.msra.mxu0 0
        %1774 = vmatprep.mubr.bf16.mxu0 0
        %1775 = vmatmul.mubr.bf16.gmra.mrb[0].mxu0 %v1265
        %v1776 = vpop.f32.mrb[0].mxu0
        %v1777 = vadd.f32 %v1357, %v1776
        %v1778 = vpop.f32.mrb[0].mxu0
        %v1779 = vpop.f32.mrb[0].mxu0
        %v1780 = vpop.f32.mrb[0].mxu0
        %1781 = vdwg.mxu0
        %v1782 = vmul.f32 %v1527, 0.25
        %v1783 = vmul.f32 %v1736, 0.25
        %v1784 = vpack.c.bf16 %v1782, %v1782
        %v1785 = vpack.c.bf16 %v1783, %v1783
        %v1786 = vpack.c.bf16 %v1529, %v1529
        %v1787 = vpack.c.bf16 %v1738, %v1738
        %v1788 = vpack.c.bf16 %v1568, %v1568
        %v1789 = vpack.c.bf16 %v1777, %v1777
        %1790 = vmatprep.subr.bf16.mxu0 0
        %1791 = vmatpush1.bf16.xpose.msra.mxu0 %v1786
        %1792 = vmatprep.subr.bf16.mxu0 0
        %1793 = vmatpush1.bf16.xpose.msra.mxu0 0
        %1794 = vmatprep.subr.bf16.mxu0 0
        %1795 = vmatpush1.bf16.xpose.msra.mxu0 0
        %1796 = vmatprep.subr.bf16.mxu0 0
        %1797 = vmatpush1.bf16.xpose.msra.mxu0 0
        %1798 = vmatprep.subr.bf16.mxu0 0
        %1799 = vmatpush1.bf16.xpose.msra.mxu0 0
        %1800 = vmatprep.subr.bf16.mxu0 0
        %1801 = vmatpush1.bf16.xpose.msra.mxu0 0
        %1802 = vmatprep.subr.bf16.mxu0 0
        %1803 = vmatpush1.bf16.xpose.msra.mxu0 0
        %1804 = vmatprep.subr.bf16.mxu0 0
        %1805 = vmatpush1.bf16.xpose.msra.mxu0 0
        %1806 = vmatprep.subr.bf16.mxu0 0
        %1807 = vmatpush1.bf16.xpose.msra.mxu0 0
        %1808 = vmatprep.subr.bf16.mxu0 0
        %1809 = vmatpush1.bf16.xpose.msra.mxu0 0
        %1810 = vmatprep.subr.bf16.mxu0 0
        %1811 = vmatpush1.bf16.xpose.msra.mxu0 0
        %1812 = vmatprep.subr.bf16.mxu0 0
        %1813 = vmatpush1.bf16.xpose.msra.mxu0 0
        %1814 = vmatprep.subr.bf16.mxu0 0
        %1815 = vmatpush1.bf16.xpose.msra.mxu0 0
        %1816 = vmatprep.subr.bf16.mxu0 0
        %1817 = vmatpush1.bf16.xpose.msra.mxu0 0
        %1818 = vmatprep.subr.bf16.mxu0 0
        %1819 = vmatpush1.bf16.xpose.msra.mxu0 0
        %1820 = vmatprep.subr.bf16.mxu0 0
        %1821 = vmatpush1.bf16.xpose.msra.mxu0 0
        %1822 = vmatprep.mubr.bf16.mxu0 0
        %1823 = vmatmul.mubr.bf16.gmra.mrb[0].mxu0 %v1784
        %v1824 = vpop.f32.mrb[0].mxu0
        %v1825 = vadd.f32 %v1259, %v1824
        %v1826 = vpop.f32.mrb[0].mxu0
        %v1827 = vpop.f32.mrb[0].mxu0
        %v1828 = vpop.f32.mrb[0].mxu0
        %1829 = vdwg.mxu0
        %1830 = vmatprep.subr.bf16.mxu0 0
        %1831 = vmatpush1.bf16.xpose.msra.mxu0 %v1787
        %1832 = vmatprep.subr.bf16.mxu0 0
        %1833 = vmatpush1.bf16.xpose.msra.mxu0 0
        %1834 = vmatprep.subr.bf16.mxu0 0
        %1835 = vmatpush1.bf16.xpose.msra.mxu0 0
        %1836 = vmatprep.subr.bf16.mxu0 0
        %1837 = vmatpush1.bf16.xpose.msra.mxu0 0
        %1838 = vmatprep.subr.bf16.mxu0 0
        %1839 = vmatpush1.bf16.xpose.msra.mxu0 0
        %1840 = vmatprep.subr.bf16.mxu0 0
        %1841 = vmatpush1.bf16.xpose.msra.mxu0 0
        %1842 = vmatprep.subr.bf16.mxu0 0
        %1843 = vmatpush1.bf16.xpose.msra.mxu0 0
        %1844 = vmatprep.subr.bf16.mxu0 0
        %1845 = vmatpush1.bf16.xpose.msra.mxu0 0
        %1846 = vmatprep.subr.bf16.mxu0 0
        %1847 = vmatpush1.bf16.xpose.msra.mxu0 0
        %1848 = vmatprep.subr.bf16.mxu0 0
        %1849 = vmatpush1.bf16.xpose.msra.mxu0 0
        %1850 = vmatprep.subr.bf16.mxu0 0
        %1851 = vmatpush1.bf16.xpose.msra.mxu0 0
        %1852 = vmatprep.subr.bf16.mxu0 0
        %1853 = vmatpush1.bf16.xpose.msra.mxu0 0
        %1854 = vmatprep.subr.bf16.mxu0 0
        %1855 = vmatpush1.bf16.xpose.msra.mxu0 0
        %1856 = vmatprep.subr.bf16.mxu0 0
        %1857 = vmatpush1.bf16.xpose.msra.mxu0 0
        %1858 = vmatprep.subr.bf16.mxu0 0
        %1859 = vmatpush1.bf16.xpose.msra.mxu0 0
        %1860 = vmatprep.subr.bf16.mxu0 0
        %1861 = vmatpush1.bf16.xpose.msra.mxu0 0
        %1862 = vmatprep.mubr.bf16.mxu0 0
        %1863 = vmatmul.mubr.bf16.gmra.mrb[0].mxu0 %v1785
        %v1864 = vpop.f32.mrb[0].mxu0
        %v1865 = vadd.f32 %v1259, %v1864
        %v1866 = vpop.f32.mrb[0].mxu0
        %v1867 = vpop.f32.mrb[0].mxu0
        %v1868 = vpop.f32.mrb[0].mxu0
        %1869 = vdwg.mxu0
        %vm1870 = vcmask 64512
        %v1871 = vsel %vm1870, %v1825, -inf
        %1872 = vmax.xlane.f32.xlu0 %v1871
        %v1873 = vpop.xlane.xlu0 %1872
        %v1874 = vsel %vm1870, %v1865, -inf
        %1875 = vmax.xlane.f32.xlu0 %v1874
        %v1876 = vpop.xlane.xlu0 %1875
        %v1877 = vsub.f32 %v1825, %v1873
        %v1878 = vsub.f32 %v1865, %v1876
        %v1879 = vmul.f32 %v1877, 1.442695
        %v1880 = vpow.pop %v1879
        %v1881 = vmul.f32 %v1878, 1.442695
        %v1882 = vpow.pop %v1881
        %v1883 = vsel %vm1870, %v1880, 0.0
        %1884 = vadd.xlane.f32.xlu0 %v1883
        %v1885 = vpop.xlane.xlu0 %1884
        %v1886 = vsel %vm1870, %v1882, 0.0
        %1887 = vadd.xlane.f32.xlu0 %v1886
        %v1888 = vpop.xlane.xlu0 %1887
        %v1889 = vrcp.pop %v1885
        %v1890 = vmul.f32 %v1880, %v1889
        %v1891 = vrcp.pop %v1888
        %v1892 = vmul.f32 %v1882, %v1891
        %v1893 = vpack.c.bf16 %v1890, %v1890
        %v1894 = vpack.c.bf16 %v1892, %v1892
        %v1896 = vsel %vm1870, %v1893, 0
        %vm1898 = vcmask 1043456
        %v1900 = vsel %vm1898, %v1788, 0
        %1902 = vmatprep.subr.bf16.mxu0 0
        %1903 = vmatpush1.bf16.msra.mxu0 %v1900
        %1904 = vmatprep.subr.bf16.mxu0 0
        %1905 = vmatpush1.bf16.msra.mxu0 0
        %1906 = vmatprep.subr.bf16.mxu0 0
        %1907 = vmatpush1.bf16.msra.mxu0 0
        %1908 = vmatprep.subr.bf16.mxu0 0
        %1909 = vmatpush1.bf16.msra.mxu0 0
        %1910 = vmatprep.subr.bf16.mxu0 0
        %1911 = vmatpush1.bf16.msra.mxu0 0
        %1912 = vmatprep.subr.bf16.mxu0 0
        %1913 = vmatpush1.bf16.msra.mxu0 0
        %1914 = vmatprep.subr.bf16.mxu0 0
        %1915 = vmatpush1.bf16.msra.mxu0 0
        %1916 = vmatprep.subr.bf16.mxu0 0
        %1917 = vmatpush1.bf16.msra.mxu0 0
        %1918 = vmatprep.subr.bf16.mxu0 0
        %1919 = vmatpush1.bf16.msra.mxu0 0
        %1920 = vmatprep.subr.bf16.mxu0 0
        %1921 = vmatpush1.bf16.msra.mxu0 0
        %1922 = vmatprep.subr.bf16.mxu0 0
        %1923 = vmatpush1.bf16.msra.mxu0 0
        %1924 = vmatprep.subr.bf16.mxu0 0
        %1925 = vmatpush1.bf16.msra.mxu0 0
        %1926 = vmatprep.subr.bf16.mxu0 0
        %1927 = vmatpush1.bf16.msra.mxu0 0
        %1928 = vmatprep.subr.bf16.mxu0 0
        %1929 = vmatpush1.bf16.msra.mxu0 0
        %1930 = vmatprep.subr.bf16.mxu0 0
        %1931 = vmatpush1.bf16.msra.mxu0 0
        %1932 = vmatprep.subr.bf16.mxu0 0
        %1933 = vmatpush1.bf16.msra.mxu0 0
        %1934 = vmatprep.mubr.bf16.mxu0 0
        %1935 = vmatmul.mubr.bf16.gmra.mrb[0].mxu0 %v1896
        %v1936 = vpop.f32.mrb[0].mxu0
        %v1937 = vadd.f32 0.0, %v1936
        %v1938 = vpop.f32.mrb[0].mxu0
        %v1939 = vpop.f32.mrb[0].mxu0
        %v1940 = vpop.f32.mrb[0].mxu0
        %1941 = vdwg.mxu0
        %v1943 = vsel %vm1870, %v1894, 0
        %v1946 = vsel %vm1898, %v1789, 0
        %1948 = vmatprep.subr.bf16.mxu0 0
        %1949 = vmatpush1.bf16.msra.mxu0 %v1946
        %1950 = vmatprep.subr.bf16.mxu0 0
        %1951 = vmatpush1.bf16.msra.mxu0 0
        %1952 = vmatprep.subr.bf16.mxu0 0
        %1953 = vmatpush1.bf16.msra.mxu0 0
        %1954 = vmatprep.subr.bf16.mxu0 0
        %1955 = vmatpush1.bf16.msra.mxu0 0
        %1956 = vmatprep.subr.bf16.mxu0 0
        %1957 = vmatpush1.bf16.msra.mxu0 0
        %1958 = vmatprep.subr.bf16.mxu0 0
        %1959 = vmatpush1.bf16.msra.mxu0 0
        %1960 = vmatprep.subr.bf16.mxu0 0
        %1961 = vmatpush1.bf16.msra.mxu0 0
        %1962 = vmatprep.subr.bf16.mxu0 0
        %1963 = vmatpush1.bf16.msra.mxu0 0
        %1964 = vmatprep.subr.bf16.mxu0 0
        %1965 = vmatpush1.bf16.msra.mxu0 0
        %1966 = vmatprep.subr.bf16.mxu0 0
        %1967 = vmatpush1.bf16.msra.mxu0 0
        %1968 = vmatprep.subr.bf16.mxu0 0
        %1969 = vmatpush1.bf16.msra.mxu0 0
        %1970 = vmatprep.subr.bf16.mxu0 0
        %1971 = vmatpush1.bf16.msra.mxu0 0
        %1972 = vmatprep.subr.bf16.mxu0 0
        %1973 = vmatpush1.bf16.msra.mxu0 0
        %1974 = vmatprep.subr.bf16.mxu0 0
        %1975 = vmatpush1.bf16.msra.mxu0 0
        %1976 = vmatprep.subr.bf16.mxu0 0
        %1977 = vmatpush1.bf16.msra.mxu0 0
        %1978 = vmatprep.subr.bf16.mxu0 0
        %1979 = vmatpush1.bf16.msra.mxu0 0
        %1980 = vmatprep.mubr.bf16.mxu0 0
        %1981 = vmatmul.mubr.bf16.gmra.mrb[0].mxu0 %v1943
        %v1982 = vpop.f32.mrb[0].mxu0
        %v1983 = vadd.f32 0.0, %v1982
        %v1984 = vpop.f32.mrb[0].mxu0
        %v1985 = vpop.f32.mrb[0].mxu0
        %v1986 = vpop.f32.mrb[0].mxu0
        %1987 = vdwg.mxu0
        %v1988 = vpack.c.bf16 %v1937, %v1937
        %v1989 = vpack.c.bf16 %v1983, %v1983
        %v1990 = vld [vmem:[#allocation7] sm:$0xf]
        %v1991 = vld [vmem:[#allocation7 + $0x4] sm:$0xf]
        %v1992 = vld [vmem:[#allocation7 + $0x8] sm:$0xf]
        %v1993 = vld [vmem:[#allocation7 + $0xc] sm:$0xf]
        %v1994 = vld [vmem:[#allocation7 + $0x10] sm:$0xf]
        %v1995 = vld [vmem:[#allocation7 + $0x14] sm:$0xf]
        %v1996 = vld [vmem:[#allocation7 + $0x18] sm:$0xf]
        %v1997 = vld [vmem:[#allocation7 + $0x1c] sm:$0xf]
        %v1998 = vld [vmem:[#allocation7 + $0x20] sm:$0xf]
        %v1999 = vld [vmem:[#allocation7 + $0x24] sm:$0xf]
        %v2000 = vld [vmem:[#allocation7 + $0x28] sm:$0xf]
        %v2001 = vld [vmem:[#allocation7 + $0x2c] sm:$0xf]
        %v2002 = vld [vmem:[#allocation7 + $0x30] sm:$0xf]
        %v2003 = vld [vmem:[#allocation7 + $0x34] sm:$0xf]
        %v2004 = vld [vmem:[#allocation7 + $0x38] sm:$0xf]
        %v2005 = vld [vmem:[#allocation7 + $0x3c] sm:$0xf]
        %v2006 = vld [vmem:[#allocation7 + $0x40] sm:$0xf]
        %v2007 = vld [vmem:[#allocation7 + $0x44] sm:$0xf]
        %v2008 = vld [vmem:[#allocation7 + $0x48] sm:$0xf]
        %v2009 = vld [vmem:[#allocation7 + $0x4c] sm:$0xf]
        %v2010 = vld [vmem:[#allocation7 + $0x50] sm:$0xf]
        %v2011 = vld [vmem:[#allocation7 + $0x54] sm:$0xf]
        %v2012 = vld [vmem:[#allocation7 + $0x58] sm:$0xf]
        %v2013 = vld [vmem:[#allocation7 + $0x5c] sm:$0xf]
        %v2014 = vld [vmem:[#allocation7 + $0x60] sm:$0xf]
        %v2015 = vld [vmem:[#allocation7 + $0x64] sm:$0xf]
        %v2016 = vld [vmem:[#allocation7 + $0x68] sm:$0xf]
        %v2017 = vld [vmem:[#allocation7 + $0x6c] sm:$0xf]
        %v2018 = vld [vmem:[#allocation7 + $0x70] sm:$0xf]
        %v2019 = vld [vmem:[#allocation7 + $0x74] sm:$0xf]
        %v2020 = vld [vmem:[#allocation7 + $0x78] sm:$0xf]
        %v2021 = vld [vmem:[#allocation7 + $0x7c] sm:$0xf]
        %v2038 = vunpack.c.l.b16 %v1990
        %v2039 = vunpack.c.l.b16 %v1991
        %v2040 = vunpack.c.l.b16 %v1992
        %v2041 = vunpack.c.l.b16 %v1993
        %v2042 = vunpack.c.l.b16 %v1994
        %v2043 = vunpack.c.l.b16 %v1995
        %v2044 = vunpack.c.l.b16 %v1996
        %v2045 = vunpack.c.l.b16 %v1997
        %v2046 = vunpack.c.l.b16 %v1998
        %v2047 = vunpack.c.l.b16 %v1999
        %v2048 = vunpack.c.l.b16 %v2000
        %v2049 = vunpack.c.l.b16 %v2001
        %v2050 = vunpack.c.l.b16 %v2002
        %v2051 = vunpack.c.l.b16 %v2003
        %v2052 = vunpack.c.l.b16 %v2004
        %v2053 = vunpack.c.l.b16 %v2005
        %v2054 = vpack.c.b16 %v2039, %v2038
        %v2055 = vpack.c.b16 %v2041, %v2040
        %v2056 = vpack.c.b16 %v2043, %v2042
        %v2057 = vpack.c.b16 %v2045, %v2044
        %v2058 = vpack.c.b16 %v2047, %v2046
        %v2059 = vpack.c.b16 %v2049, %v2048
        %v2060 = vpack.c.b16 %v2051, %v2050
        %v2061 = vpack.c.b16 %v2053, %v2052
        %2070 = vmatprep.subr.bf16.mxu0 0
        %2071 = vmatpush1.bf16.msra.mxu0 %v2054
        %2072 = vmatprep.subr.bf16.mxu0 0
        %2073 = vmatpush1.bf16.msra.mxu0 %v2055
        %2074 = vmatprep.subr.bf16.mxu0 0
        %2075 = vmatpush1.bf16.msra.mxu0 %v2056
        %2076 = vmatprep.subr.bf16.mxu0 0
        %2077 = vmatpush1.bf16.msra.mxu0 %v2057
        %2078 = vmatprep.subr.bf16.mxu0 0
        %2079 = vmatpush1.bf16.msra.mxu0 %v2058
        %2080 = vmatprep.subr.bf16.mxu0 0
        %2081 = vmatpush1.bf16.msra.mxu0 %v2059
        %2082 = vmatprep.subr.bf16.mxu0 0
        %2083 = vmatpush1.bf16.msra.mxu0 %v2060
        %2084 = vmatprep.subr.bf16.mxu0 0
        %2085 = vmatpush1.bf16.msra.mxu0 %v2061
        %2086 = vmatprep.subr.bf16.mxu0 0
        %2087 = vmatpush1.bf16.msra.mxu0 0
        %2088 = vmatprep.subr.bf16.mxu0 0
        %2089 = vmatpush1.bf16.msra.mxu0 0
        %2090 = vmatprep.subr.bf16.mxu0 0
        %2091 = vmatpush1.bf16.msra.mxu0 0
        %2092 = vmatprep.subr.bf16.mxu0 0
        %2093 = vmatpush1.bf16.msra.mxu0 0
        %2094 = vmatprep.subr.bf16.mxu0 0
        %2095 = vmatpush1.bf16.msra.mxu0 0
        %2096 = vmatprep.subr.bf16.mxu0 0
        %2097 = vmatpush1.bf16.msra.mxu0 0
        %2098 = vmatprep.subr.bf16.mxu0 0
        %2099 = vmatpush1.bf16.msra.mxu0 0
        %2100 = vmatprep.subr.bf16.mxu0 0
        %2101 = vmatpush1.bf16.msra.mxu0 0
        %2102 = vmatprep.mubr.bf16.mxu0 0
        %2103 = vmatmul.mubr.bf16.gmra.mrb[0].mxu0 %v1988
        %v2104 = vpop.f32.mrb[0].mxu0
        %v2105 = vadd.f32 0.0, %v2104
        %v2106 = vpop.f32.mrb[0].mxu0
        %v2107 = vpop.f32.mrb[0].mxu0
        %v2108 = vpop.f32.mrb[0].mxu0
        %2109 = vdwg.mxu0
        %v2126 = vunpack.c.l.b16 %v2006
        %v2127 = vunpack.c.l.b16 %v2007
        %v2128 = vunpack.c.l.b16 %v2008
        %v2129 = vunpack.c.l.b16 %v2009
        %v2130 = vunpack.c.l.b16 %v2010
        %v2131 = vunpack.c.l.b16 %v2011
        %v2132 = vunpack.c.l.b16 %v2012
        %v2133 = vunpack.c.l.b16 %v2013
        %v2134 = vunpack.c.l.b16 %v2014
        %v2135 = vunpack.c.l.b16 %v2015
        %v2136 = vunpack.c.l.b16 %v2016
        %v2137 = vunpack.c.l.b16 %v2017
        %v2138 = vunpack.c.l.b16 %v2018
        %v2139 = vunpack.c.l.b16 %v2019
        %v2140 = vunpack.c.l.b16 %v2020
        %v2141 = vunpack.c.l.b16 %v2021
        %v2142 = vpack.c.b16 %v2127, %v2126
        %v2143 = vpack.c.b16 %v2129, %v2128
        %v2144 = vpack.c.b16 %v2131, %v2130
        %v2145 = vpack.c.b16 %v2133, %v2132
        %v2146 = vpack.c.b16 %v2135, %v2134
        %v2147 = vpack.c.b16 %v2137, %v2136
        %v2148 = vpack.c.b16 %v2139, %v2138
        %v2149 = vpack.c.b16 %v2141, %v2140
        %2158 = vmatprep.subr.bf16.mxu0 0
        %2159 = vmatpush1.bf16.msra.mxu0 %v2142
        %2160 = vmatprep.subr.bf16.mxu0 0
        %2161 = vmatpush1.bf16.msra.mxu0 %v2143
        %2162 = vmatprep.subr.bf16.mxu0 0
        %2163 = vmatpush1.bf16.msra.mxu0 %v2144
        %2164 = vmatprep.subr.bf16.mxu0 0
        %2165 = vmatpush1.bf16.msra.mxu0 %v2145
        %2166 = vmatprep.subr.bf16.mxu0 0
        %2167 = vmatpush1.bf16.msra.mxu0 %v2146
        %2168 = vmatprep.subr.bf16.mxu0 0
        %2169 = vmatpush1.bf16.msra.mxu0 %v2147
        %2170 = vmatprep.subr.bf16.mxu0 0
        %2171 = vmatpush1.bf16.msra.mxu0 %v2148
        %2172 = vmatprep.subr.bf16.mxu0 0
        %2173 = vmatpush1.bf16.msra.mxu0 %v2149
        %2174 = vmatprep.subr.bf16.mxu0 0
        %2175 = vmatpush1.bf16.msra.mxu0 0
        %2176 = vmatprep.subr.bf16.mxu0 0
        %2177 = vmatpush1.bf16.msra.mxu0 0
        %2178 = vmatprep.subr.bf16.mxu0 0
        %2179 = vmatpush1.bf16.msra.mxu0 0
        %2180 = vmatprep.subr.bf16.mxu0 0
        %2181 = vmatpush1.bf16.msra.mxu0 0
        %2182 = vmatprep.subr.bf16.mxu0 0
        %2183 = vmatpush1.bf16.msra.mxu0 0
        %2184 = vmatprep.subr.bf16.mxu0 0
        %2185 = vmatpush1.bf16.msra.mxu0 0
        %2186 = vmatprep.subr.bf16.mxu0 0
        %2187 = vmatpush1.bf16.msra.mxu0 0
        %2188 = vmatprep.subr.bf16.mxu0 0
        %2189 = vmatpush1.bf16.msra.mxu0 0
        %2190 = vmatprep.mubr.bf16.mxu0 0
        %2191 = vmatmul.mubr.bf16.gmra.mrb[0].mxu0 %v1989
        %v2192 = vpop.f32.mrb[0].mxu0
        %v2193 = vadd.f32 0.0, %v2192
        %v2194 = vpop.f32.mrb[0].mxu0
        %v2195 = vpop.f32.mrb[0].mxu0
        %v2196 = vpop.f32.mrb[0].mxu0
        %2197 = vdwg.mxu0
        %v2198 = vadd.f32 %v2105, %v2193
        %v2199 = vadd.f32 %v1264, %v2198
        %v2200 = vld [vmem:[#allocation9] sm:$0x1]
        %v2202 = vlaneseq
        %v2203 = vshrl.u32 %v2202, 7
        %v2204 = vsub.s32 0, %v2203
        %v2205 = vrot.slane %v2200, %v2204
        %v2207 = vadd.f32 %v2199, %v2205
        %2208 = vadd.xlane.f32.xlu0 %v2207
        %v2209 = vpop.xlane.xlu0 %2208
        %v2210 = vmul.f32 %v2209, 0.03125
        %v2211 = vmul.f32 %v2207, %v2207
        %2212 = vadd.xlane.f32.xlu0 %v2211
        %v2213 = vpop.xlane.xlu0 %2212
        %v2214 = vmul.f32 %v2213, 0.03125
        %v2215 = vmul.f32 %v2210, %v2210
        %v2216 = vsub.f32 %v2214, %v2215
        %v2217 = vsub.f32 %v2207, %v2210
        %v2218 = vadd.f32 %v2216, 1e-05
        %v2219 = vrsqrt.pop %v2218
        %v2220 = vmul.f32 %v2217, %v2219
        %v2221 = vld [vmem:[#allocation10] sm:$0x1]
        %v2223 = vlaneseq
        %v2224 = vshrl.u32 %v2223, 7
        %v2225 = vsub.s32 0, %v2224
        %v2226 = vrot.slane %v2221, %v2225
        %v2228 = vmul.f32 %v2220, %v2226
        %v2229 = vld [vmem:[#allocation12] sm:$0x1]
        %v2231 = vlaneseq
        %v2232 = vshrl.u32 %v2231, 7
        %v2233 = vsub.s32 0, %v2232
        %v2234 = vrot.slane %v2229, %v2233
        %v2236 = vadd.f32 %v2228, %v2234
        %v2237 = vpack.c.bf16 %v2236, %v2236
        %v2238 = vld [vmem:[#allocation13] sm:$0xff]
        %v2239 = vld [vmem:[#allocation13 + $0x8] sm:$0xff]
        %v2240 = vld [vmem:[#allocation13 + $0x10] sm:$0xff]
        %v2241 = vld [vmem:[#allocation13 + $0x18] sm:$0xff]
        %v2242 = vld [vmem:[#allocation13 + $0x20] sm:$0xff]
        %v2243 = vld [vmem:[#allocation13 + $0x28] sm:$0xff]
        %v2244 = vld [vmem:[#allocation13 + $0x30] sm:$0xff]
        %v2245 = vld [vmem:[#allocation13 + $0x38] sm:$0xff]
        %v2246 = vld [vmem:[#allocation13 + $0x40] sm:$0xff]
        %v2247 = vld [vmem:[#allocation13 + $0x48] sm:$0xff]
        %v2248 = vld [vmem:[#allocation13 + $0x50] sm:$0xff]
        %v2249 = vld [vmem:[#allocation13 + $0x58] sm:$0xff]
        %v2250 = vld [vmem:[#allocation13 + $0x60] sm:$0xff]
        %v2251 = vld [vmem:[#allocation13 + $0x68] sm:$0xff]
        %v2252 = vld [vmem:[#allocation13 + $0x70] sm:$0xff]
        %v2253 = vld [vmem:[#allocation13 + $0x78] sm:$0xff]
        %v2254 = vld [vmem:[#allocation15] sm:$0x3]
        %v2256 = vlaneseq
        %v2257 = vshrl.u32 %v2256, 7
        %v2258 = vsub.s32 0, %v2257
        %v2259 = vrot.slane %v2254, %v2258
        %v2260 = vlaneseq
        %v2261 = vshrl.u32 %v2260, 7
        %v2262 = vsub.s32 1, %v2261
        %v2263 = vrot.slane %v2254, %v2262
        %v2282 = vunpack.c.l.b16 %v2238
        %v2283 = vunpack.c.h.b16 %v2238
        %v2284 = vunpack.c.l.b16 %v2239
        %v2285 = vunpack.c.h.b16 %v2239
        %v2286 = vunpack.c.l.b16 %v2240
        %v2287 = vunpack.c.h.b16 %v2240
        %v2288 = vunpack.c.l.b16 %v2241
        %v2289 = vunpack.c.h.b16 %v2241
        %v2290 = vunpack.c.l.b16 %v2242
        %v2291 = vunpack.c.h.b16 %v2242
        %v2292 = vunpack.c.l.b16 %v2243
        %v2293 = vunpack.c.h.b16 %v2243
        %v2294 = vunpack.c.l.b16 %v2244
        %v2295 = vunpack.c.h.b16 %v2244
        %v2296 = vunpack.c.l.b16 %v2245
        %v2297 = vunpack.c.h.b16 %v2245
        %v2298 = vunpack.c.l.b16 %v2246
        %v2299 = vunpack.c.h.b16 %v2246
        %v2300 = vunpack.c.l.b16 %v2247
        %v2301 = vunpack.c.h.b16 %v2247
        %v2302 = vunpack.c.l.b16 %v2248
        %v2303 = vunpack.c.h.b16 %v2248
        %v2304 = vunpack.c.l.b16 %v2249
        %v2305 = vunpack.c.h.b16 %v2249
        %v2306 = vunpack.c.l.b16 %v2250
        %v2307 = vunpack.c.h.b16 %v2250
        %v2308 = vunpack.c.l.b16 %v2251
        %v2309 = vunpack.c.h.b16 %v2251
        %v2310 = vunpack.c.l.b16 %v2252
        %v2311 = vunpack.c.h.b16 %v2252
        %v2312 = vunpack.c.l.b16 %v2253
        %v2313 = vunpack.c.h.b16 %v2253
        %v2314 = vpack.c.b16 %v2284, %v2282
        %v2315 = vpack.c.b16 %v2285, %v2283
        %v2316 = vpack.c.b16 %v2288, %v2286
        %v2317 = vpack.c.b16 %v2289, %v2287
        %v2318 = vpack.c.b16 %v2292, %v2290
        %v2319 = vpack.c.b16 %v2293, %v2291
        %v2320 = vpack.c.b16 %v2296, %v2294
        %v2321 = vpack.c.b16 %v2297, %v2295
        %v2322 = vpack.c.b16 %v2300, %v2298
        %v2323 = vpack.c.b16 %v2301, %v2299
        %v2324 = vpack.c.b16 %v2304, %v2302
        %v2325 = vpack.c.b16 %v2305, %v2303
        %v2326 = vpack.c.b16 %v2308, %v2306
        %v2327 = vpack.c.b16 %v2309, %v2307
        %v2328 = vpack.c.b16 %v2312, %v2310
        %v2329 = vpack.c.b16 %v2313, %v2311
        %2346 = vmatprep.subr.bf16.mxu0 %v2315
        %2347 = vmatpush1.bf16.msra.mxu0 %v2314
        %2348 = vmatprep.subr.bf16.mxu0 %v2317
        %2349 = vmatpush1.bf16.msra.mxu0 %v2316
        %2350 = vmatprep.subr.bf16.mxu0 %v2319
        %2351 = vmatpush1.bf16.msra.mxu0 %v2318
        %2352 = vmatprep.subr.bf16.mxu0 %v2321
        %2353 = vmatpush1.bf16.msra.mxu0 %v2320
        %2354 = vmatprep.subr.bf16.mxu0 %v2323
        %2355 = vmatpush1.bf16.msra.mxu0 %v2322
        %2356 = vmatprep.subr.bf16.mxu0 %v2325
        %2357 = vmatpush1.bf16.msra.mxu0 %v2324
        %2358 = vmatprep.subr.bf16.mxu0 %v2327
        %2359 = vmatpush1.bf16.msra.mxu0 %v2326
        %2360 = vmatprep.subr.bf16.mxu0 %v2329
        %2361 = vmatpush1.bf16.msra.mxu0 %v2328
        %2362 = vmatprep.subr.bf16.mxu0 0
        %2363 = vmatpush1.bf16.msra.mxu0 0
        %2364 = vmatprep.subr.bf16.mxu0 0
        %2365 = vmatpush1.bf16.msra.mxu0 0
        %2366 = vmatprep.subr.bf16.mxu0 0
        %2367 = vmatpush1.bf16.msra.mxu0 0
        %2368 = vmatprep.subr.bf16.mxu0 0
        %2369 = vmatpush1.bf16.msra.mxu0 0
        %2370 = vmatprep.subr.bf16.mxu0 0
        %2371 = vmatpush1.bf16.msra.mxu0 0
        %2372 = vmatprep.subr.bf16.mxu0 0
        %2373 = vmatpush1.bf16.msra.mxu0 0
        %2374 = vmatprep.subr.bf16.mxu0 0
        %2375 = vmatpush1.bf16.msra.mxu0 0
        %2376 = vmatprep.subr.bf16.mxu0 0
        %2377 = vmatpush1.bf16.msra.mxu0 0
        %2378 = vmatprep.mubr.bf16.mxu0 0
        %2379 = vmatmul.mubr.bf16.gmra.mrb[0].mxu0 %v2237
        %v2380 = vpop.f32.mrb[0].mxu0
        %v2381 = vadd.f32 %v2259, %v2380
        %v2382 = vpop.f32.mrb[0].mxu0
        %v2383 = vadd.f32 %v2263, %v2382
        %v2384 = vpop.f32.mrb[0].mxu0
        %v2385 = vpop.f32.mrb[0].mxu0
        %2386 = vdwg.mxu0
        %v2387 = vmax.f32 %v2381, 0.0
        %v2388 = vmax.f32 %v2383, 0.0
        %v2389 = vpack.c.bf16 %v2387, %v2387
        %v2390 = vpack.c.bf16 %v2388, %v2388
        %v2391 = vld [vmem:[#allocation16] sm:$0xf]
        %v2392 = vld [vmem:[#allocation16 + $0x4] sm:$0xf]
        %v2393 = vld [vmem:[#allocation16 + $0x8] sm:$0xf]
        %v2394 = vld [vmem:[#allocation16 + $0xc] sm:$0xf]
        %v2395 = vld [vmem:[#allocation16 + $0x10] sm:$0xf]
        %v2396 = vld [vmem:[#allocation16 + $0x14] sm:$0xf]
        %v2397 = vld [vmem:[#allocation16 + $0x18] sm:$0xf]
        %v2398 = vld [vmem:[#allocation16 + $0x1c] sm:$0xf]
        %v2399 = vld [vmem:[#allocation16 + $0x20] sm:$0xf]
        %v2400 = vld [vmem:[#allocation16 + $0x24] sm:$0xf]
        %v2401 = vld [vmem:[#allocation16 + $0x28] sm:$0xf]
        %v2402 = vld [vmem:[#allocation16 + $0x2c] sm:$0xf]
        %v2403 = vld [vmem:[#allocation16 + $0x30] sm:$0xf]
        %v2404 = vld [vmem:[#allocation16 + $0x34] sm:$0xf]
        %v2405 = vld [vmem:[#allocation16 + $0x38] sm:$0xf]
        %v2406 = vld [vmem:[#allocation16 + $0x3c] sm:$0xf]
        %v2407 = vld [vmem:[#allocation16 + $0x40] sm:$0xf]
        %v2408 = vld [vmem:[#allocation16 + $0x44] sm:$0xf]
        %v2409 = vld [vmem:[#allocation16 + $0x48] sm:$0xf]
        %v2410 = vld [vmem:[#allocation16 + $0x4c] sm:$0xf]
        %v2411 = vld [vmem:[#allocation16 + $0x50] sm:$0xf]
        %v2412 = vld [vmem:[#allocation16 + $0x54] sm:$0xf]
        %v2413 = vld [vmem:[#allocation16 + $0x58] sm:$0xf]
        %v2414 = vld [vmem:[#allocation16 + $0x5c] sm:$0xf]
        %v2415 = vld [vmem:[#allocation16 + $0x60] sm:$0xf]
        %v2416 = vld [vmem:[#allocation16 + $0x64] sm:$0xf]
        %v2417 = vld [vmem:[#allocation16 + $0x68] sm:$0xf]
        %v2418 = vld [vmem:[#allocation16 + $0x6c] sm:$0xf]
        %v2419 = vld [vmem:[#allocation16 + $0x70] sm:$0xf]
        %v2420 = vld [vmem:[#allocation16 + $0x74] sm:$0xf]
        %v2421 = vld [vmem:[#allocation16 + $0x78] sm:$0xf]
        %v2422 = vld [vmem:[#allocation16 + $0x7c] sm:$0xf]
        %v2423 = vld [vmem:[#allocation18] sm:$0x1]
        %v2425 = vlaneseq
        %v2426 = vshrl.u32 %v2425, 7
        %v2427 = vsub.s32 0, %v2426
        %v2428 = vrot.slane %v2423, %v2427
        %v2462 = vunpack.c.l.b16 %v2391
        %v2463 = vunpack.c.l.b16 %v2392
        %v2464 = vunpack.c.l.b16 %v2393
        %v2465 = vunpack.c.l.b16 %v2394
        %v2466 = vunpack.c.l.b16 %v2395
        %v2467 = vunpack.c.l.b16 %v2396
        %v2468 = vunpack.c.l.b16 %v2397
        %v2469 = vunpack.c.l.b16 %v2398
        %v2470 = vunpack.c.l.b16 %v2399
        %v2471 = vunpack.c.l.b16 %v2400
        %v2472 = vunpack.c.l.b16 %v2401
        %v2473 = vunpack.c.l.b16 %v2402
        %v2474 = vunpack.c.l.b16 %v2403
        %v2475 = vunpack.c.l.b16 %v2404
        %v2476 = vunpack.c.l.b16 %v2405
        %v2477 = vunpack.c.l.b16 %v2406
        %v2478 = vunpack.c.l.b16 %v2407
        %v2479 = vunpack.c.l.b16 %v2408
        %v2480 = vunpack.c.l.b16 %v2409
        %v2481 = vunpack.c.l.b16 %v2410
        %v2482 = vunpack.c.l.b16 %v2411
        %v2483 = vunpack.c.l.b16 %v2412
        %v2484 = vunpack.c.l.b16 %v2413
        %v2485 = vunpack.c.l.b16 %v2414
        %v2486 = vunpack.c.l.b16 %v2415
        %v2487 = vunpack.c.l.b16 %v2416
        %v2488 = vunpack.c.l.b16 %v2417
        %v2489 = vunpack.c.l.b16 %v2418
        %v2490 = vunpack.c.l.b16 %v2419
        %v2491 = vunpack.c.l.b16 %v2420
        %v2492 = vunpack.c.l.b16 %v2421
        %v2493 = vunpack.c.l.b16 %v2422
        %v2494 = vpack.c.b16 %v2463, %v2462
        %v2495 = vpack.c.b16 %v2465, %v2464
        %v2496 = vpack.c.b16 %v2467, %v2466
        %v2497 = vpack.c.b16 %v2469, %v2468
        %v2498 = vpack.c.b16 %v2471, %v2470
        %v2499 = vpack.c.b16 %v2473, %v2472
        %v2500 = vpack.c.b16 %v2475, %v2474
        %v2501 = vpack.c.b16 %v2477, %v2476
        %v2502 = vpack.c.b16 %v2479, %v2478
        %v2503 = vpack.c.b16 %v2481, %v2480
        %v2504 = vpack.c.b16 %v2483, %v2482
        %v2505 = vpack.c.b16 %v2485, %v2484
        %v2506 = vpack.c.b16 %v2487, %v2486
        %v2507 = vpack.c.b16 %v2489, %v2488
        %v2508 = vpack.c.b16 %v2491, %v2490
        %v2509 = vpack.c.b16 %v2493, %v2492
        %2526 = vmatprep.subr.bf16.mxu0 0
        %2527 = vmatpush1.bf16.msra.mxu0 %v2494
        %2528 = vmatprep.subr.bf16.mxu0 0
        %2529 = vmatpush1.bf16.msra.mxu0 %v2495
        %2530 = vmatprep.subr.bf16.mxu0 0
        %2531 = vmatpush1.bf16.msra.mxu0 %v2496
        %2532 = vmatprep.subr.bf16.mxu0 0
        %2533 = vmatpush1.bf16.msra.mxu0 %v2497
        %2534 = vmatprep.subr.bf16.mxu0 0
        %2535 = vmatpush1.bf16.msra.mxu0 %v2498
        %2536 = vmatprep.subr.bf16.mxu0 0
        %2537 = vmatpush1.bf16.msra.mxu0 %v2499
        %2538 = vmatprep.subr.bf16.mxu0 0
        %2539 = vmatpush1.bf16.msra.mxu0 %v2500
        %2540 = vmatprep.subr.bf16.mxu0 0
        %2541 = vmatpush1.bf16.msra.mxu0 %v2501
        %2542 = vmatprep.subr.bf16.mxu0 0
        %2543 = vmatpush1.bf16.msra.mxu0 %v2502
        %2544 = vmatprep.subr.bf16.mxu0 0
        %2545 = vmatpush1.bf16.msra.mxu0 %v2503
        %2546 = vmatprep.subr.bf16.mxu0 0
        %2547 = vmatpush1.bf16.msra.mxu0 %v2504
        %2548 = vmatprep.subr.bf16.mxu0 0
        %2549 = vmatpush1.bf16.msra.mxu0 %v2505
        %2550 = vmatprep.subr.bf16.mxu0 0
        %2551 = vmatpush1.bf16.msra.mxu0 %v2506
        %2552 = vmatprep.subr.bf16.mxu0 0
        %2553 = vmatpush1.bf16.msra.mxu0 %v2507
        %2554 = vmatprep.subr.bf16.mxu0 0
        %2555 = vmatpush1.bf16.msra.mxu0 %v2508
        %2556 = vmatprep.subr.bf16.mxu0 0
        %2557 = vmatpush1.bf16.msra.mxu0 %v2509
        %2558 = vmatprep.mubr.bf16.mxu0 %v2390
        %2559 = vmatmul.mubr.bf16.gmra.mrb[0].mxu0 %v2389
        %v2560 = vpop.f32.mrb[0].mxu0
        %v2561 = vadd.f32 %v2428, %v2560
        %v2562 = vpop.f32.mrb[0].mxu0
        %v2563 = vpop.f32.mrb[0].mxu0
        %v2564 = vpop.f32.mrb[0].mxu0
        %2565 = vdwg.mxu0
        %v2566 = vadd.f32 %v2236, %v2561
        %2567 = vadd.xlane.f32.xlu0 %v2566
        %v2568 = vpop.xlane.xlu0 %2567
        %v2569 = vmul.f32 %v2568, 0.03125
        %v2570 = vmul.f32 %v2566, %v2566
        %2571 = vadd.xlane.f32.xlu0 %v2570
        %v2572 = vpop.xlane.xlu0 %2571
        %v2573 = vmul.f32 %v2572, 0.03125
        %v2574 = vmul.f32 %v2569, %v2569
        %v2575 = vsub.f32 %v2573, %v2574
        %v2576 = vsub.f32 %v2566, %v2569
        %v2577 = vadd.f32 %v2575, 1e-05
        %v2578 = vrsqrt.pop %v2577
        %v2579 = vmul.f32 %v2576, %v2578
        %v2580 = vld [vmem:[#allocation19] sm:$0x1]
        %v2582 = vlaneseq
        %v2583 = vshrl.u32 %v2582, 7
        %v2584 = vsub.s32 0, %v2583
        %v2585 = vrot.slane %v2580, %v2584
        %v2587 = vmul.f32 %v2579, %v2585
        %v2588 = vld [vmem:[#allocation21] sm:$0x1]
        %v2590 = vlaneseq
        %v2591 = vshrl.u32 %v2590, 7
        %v2592 = vsub.s32 0, %v2591
        %v2593 = vrot.slane %v2588, %v2592
        %v2595 = vadd.f32 %v2587, %v2593
        %v2596 = vpack.c.bf16 %v2595, %v2595
        %v2597 = vld [vmem:[#allocation22] sm:$0xff]
        %v2598 = vld [vmem:[#allocation22 + $0x8] sm:$0xf]
        %v2599 = vld [vmem:[#allocation22 + $0xc] sm:$0xff]
        %v2600 = vld [vmem:[#allocation22 + $0x14] sm:$0xf]
        %v2601 = vld [vmem:[#allocation22 + $0x18] sm:$0xff]
        %v2602 = vld [vmem:[#allocation22 + $0x20] sm:$0xf]
        %v2603 = vld [vmem:[#allocation22 + $0x24] sm:$0xff]
        %v2604 = vld [vmem:[#allocation22 + $0x2c] sm:$0xf]
        %v2605 = vld [vmem:[#allocation22 + $0x30] sm:$0xff]
        %v2606 = vld [vmem:[#allocation22 + $0x38] sm:$0xf]
        %v2607 = vld [vmem:[#allocation22 + $0x3c] sm:$0xff]
        %v2608 = vld [vmem:[#allocation22 + $0x44] sm:$0xf]
        %v2609 = vld [vmem:[#allocation22 + $0x48] sm:$0xff]
        %v2610 = vld [vmem:[#allocation22 + $0x50] sm:$0xf]
        %v2611 = vld [vmem:[#allocation22 + $0x54] sm:$0xff]
        %v2612 = vld [vmem:[#allocation22 + $0x5c] sm:$0xf]
        %v2613 = vld [vmem:[#allocation22 + $0x60] sm:$0xff]
        %v2614 = vld [vmem:[#allocation22 + $0x68] sm:$0xf]
        %v2615 = vld [vmem:[#allocation22 + $0x6c] sm:$0xff]
        %v2616 = vld [vmem:[#allocation22 + $0x74] sm:$0xf]
        %v2617 = vld [vmem:[#allocation22 + $0x78] sm:$0xff]
        %v2618 = vld [vmem:[#allocation22 + $0x80] sm:$0xf]
        %v2619 = vld [vmem:[#allocation22 + $0x84] sm:$0xff]
        %v2620 = vld [vmem:[#allocation22 + $0x8c] sm:$0xf]
        %v2621 = vld [vmem:[#allocation22 + $0x90] sm:$0xff]
        %v2622 = vld [vmem:[#allocation22 + $0x98] sm:$0xf]
        %v2623 = vld [vmem:[#allocation22 + $0x9c] sm:$0xff]
        %v2624 = vld [vmem:[#allocation22 + $0xa4] sm:$0xf]
        %v2625 = vld [vmem:[#allocation22 + $0xa8] sm:$0xff]
        %v2626 = vld [vmem:[#allocation22 + $0xb0] sm:$0xf]
        %v2627 = vld [vmem:[#allocation22 + $0xb4] sm:$0xff]
        %v2628 = vld [vmem:[#allocation22 + $0xbc] sm:$0xf]
        %v2629 = vld [vmem:[#allocation22 + $0xc0] sm:$0xff]
        %v2630 = vld [vmem:[#allocation22 + $0xc8] sm:$0xf]
        %v2631 = vld [vmem:[#allocation22 + $0xcc] sm:$0xff]
        %v2632 = vld [vmem:[#allocation22 + $0xd4] sm:$0xf]
        %v2633 = vld [vmem:[#allocation22 + $0xd8] sm:$0xff]
        %v2634 = vld [vmem:[#allocation22 + $0xe0] sm:$0xf]
        %v2635 = vld [vmem:[#allocation22 + $0xe4] sm:$0xff]
        %v2636 = vld [vmem:[#allocation22 + $0xec] sm:$0xf]
        %v2637 = vld [vmem:[#allocation22 + $0xf0] sm:$0xff]
        %v2638 = vld [vmem:[#allocation22 + $0xf8] sm:$0xf]
        %v2639 = vld [vmem:[#allocation22 + $0xfc] sm:$0xff]
        %v2640 = vld [vmem:[#allocation22 + $0x104] sm:$0xf]
        %v2641 = vld [vmem:[#allocation22 + $0x108] sm:$0xff]
        %v2642 = vld [vmem:[#allocation22 + $0x110] sm:$0xf]
        %v2643 = vld [vmem:[#allocation22 + $0x114] sm:$0xff]
        %v2644 = vld [vmem:[#allocation22 + $0x11c] sm:$0xf]
        %v2645 = vld [vmem:[#allocation22 + $0x120] sm:$0xff]
        %v2646 = vld [vmem:[#allocation22 + $0x128] sm:$0xf]
        %v2647 = vld [vmem:[#allocation22 + $0x12c] sm:$0xff]
        %v2648 = vld [vmem:[#allocation22 + $0x134] sm:$0xf]
        %v2649 = vld [vmem:[#allocation22 + $0x138] sm:$0xff]
        %v2650 = vld [vmem:[#allocation22 + $0x140] sm:$0xf]
        %v2651 = vld [vmem:[#allocation22 + $0x144] sm:$0xff]
        %v2652 = vld [vmem:[#allocation22 + $0x14c] sm:$0xf]
        %v2653 = vld [vmem:[#allocation22 + $0x150] sm:$0xff]
        %v2654 = vld [vmem:[#allocation22 + $0x158] sm:$0xf]
        %v2655 = vld [vmem:[#allocation22 + $0x15c] sm:$0xff]
        %v2656 = vld [vmem:[#allocation22 + $0x164] sm:$0xf]
        %v2657 = vld [vmem:[#allocation22 + $0x168] sm:$0xff]
        %v2658 = vld [vmem:[#allocation22 + $0x170] sm:$0xf]
        %v2659 = vld [vmem:[#allocation22 + $0x174] sm:$0xff]
        %v2660 = vld [vmem:[#allocation22 + $0x17c] sm:$0xf]
        %v2661 = vld [vmem:[#allocation24] sm:$0x7]
        %v2662 = vld [vmem:[#allocation24 + $0x3] sm:$0x7]
        %v2665 = vlaneseq
        %v2666 = vshrl.u32 %v2665, 7
        %v2667 = vsub.s32 0, %v2666
        %v2668 = vrot.slane %v2661, %v2667
        %v2669 = vlaneseq
        %v2670 = vshrl.u32 %v2669, 7
        %v2671 = vsub.s32 1, %v2670
        %v2672 = vrot.slane %v2661, %v2671
        %v2673 = vlaneseq
        %v2674 = vshrl.u32 %v2673, 7
        %v2675 = vsub.s32 2, %v2674
        %v2676 = vrot.slane %v2661, %v2675
        %v2677 = vlaneseq
        %v2678 = vshrl.u32 %v2677, 7
        %v2679 = vsub.s32 0, %v2678
        %v2680 = vrot.slane %v2662, %v2679
        %v2681 = vlaneseq
        %v2682 = vshrl.u32 %v2681, 7
        %v2683 = vsub.s32 1, %v2682
        %v2684 = vrot.slane %v2662, %v2683
        %v2685 = vlaneseq
        %v2686 = vshrl.u32 %v2685, 7
        %v2687 = vsub.s32 2, %v2686
        %v2688 = vrot.slane %v2662, %v2687
        %v2727 = vunpack.c.l.b16 %v2597
        %v2728 = vunpack.c.h.b16 %v2597
        %v2729 = vunpack.c.l.b16 %v2598
        %v2730 = vunpack.c.l.b16 %v2599
        %v2731 = vunpack.c.h.b16 %v2599
        %v2732 = vunpack.c.l.b16 %v2600
        %v2733 = vunpack.c.l.b16 %v2601
        %v2734 = vunpack.c.h.b16 %v2601
        %v2735 = vunpack.c.l.b16 %v2602
        %v2736 = vunpack.c.l.b16 %v2603
        %v2737 = vunpack.c.h.b16 %v2603
        %v2738 = vunpack.c.l.b16 %v2604
        %v2739 = vunpack.c.l.b16 %v2605
        %v2740 = vunpack.c.h.b16 %v2605
        %v2741 = vunpack.c.l.b16 %v2606
        %v2742 = vunpack.c.l.b16 %v2607
        %v2743 = vunpack.c.h.b16 %v2607
        %v2744 = vunpack.c.l.b16 %v2608
        %v2745 = vunpack.c.l.b16 %v2609
        %v2746 = vunpack.c.h.b16 %v2609
        %v2747 = vunpack.c.l.b16 %v2610
        %v2748 = vunpack.c.l.b16 %v2611
        %v2749 = vunpack.c.h.b16 %v2611
        %v2750 = vunpack.c.l.b16 %v2612
        %v2751 = vunpack.c.l.b16 %v2613
        %v2752 = vunpack.c.h.b16 %v2613
        %v2753 = vunpack.c.l.b16 %v2614
        %v2754 = vunpack.c.l.b16 %v2615
        %v2755 = vunpack.c.h.b16 %v2615
        %v2756 = vunpack.c.l.b16 %v2616
        %v2757 = vunpack.c.l.b16 %v2617
        %v2758 = vunpack.c.h.b16 %v2617
        %v2759 = vunpack.c.l.b16 %v2618
        %v2760 = vunpack.c.l.b16 %v2619
        %v2761 = vunpack.c.h.b16 %v2619
        %v2762 = vunpack.c.l.b16 %v2620
        %v2763 = vunpack.c.l.b16 %v2621
        %v2764 = vunpack.c.h.b16 %v2621
        %v2765 = vunpack.c.l.b16 %v2622
        %v2766 = vunpack.c.l.b16 %v2623
        %v2767 = vunpack.c.h.b16 %v2623
        %v2768 = vunpack.c.l.b16 %v2624
        %v2769 = vunpack.c.l.b16 %v2625
        %v2770 = vunpack.c.h.b16 %v2625
        %v2771 = vunpack.c.l.b16 %v2626
        %v2772 = vunpack.c.l.b16 %v2627
        %v2773 = vunpack.c.h.b16 %v2627
        %v2774 = vunpack.c.l.b16 %v2628
        %v2775 = vpack.c.b16 %v2730, %v2727
        %v2776 = vpack.c.b16 %v2731, %v2728
        %v2777 = vpack.c.b16 %v2732, %v2729
        %v2778 = vpack.c.b16 %v2736, %v2733
        %v2779 = vpack.c.b16 %v2737, %v2734
        %v2780 = vpack.c.b16 %v2738, %v2735
        %v2781 = vpack.c.b16 %v2742, %v2739
        %v2782 = vpack.c.b16 %v2743, %v2740
        %v2783 = vpack.c.b16 %v2744, %v2741
        %v2784 = vpack.c.b16 %v2748, %v2745
        %v2785 = vpack.c.b16 %v2749, %v2746
        %v2786 = vpack.c.b16 %v2750, %v2747
        %v2787 = vpack.c.b16 %v2754, %v2751
        %v2788 = vpack.c.b16 %v2755, %v2752
        %v2789 = vpack.c.b16 %v2756, %v2753
        %v2790 = vpack.c.b16 %v2760, %v2757
        %v2791 = vpack.c.b16 %v2761, %v2758
        %v2792 = vpack.c.b16 %v2762, %v2759
        %v2793 = vpack.c.b16 %v2766, %v2763
        %v2794 = vpack.c.b16 %v2767, %v2764
        %v2795 = vpack.c.b16 %v2768, %v2765
        %v2796 = vpack.c.b16 %v2772, %v2769
        %v2797 = vpack.c.b16 %v2773, %v2770
        %v2798 = vpack.c.b16 %v2774, %v2771
        %2823 = vmatprep.subr.bf16.mxu0 %v2776
        %2824 = vmatpush1.bf16.msra.mxu0 %v2775
        %2825 = vmatprep.subr.bf16.mxu0 %v2779
        %2826 = vmatpush1.bf16.msra.mxu0 %v2778
        %2827 = vmatprep.subr.bf16.mxu0 %v2782
        %2828 = vmatpush1.bf16.msra.mxu0 %v2781
        %2829 = vmatprep.subr.bf16.mxu0 %v2785
        %2830 = vmatpush1.bf16.msra.mxu0 %v2784
        %2831 = vmatprep.subr.bf16.mxu0 %v2788
        %2832 = vmatpush1.bf16.msra.mxu0 %v2787
        %2833 = vmatprep.subr.bf16.mxu0 %v2791
        %2834 = vmatpush1.bf16.msra.mxu0 %v2790
        %2835 = vmatprep.subr.bf16.mxu0 %v2794
        %2836 = vmatpush1.bf16.msra.mxu0 %v2793
        %2837 = vmatprep.subr.bf16.mxu0 %v2797
        %2838 = vmatpush1.bf16.msra.mxu0 %v2796
        %2839 = vmatprep.subr.bf16.mxu0 0
        %2840 = vmatpush1.bf16.msra.mxu0 0
        %2841 = vmatprep.subr.bf16.mxu0 0
        %2842 = vmatpush1.bf16.msra.mxu0 0
        %2843 = vmatprep.subr.bf16.mxu0 0
        %2844 = vmatpush1.bf16.msra.mxu0 0
        %2845 = vmatprep.subr.bf16.mxu0 0
        %2846 = vmatpush1.bf16.msra.mxu0 0
        %2847 = vmatprep.subr.bf16.mxu0 0
        %2848 = vmatpush1.bf16.msra.mxu0 0
        %2849 = vmatprep.subr.bf16.mxu0 0
        %2850 = vmatpush1.bf16.msra.mxu0 0
        %2851 = vmatprep.subr.bf16.mxu0 0
        %2852 = vmatpush1.bf16.msra.mxu0 0
        %2853 = vmatprep.subr.bf16.mxu0 0
        %2854 = vmatpush1.bf16.msra.mxu0 0
        %2855 = vmatprep.mubr.bf16.mxu0 0
        %2856 = vmatmul.mubr.bf16.gmra.mrb[0].mxu0 %v2596
        %v2857 = vpop.f32.mrb[0].mxu0
        %v2858 = vadd.f32 %v2668, %v2857
        %v2859 = vpop.f32.mrb[0].mxu0
        %v2860 = vadd.f32 %v2672, %v2859
        %v2861 = vpop.f32.mrb[0].mxu0
        %v2862 = vpop.f32.mrb[0].mxu0
        %2863 = vdwg.mxu0
        %2864 = vmatprep.subr.bf16.mxu0 0
        %2865 = vmatpush1.bf16.msra.mxu0 %v2777
        %2866 = vmatprep.subr.bf16.mxu0 0
        %2867 = vmatpush1.bf16.msra.mxu0 %v2780
        %2868 = vmatprep.subr.bf16.mxu0 0
        %2869 = vmatpush1.bf16.msra.mxu0 %v2783
        %2870 = vmatprep.subr.bf16.mxu0 0
        %2871 = vmatpush1.bf16.msra.mxu0 %v2786
        %2872 = vmatprep.subr.bf16.mxu0 0
        %2873 = vmatpush1.bf16.msra.mxu0 %v2789
        %2874 = vmatprep.subr.bf16.mxu0 0
        %2875 = vmatpush1.bf16.msra.mxu0 %v2792
        %2876 = vmatprep.subr.bf16.mxu0 0
        %2877 = vmatpush1.bf16.msra.mxu0 %v2795
        %2878 = vmatprep.subr.bf16.mxu0 0
        %2879 = vmatpush1.bf16.msra.mxu0 %v2798
        %2880 = vmatprep.subr.bf16.mxu0 0
        %2881 = vmatpush1.bf16.msra.mxu0 0
        %2882 = vmatprep.subr.bf16.mxu0 0
        %2883 = vmatpush1.bf16.msra.mxu0 0
        %2884 = vmatprep.subr.bf16.mxu0 0
        %2885 = vmatpush1.bf16.msra.mxu0 0
        %2886 = vmatprep.subr.bf16.mxu0 0
        %2887 = vmatpush1.bf16.msra.mxu0 0
        %2888 = vmatprep.subr.bf16.mxu0 0
        %2889 = vmatpush1.bf16.msra.mxu0 0
        %2890 = vmatprep.subr.bf16.mxu0 0
        %2891 = vmatpush1.bf16.msra.mxu0 0
        %2892 = vmatprep.subr.bf16.mxu0 0
        %2893 = vmatpush1.bf16.msra.mxu0 0
        %2894 = vmatprep.subr.bf16.mxu0 0
        %2895 = vmatpush1.bf16.msra.mxu0 0
        %2896 = vmatprep.mubr.bf16.mxu0 0
        %2897 = vmatmul.mubr.bf16.gmra.mrb[0].mxu0 %v2596
        %v2898 = vpop.f32.mrb[0].mxu0
        %v2899 = vadd.f32 %v2676, %v2898
        %v2900 = vpop.f32.mrb[0].mxu0
        %v2901 = vpop.f32.mrb[0].mxu0
        %v2902 = vpop.f32.mrb[0].mxu0
        %2903 = vdwg.mxu0
        %v2936 = vunpack.c.l.b16 %v2629
        %v2937 = vunpack.c.h.b16 %v2629
        %v2938 = vunpack.c.l.b16 %v2630
        %v2939 = vunpack.c.l.b16 %v2631
        %v2940 = vunpack.c.h.b16 %v2631
        %v2941 = vunpack.c.l.b16 %v2632
        %v2942 = vunpack.c.l.b16 %v2633
        %v2943 = vunpack.c.h.b16 %v2633
        %v2944 = vunpack.c.l.b16 %v2634
        %v2945 = vunpack.c.l.b16 %v2635
        %v2946 = vunpack.c.h.b16 %v2635
        %v2947 = vunpack.c.l.b16 %v2636
        %v2948 = vunpack.c.l.b16 %v2637
        %v2949 = vunpack.c.h.b16 %v2637
        %v2950 = vunpack.c.l.b16 %v2638
        %v2951 = vunpack.c.l.b16 %v2639
        %v2952 = vunpack.c.h.b16 %v2639
        %v2953 = vunpack.c.l.b16 %v2640
        %v2954 = vunpack.c.l.b16 %v2641
        %v2955 = vunpack.c.h.b16 %v2641
        %v2956 = vunpack.c.l.b16 %v2642
        %v2957 = vunpack.c.l.b16 %v2643
        %v2958 = vunpack.c.h.b16 %v2643
        %v2959 = vunpack.c.l.b16 %v2644
        %v2960 = vunpack.c.l.b16 %v2645
        %v2961 = vunpack.c.h.b16 %v2645
        %v2962 = vunpack.c.l.b16 %v2646
        %v2963 = vunpack.c.l.b16 %v2647
        %v2964 = vunpack.c.h.b16 %v2647
        %v2965 = vunpack.c.l.b16 %v2648
        %v2966 = vunpack.c.l.b16 %v2649
        %v2967 = vunpack.c.h.b16 %v2649
        %v2968 = vunpack.c.l.b16 %v2650
        %v2969 = vunpack.c.l.b16 %v2651
        %v2970 = vunpack.c.h.b16 %v2651
        %v2971 = vunpack.c.l.b16 %v2652
        %v2972 = vunpack.c.l.b16 %v2653
        %v2973 = vunpack.c.h.b16 %v2653
        %v2974 = vunpack.c.l.b16 %v2654
        %v2975 = vunpack.c.l.b16 %v2655
        %v2976 = vunpack.c.h.b16 %v2655
        %v2977 = vunpack.c.l.b16 %v2656
        %v2978 = vunpack.c.l.b16 %v2657
        %v2979 = vunpack.c.h.b16 %v2657
        %v2980 = vunpack.c.l.b16 %v2658
        %v2981 = vunpack.c.l.b16 %v2659
        %v2982 = vunpack.c.h.b16 %v2659
        %v2983 = vunpack.c.l.b16 %v2660
        %v2984 = vpack.c.b16 %v2939, %v2936
        %v2985 = vpack.c.b16 %v2940, %v2937
        %v2986 = vpack.c.b16 %v2941, %v2938
        %v2987 = vpack.c.b16 %v2945, %v2942
        %v2988 = vpack.c.b16 %v2946, %v2943
        %v2989 = vpack.c.b16 %v2947, %v2944
        %v2990 = vpack.c.b16 %v2951, %v2948
        %v2991 = vpack.c.b16 %v2952, %v2949
        %v2992 = vpack.c.b16 %v2953, %v2950
        %v2993 = vpack.c.b16 %v2957, %v2954
        %v2994 = vpack.c.b16 %v2958, %v2955
        %v2995 = vpack.c.b16 %v2959, %v2956
        %v2996 = vpack.c.b16 %v2963, %v2960
        %v2997 = vpack.c.b16 %v2964, %v2961
        %v2998 = vpack.c.b16 %v2965, %v2962
        %v2999 = vpack.c.b16 %v2969, %v2966
        %v3000 = vpack.c.b16 %v2970, %v2967
        %v3001 = vpack.c.b16 %v2971, %v2968
        %v3002 = vpack.c.b16 %v2975, %v2972
        %v3003 = vpack.c.b16 %v2976, %v2973
        %v3004 = vpack.c.b16 %v2977, %v2974
        %v3005 = vpack.c.b16 %v2981, %v2978
        %v3006 = vpack.c.b16 %v2982, %v2979
        %v3007 = vpack.c.b16 %v2983, %v2980
        %3032 = vmatprep.subr.bf16.mxu0 %v2985
        %3033 = vmatpush1.bf16.msra.mxu0 %v2984
        %3034 = vmatprep.subr.bf16.mxu0 %v2988
        %3035 = vmatpush1.bf16.msra.mxu0 %v2987
        %3036 = vmatprep.subr.bf16.mxu0 %v2991
        %3037 = vmatpush1.bf16.msra.mxu0 %v2990
        %3038 = vmatprep.subr.bf16.mxu0 %v2994
        %3039 = vmatpush1.bf16.msra.mxu0 %v2993
        %3040 = vmatprep.subr.bf16.mxu0 %v2997
        %3041 = vmatpush1.bf16.msra.mxu0 %v2996
        %3042 = vmatprep.subr.bf16.mxu0 %v3000
        %3043 = vmatpush1.bf16.msra.mxu0 %v2999
        %3044 = vmatprep.subr.bf16.mxu0 %v3003
        %3045 = vmatpush1.bf16.msra.mxu0 %v3002
        %3046 = vmatprep.subr.bf16.mxu0 %v3006
        %3047 = vmatpush1.bf16.msra.mxu0 %v3005
        %3048 = vmatprep.subr.bf16.mxu0 0
        %3049 = vmatpush1.bf16.msra.mxu0 0
        %3050 = vmatprep.subr.bf16.mxu0 0
        %3051 = vmatpush1.bf16.msra.mxu0 0
        %3052 = vmatprep.subr.bf16.mxu0 0
        %3053 = vmatpush1.bf16.msra.mxu0 0
        %3054 = vmatprep.subr.bf16.mxu0 0
        %3055 = vmatpush1.bf16.msra.mxu0 0
        %3056 = vmatprep.subr.bf16.mxu0 0
        %3057 = vmatpush1.bf16.msra.mxu0 0
        %3058 = vmatprep.subr.bf16.mxu0 0
        %3059 = vmatpush1.bf16.msra.mxu0 0
        %3060 = vmatprep.subr.bf16.mxu0 0
        %3061 = vmatpush1.bf16.msra.mxu0 0
        %3062 = vmatprep.subr.bf16.mxu0 0
        %3063 = vmatpush1.bf16.msra.mxu0 0
        %3064 = vmatprep.mubr.bf16.mxu0 0
        %3065 = vmatmul.mubr.bf16.gmra.mrb[0].mxu0 %v2596
        %v3066 = vpop.f32.mrb[0].mxu0
        %v3067 = vadd.f32 %v2680, %v3066
        %v3068 = vpop.f32.mrb[0].mxu0
        %v3069 = vadd.f32 %v2684, %v3068
        %v3070 = vpop.f32.mrb[0].mxu0
        %v3071 = vpop.f32.mrb[0].mxu0
        %3072 = vdwg.mxu0
        %3073 = vmatprep.subr.bf16.mxu0 0
        %3074 = vmatpush1.bf16.msra.mxu0 %v2986
        %3075 = vmatprep.subr.bf16.mxu0 0
        %3076 = vmatpush1.bf16.msra.mxu0 %v2989
        %3077 = vmatprep.subr.bf16.mxu0 0
        %3078 = vmatpush1.bf16.msra.mxu0 %v2992
        %3079 = vmatprep.subr.bf16.mxu0 0
        %3080 = vmatpush1.bf16.msra.mxu0 %v2995
        %3081 = vmatprep.subr.bf16.mxu0 0
        %3082 = vmatpush1.bf16.msra.mxu0 %v2998
        %3083 = vmatprep.subr.bf16.mxu0 0
        %3084 = vmatpush1.bf16.msra.mxu0 %v3001
        %3085 = vmatprep.subr.bf16.mxu0 0
        %3086 = vmatpush1.bf16.msra.mxu0 %v3004
        %3087 = vmatprep.subr.bf16.mxu0 0
        %3088 = vmatpush1.bf16.msra.mxu0 %v3007
        %3089 = vmatprep.subr.bf16.mxu0 0
        %3090 = vmatpush1.bf16.msra.mxu0 0
        %3091 = vmatprep.subr.bf16.mxu0 0
        %3092 = vmatpush1.bf16.msra.mxu0 0
        %3093 = vmatprep.subr.bf16.mxu0 0
        %3094 = vmatpush1.bf16.msra.mxu0 0
        %3095 = vmatprep.subr.bf16.mxu0 0
        %3096 = vmatpush1.bf16.msra.mxu0 0
        %3097 = vmatprep.subr.bf16.mxu0 0
        %3098 = vmatpush1.bf16.msra.mxu0 0
        %3099 = vmatprep.subr.bf16.mxu0 0
        %3100 = vmatpush1.bf16.msra.mxu0 0
        %3101 = vmatprep.subr.bf16.mxu0 0
        %3102 = vmatpush1.bf16.msra.mxu0 0
        %3103 = vmatprep.subr.bf16.mxu0 0
        %3104 = vmatpush1.bf16.msra.mxu0 0
        %3105 = vmatprep.mubr.bf16.mxu0 0
        %3106 = vmatmul.mubr.bf16.gmra.mrb[0].mxu0 %v2596
        %v3107 = vpop.f32.mrb[0].mxu0
        %v3108 = vadd.f32 %v2688, %v3107
        %v3109 = vpop.f32.mrb[0].mxu0
        %v3110 = vpop.f32.mrb[0].mxu0
        %v3111 = vpop.f32.mrb[0].mxu0
        %3112 = vdwg.mxu0
        %v3113 = vmul.f32 %v2858, 0.25
        %v3114 = vmul.f32 %v3067, 0.25
        %v3115 = vpack.c.bf16 %v3113, %v3113
        %v3116 = vpack.c.bf16 %v3114, %v3114
        %v3117 = vpack.c.bf16 %v2860, %v2860
        %v3118 = vpack.c.bf16 %v3069, %v3069
        %v3119 = vpack.c.bf16 %v2899, %v2899
        %v3120 = vpack.c.bf16 %v3108, %v3108
        %3121 = vmatprep.subr.bf16.mxu0 0
        %3122 = vmatpush1.bf16.xpose.msra.mxu0 %v3117
        %3123 = vmatprep.subr.bf16.mxu0 0
        %3124 = vmatpush1.bf16.xpose.msra.mxu0 0
        %3125 = vmatprep.subr.bf16.mxu0 0
        %3126 = vmatpush1.bf16.xpose.msra.mxu0 0
        %3127 = vmatprep.subr.bf16.mxu0 0
        %3128 = vmatpush1.bf16.xpose.msra.mxu0 0
        %3129 = vmatprep.subr.bf16.mxu0 0
        %3130 = vmatpush1.bf16.xpose.msra.mxu0 0
        %3131 = vmatprep.subr.bf16.mxu0 0
        %3132 = vmatpush1.bf16.xpose.msra.mxu0 0
        %3133 = vmatprep.subr.bf16.mxu0 0
        %3134 = vmatpush1.bf16.xpose.msra.mxu0 0
        %3135 = vmatprep.subr.bf16.mxu0 0
        %3136 = vmatpush1.bf16.xpose.msra.mxu0 0
        %3137 = vmatprep.subr.bf16.mxu0 0
        %3138 = vmatpush1.bf16.xpose.msra.mxu0 0
        %3139 = vmatprep.subr.bf16.mxu0 0
        %3140 = vmatpush1.bf16.xpose.msra.mxu0 0
        %3141 = vmatprep.subr.bf16.mxu0 0
        %3142 = vmatpush1.bf16.xpose.msra.mxu0 0
        %3143 = vmatprep.subr.bf16.mxu0 0
        %3144 = vmatpush1.bf16.xpose.msra.mxu0 0
        %3145 = vmatprep.subr.bf16.mxu0 0
        %3146 = vmatpush1.bf16.xpose.msra.mxu0 0
        %3147 = vmatprep.subr.bf16.mxu0 0
        %3148 = vmatpush1.bf16.xpose.msra.mxu0 0
        %3149 = vmatprep.subr.bf16.mxu0 0
        %3150 = vmatpush1.bf16.xpose.msra.mxu0 0
        %3151 = vmatprep.subr.bf16.mxu0 0
        %3152 = vmatpush1.bf16.xpose.msra.mxu0 0
        %3153 = vmatprep.mubr.bf16.mxu0 0
        %3154 = vmatmul.mubr.bf16.gmra.mrb[0].mxu0 %v3115
        %v3155 = vpop.f32.mrb[0].mxu0
        %v3156 = vadd.f32 %v1259, %v3155
        %v3157 = vpop.f32.mrb[0].mxu0
        %v3158 = vpop.f32.mrb[0].mxu0
        %v3159 = vpop.f32.mrb[0].mxu0
        %3160 = vdwg.mxu0
        %3161 = vmatprep.subr.bf16.mxu0 0
        %3162 = vmatpush1.bf16.xpose.msra.mxu0 %v3118
        %3163 = vmatprep.subr.bf16.mxu0 0
        %3164 = vmatpush1.bf16.xpose.msra.mxu0 0
        %3165 = vmatprep.subr.bf16.mxu0 0
        %3166 = vmatpush1.bf16.xpose.msra.mxu0 0
        %3167 = vmatprep.subr.bf16.mxu0 0
        %3168 = vmatpush1.bf16.xpose.msra.mxu0 0
        %3169 = vmatprep.subr.bf16.mxu0 0
        %3170 = vmatpush1.bf16.xpose.msra.mxu0 0
        %3171 = vmatprep.subr.bf16.mxu0 0
        %3172 = vmatpush1.bf16.xpose.msra.mxu0 0
        %3173 = vmatprep.subr.bf16.mxu0 0
        %3174 = vmatpush1.bf16.xpose.msra.mxu0 0
        %3175 = vmatprep.subr.bf16.mxu0 0
        %3176 = vmatpush1.bf16.xpose.msra.mxu0 0
        %3177 = vmatprep.subr.bf16.mxu0 0
        %3178 = vmatpush1.bf16.xpose.msra.mxu0 0
        %3179 = vmatprep.subr.bf16.mxu0 0
        %3180 = vmatpush1.bf16.xpose.msra.mxu0 0
        %3181 = vmatprep.subr.bf16.mxu0 0
        %3182 = vmatpush1.bf16.xpose.msra.mxu0 0
        %3183 = vmatprep.subr.bf16.mxu0 0
        %3184 = vmatpush1.bf16.xpose.msra.mxu0 0
        %3185 = vmatprep.subr.bf16.mxu0 0
        %3186 = vmatpush1.bf16.xpose.msra.mxu0 0
        %3187 = vmatprep.subr.bf16.mxu0 0
        %3188 = vmatpush1.bf16.xpose.msra.mxu0 0
        %3189 = vmatprep.subr.bf16.mxu0 0
        %3190 = vmatpush1.bf16.xpose.msra.mxu0 0
        %3191 = vmatprep.subr.bf16.mxu0 0
        %3192 = vmatpush1.bf16.xpose.msra.mxu0 0
        %3193 = vmatprep.mubr.bf16.mxu0 0
        %3194 = vmatmul.mubr.bf16.gmra.mrb[0].mxu0 %v3116
        %v3195 = vpop.f32.mrb[0].mxu0
        %v3196 = vadd.f32 %v1259, %v3195
        %v3197 = vpop.f32.mrb[0].mxu0
        %v3198 = vpop.f32.mrb[0].mxu0
        %v3199 = vpop.f32.mrb[0].mxu0
        %3200 = vdwg.mxu0
        %v3201 = vsel %vm1870, %v3156, -inf
        %3202 = vmax.xlane.f32.xlu0 %v3201
        %v3203 = vpop.xlane.xlu0 %3202
        %v3204 = vsel %vm1870, %v3196, -inf
        %3205 = vmax.xlane.f32.xlu0 %v3204
        %v3206 = vpop.xlane.xlu0 %3205
        %v3207 = vsub.f32 %v3156, %v3203
        %v3208 = vsub.f32 %v3196, %v3206
        %v3209 = vmul.f32 %v3207, 1.442695
        %v3210 = vpow.pop %v3209
        %v3211 = vmul.f32 %v3208, 1.442695
        %v3212 = vpow.pop %v3211
        %v3213 = vsel %vm1870, %v3210, 0.0
        %3214 = vadd.xlane.f32.xlu0 %v3213
        %v3215 = vpop.xlane.xlu0 %3214
        %v3216 = vsel %vm1870, %v3212, 0.0
        %3217 = vadd.xlane.f32.xlu0 %v3216
        %v3218 = vpop.xlane.xlu0 %3217
        %v3219 = vrcp.pop %v3215
        %v3220 = vmul.f32 %v3210, %v3219
        %v3221 = vrcp.pop %v3218
        %v3222 = vmul.f32 %v3212, %v3221
        %v3223 = vpack.c.bf16 %v3220, %v3220
        %v3224 = vpack.c.bf16 %v3222, %v3222
        %v3226 = vsel %vm1870, %v3223, 0
        %v3229 = vsel %vm1898, %v3119, 0
        %3231 = vmatprep.subr.bf16.mxu0 0
        %3232 = vmatpush1.bf16.msra.mxu0 %v3229
        %3233 = vmatprep.subr.bf16.mxu0 0
        %3234 = vmatpush1.bf16.msra.mxu0 0
        %3235 = vmatprep.subr.bf16.mxu0 0
        %3236 = vmatpush1.bf16.msra.mxu0 0
        %3237 = vmatprep.subr.bf16.mxu0 0
        %3238 = vmatpush1.bf16.msra.mxu0 0
        %3239 = vmatprep.subr.bf16.mxu0 0
        %3240 = vmatpush1.bf16.msra.mxu0 0
        %3241 = vmatprep.subr.bf16.mxu0 0
        %3242 = vmatpush1.bf16.msra.mxu0 0
        %3243 = vmatprep.subr.bf16.mxu0 0
        %3244 = vmatpush1.bf16.msra.mxu0 0
        %3245 = vmatprep.subr.bf16.mxu0 0
        %3246 = vmatpush1.bf16.msra.mxu0 0
        %3247 = vmatprep.subr.bf16.mxu0 0
        %3248 = vmatpush1.bf16.msra.mxu0 0
        %3249 = vmatprep.subr.bf16.mxu0 0
        %3250 = vmatpush1.bf16.msra.mxu0 0
        %3251 = vmatprep.subr.bf16.mxu0 0
        %3252 = vmatpush1.bf16.msra.mxu0 0
        %3253 = vmatprep.subr.bf16.mxu0 0
        %3254 = vmatpush1.bf16.msra.mxu0 0
        %3255 = vmatprep.subr.bf16.mxu0 0
        %3256 = vmatpush1.bf16.msra.mxu0 0
        %3257 = vmatprep.subr.bf16.mxu0 0
        %3258 = vmatpush1.bf16.msra.mxu0 0
        %3259 = vmatprep.subr.bf16.mxu0 0
        %3260 = vmatpush1.bf16.msra.mxu0 0
        %3261 = vmatprep.subr.bf16.mxu0 0
        %3262 = vmatpush1.bf16.msra.mxu0 0
        %3263 = vmatprep.mubr.bf16.mxu0 0
        %3264 = vmatmul.mubr.bf16.gmra.mrb[0].mxu0 %v3226
        %v3265 = vpop.f32.mrb[0].mxu0
        %v3266 = vadd.f32 0.0, %v3265
        %v3267 = vpop.f32.mrb[0].mxu0
        %v3268 = vpop.f32.mrb[0].mxu0
        %v3269 = vpop.f32.mrb[0].mxu0
        %3270 = vdwg.mxu0
        %v3272 = vsel %vm1870, %v3224, 0
        %v3275 = vsel %vm1898, %v3120, 0
        %3277 = vmatprep.subr.bf16.mxu0 0
        %3278 = vmatpush1.bf16.msra.mxu0 %v3275
        %3279 = vmatprep.subr.bf16.mxu0 0
        %3280 = vmatpush1.bf16.msra.mxu0 0
        %3281 = vmatprep.subr.bf16.mxu0 0
        %3282 = vmatpush1.bf16.msra.mxu0 0
        %3283 = vmatprep.subr.bf16.mxu0 0
        %3284 = vmatpush1.bf16.msra.mxu0 0
        %3285 = vmatprep.subr.bf16.mxu0 0
        %3286 = vmatpush1.bf16.msra.mxu0 0
        %3287 = vmatprep.subr.bf16.mxu0 0
        %3288 = vmatpush1.bf16.msra.mxu0 0
        %3289 = vmatprep.subr.bf16.mxu0 0
        %3290 = vmatpush1.bf16.msra.mxu0 0
        %3291 = vmatprep.subr.bf16.mxu0 0
        %3292 = vmatpush1.bf16.msra.mxu0 0
        %3293 = vmatprep.subr.bf16.mxu0 0
        %3294 = vmatpush1.bf16.msra.mxu0 0
        %3295 = vmatprep.subr.bf16.mxu0 0
        %3296 = vmatpush1.bf16.msra.mxu0 0
        %3297 = vmatprep.subr.bf16.mxu0 0
        %3298 = vmatpush1.bf16.msra.mxu0 0
        %3299 = vmatprep.subr.bf16.mxu0 0
        %3300 = vmatpush1.bf16.msra.mxu0 0
        %3301 = vmatprep.subr.bf16.mxu0 0
        %3302 = vmatpush1.bf16.msra.mxu0 0
        %3303 = vmatprep.subr.bf16.mxu0 0
        %3304 = vmatpush1.bf16.msra.mxu0 0
        %3305 = vmatprep.subr.bf16.mxu0 0
        %3306 = vmatpush1.bf16.msra.mxu0 0
        %3307 = vmatprep.subr.bf16.mxu0 0
        %3308 = vmatpush1.bf16.msra.mxu0 0
        %3309 = vmatprep.mubr.bf16.mxu0 0
        %3310 = vmatmul.mubr.bf16.gmra.mrb[0].mxu0 %v3272
        %v3311 = vpop.f32.mrb[0].mxu0
        %v3312 = vadd.f32 0.0, %v3311
        %v3313 = vpop.f32.mrb[0].mxu0
        %v3314 = vpop.f32.mrb[0].mxu0
        %v3315 = vpop.f32.mrb[0].mxu0
        %3316 = vdwg.mxu0
        %v3317 = vpack.c.bf16 %v3266, %v3266
        %v3318 = vpack.c.bf16 %v3312, %v3312
        %v3319 = vld [vmem:[#allocation25] sm:$0xf]
        %v3320 = vld [vmem:[#allocation25 + $0x4] sm:$0xf]
        %v3321 = vld [vmem:[#allocation25 + $0x8] sm:$0xf]
        %v3322 = vld [vmem:[#allocation25 + $0xc] sm:$0xf]
        %v3323 = vld [vmem:[#allocation25 + $0x10] sm:$0xf]
        %v3324 = vld [vmem:[#allocation25 + $0x14] sm:$0xf]
        %v3325 = vld [vmem:[#allocation25 + $0x18] sm:$0xf]
        %v3326 = vld [vmem:[#allocation25 + $0x1c] sm:$0xf]
        %v3327 = vld [vmem:[#allocation25 + $0x20] sm:$0xf]
        %v3328 = vld [vmem:[#allocation25 + $0x24] sm:$0xf]
        %v3329 = vld [vmem:[#allocation25 + $0x28] sm:$0xf]
        %v3330 = vld [vmem:[#allocation25 + $0x2c] sm:$0xf]
        %v3331 = vld [vmem:[#allocation25 + $0x30] sm:$0xf]
        %v3332 = vld [vmem:[#allocation25 + $0x34] sm:$0xf]
        %v3333 = vld [vmem:[#allocation25 + $0x38] sm:$0xf]
        %v3334 = vld [vmem:[#allocation25 + $0x3c] sm:$0xf]
        %v3335 = vld [vmem:[#allocation25 + $0x40] sm:$0xf]
        %v3336 = vld [vmem:[#allocation25 + $0x44] sm:$0xf]
        %v3337 = vld [vmem:[#allocation25 + $0x48] sm:$0xf]
        %v3338 = vld [vmem:[#allocation25 + $0x4c] sm:$0xf]
        %v3339 = vld [vmem:[#allocation25 + $0x50] sm:$0xf]
        %v3340 = vld [vmem:[#allocation25 + $0x54] sm:$0xf]
        %v3341 = vld [vmem:[#allocation25 + $0x58] sm:$0xf]
        %v3342 = vld [vmem:[#allocation25 + $0x5c] sm:$0xf]
        %v3343 = vld [vmem:[#allocation25 + $0x60] sm:$0xf]
        %v3344 = vld [vmem:[#allocation25 + $0x64] sm:$0xf]
        %v3345 = vld [vmem:[#allocation25 + $0x68] sm:$0xf]
        %v3346 = vld [vmem:[#allocation25 + $0x6c] sm:$0xf]
        %v3347 = vld [vmem:[#allocation25 + $0x70] sm:$0xf]
        %v3348 = vld [vmem:[#allocation25 + $0x74] sm:$0xf]
        %v3349 = vld [vmem:[#allocation25 + $0x78] sm:$0xf]
        %v3350 = vld [vmem:[#allocation25 + $0x7c] sm:$0xf]
        %v3367 = vunpack.c.l.b16 %v3319
        %v3368 = vunpack.c.l.b16 %v3320
        %v3369 = vunpack.c.l.b16 %v3321
        %v3370 = vunpack.c.l.b16 %v3322
        %v3371 = vunpack.c.l.b16 %v3323
        %v3372 = vunpack.c.l.b16 %v3324
        %v3373 = vunpack.c.l.b16 %v3325
        %v3374 = vunpack.c.l.b16 %v3326
        %v3375 = vunpack.c.l.b16 %v3327
        %v3376 = vunpack.c.l.b16 %v3328
        %v3377 = vunpack.c.l.b16 %v3329
        %v3378 = vunpack.c.l.b16 %v3330
        %v3379 = vunpack.c.l.b16 %v3331
        %v3380 = vunpack.c.l.b16 %v3332
        %v3381 = vunpack.c.l.b16 %v3333
        %v3382 = vunpack.c.l.b16 %v3334
        %v3383 = vpack.c.b16 %v3368, %v3367
        %v3384 = vpack.c.b16 %v3370, %v3369
        %v3385 = vpack.c.b16 %v3372, %v3371
        %v3386 = vpack.c.b16 %v3374, %v3373
        %v3387 = vpack.c.b16 %v3376, %v3375
        %v3388 = vpack.c.b16 %v3378, %v3377
        %v3389 = vpack.c.b16 %v3380, %v3379
        %v3390 = vpack.c.b16 %v3382, %v3381
        %3399 = vmatprep.subr.bf16.mxu0 0
        %3400 = vmatpush1.bf16.msra.mxu0 %v3383
        %3401 = vmatprep.subr.bf16.mxu0 0
        %3402 = vmatpush1.bf16.msra.mxu0 %v3384
        %3403 = vmatprep.subr.bf16.mxu0 0
        %3404 = vmatpush1.bf16.msra.mxu0 %v3385
        %3405 = vmatprep.subr.bf16.mxu0 0
        %3406 = vmatpush1.bf16.msra.mxu0 %v3386
        %3407 = vmatprep.subr.bf16.mxu0 0
        %3408 = vmatpush1.bf16.msra.mxu0 %v3387
        %3409 = vmatprep.subr.bf16.mxu0 0
        %3410 = vmatpush1.bf16.msra.mxu0 %v3388
        %3411 = vmatprep.subr.bf16.mxu0 0
        %3412 = vmatpush1.bf16.msra.mxu0 %v3389
        %3413 = vmatprep.subr.bf16.mxu0 0
        %3414 = vmatpush1.bf16.msra.mxu0 %v3390
        %3415 = vmatprep.subr.bf16.mxu0 0
        %3416 = vmatpush1.bf16.msra.mxu0 0
        %3417 = vmatprep.subr.bf16.mxu0 0
        %3418 = vmatpush1.bf16.msra.mxu0 0
        %3419 = vmatprep.subr.bf16.mxu0 0
        %3420 = vmatpush1.bf16.msra.mxu0 0
        %3421 = vmatprep.subr.bf16.mxu0 0
        %3422 = vmatpush1.bf16.msra.mxu0 0
        %3423 = vmatprep.subr.bf16.mxu0 0
        %3424 = vmatpush1.bf16.msra.mxu0 0
        %3425 = vmatprep.subr.bf16.mxu0 0
        %3426 = vmatpush1.bf16.msra.mxu0 0
        %3427 = vmatprep.subr.bf16.mxu0 0
        %3428 = vmatpush1.bf16.msra.mxu0 0
        %3429 = vmatprep.subr.bf16.mxu0 0
        %3430 = vmatpush1.bf16.msra.mxu0 0
        %3431 = vmatprep.mubr.bf16.mxu0 0
        %3432 = vmatmul.mubr.bf16.gmra.mrb[0].mxu0 %v3317
        %v3433 = vpop.f32.mrb[0].mxu0
        %v3434 = vadd.f32 0.0, %v3433
        %v3435 = vpop.f32.mrb[0].mxu0
        %v3436 = vpop.f32.mrb[0].mxu0
        %v3437 = vpop.f32.mrb[0].mxu0
        %3438 = vdwg.mxu0
        %v3455 = vunpack.c.l.b16 %v3335
        %v3456 = vunpack.c.l.b16 %v3336
        %v3457 = vunpack.c.l.b16 %v3337
        %v3458 = vunpack.c.l.b16 %v3338
        %v3459 = vunpack.c.l.b16 %v3339
        %v3460 = vunpack.c.l.b16 %v3340
        %v3461 = vunpack.c.l.b16 %v3341
        %v3462 = vunpack.c.l.b16 %v3342
        %v3463 = vunpack.c.l.b16 %v3343
        %v3464 = vunpack.c.l.b16 %v3344
        %v3465 = vunpack.c.l.b16 %v3345
        %v3466 = vunpack.c.l.b16 %v3346
        %v3467 = vunpack.c.l.b16 %v3347
        %v3468 = vunpack.c.l.b16 %v3348
        %v3469 = vunpack.c.l.b16 %v3349
        %v3470 = vunpack.c.l.b16 %v3350
        %v3471 = vpack.c.b16 %v3456, %v3455
        %v3472 = vpack.c.b16 %v3458, %v3457
        %v3473 = vpack.c.b16 %v3460, %v3459
        %v3474 = vpack.c.b16 %v3462, %v3461
        %v3475 = vpack.c.b16 %v3464, %v3463
        %v3476 = vpack.c.b16 %v3466, %v3465
        %v3477 = vpack.c.b16 %v3468, %v3467
        %v3478 = vpack.c.b16 %v3470, %v3469
        %3487 = vmatprep.subr.bf16.mxu0 0
        %3488 = vmatpush1.bf16.msra.mxu0 %v3471
        %3489 = vmatprep.subr.bf16.mxu0 0
        %3490 = vmatpush1.bf16.msra.mxu0 %v3472
        %3491 = vmatprep.subr.bf16.mxu0 0
        %3492 = vmatpush1.bf16.msra.mxu0 %v3473
        %3493 = vmatprep.subr.bf16.mxu0 0
        %3494 = vmatpush1.bf16.msra.mxu0 %v3474
        %3495 = vmatprep.subr.bf16.mxu0 0
        %3496 = vmatpush1.bf16.msra.mxu0 %v3475
        %3497 = vmatprep.subr.bf16.mxu0 0
        %3498 = vmatpush1.bf16.msra.mxu0 %v3476
        %3499 = vmatprep.subr.bf16.mxu0 0
        %3500 = vmatpush1.bf16.msra.mxu0 %v3477
        %3501 = vmatprep.subr.bf16.mxu0 0
        %3502 = vmatpush1.bf16.msra.mxu0 %v3478
        %3503 = vmatprep.subr.bf16.mxu0 0
        %3504 = vmatpush1.bf16.msra.mxu0 0
        %3505 = vmatprep.subr.bf16.mxu0 0
        %3506 = vmatpush1.bf16.msra.mxu0 0
        %3507 = vmatprep.subr.bf16.mxu0 0
        %3508 = vmatpush1.bf16.msra.mxu0 0
        %3509 = vmatprep.subr.bf16.mxu0 0
        %3510 = vmatpush1.bf16.msra.mxu0 0
        %3511 = vmatprep.subr.bf16.mxu0 0
        %3512 = vmatpush1.bf16.msra.mxu0 0
        %3513 = vmatprep.subr.bf16.mxu0 0
        %3514 = vmatpush1.bf16.msra.mxu0 0
        %3515 = vmatprep.subr.bf16.mxu0 0
        %3516 = vmatpush1.bf16.msra.mxu0 0
        %3517 = vmatprep.subr.bf16.mxu0 0
        %3518 = vmatpush1.bf16.msra.mxu0 0
        %3519 = vmatprep.mubr.bf16.mxu0 0
        %3520 = vmatmul.mubr.bf16.gmra.mrb[0].mxu0 %v3318
        %v3521 = vpop.f32.mrb[0].mxu0
        %v3522 = vadd.f32 0.0, %v3521
        %v3523 = vpop.f32.mrb[0].mxu0
        %v3524 = vpop.f32.mrb[0].mxu0
        %v3525 = vpop.f32.mrb[0].mxu0
        %3526 = vdwg.mxu0
        %v3527 = vadd.f32 %v3434, %v3522
        %v3528 = vadd.f32 %v2595, %v3527
        %v3529 = vld [vmem:[#allocation27] sm:$0x1]
        %v3531 = vlaneseq
        %v3532 = vshrl.u32 %v3531, 7
        %v3533 = vsub.s32 0, %v3532
        %v3534 = vrot.slane %v3529, %v3533
        %v3536 = vadd.f32 %v3528, %v3534
        %3537 = vadd.xlane.f32.xlu0 %v3536
        %v3538 = vpop.xlane.xlu0 %3537
        %v3539 = vmul.f32 %v3538, 0.03125
        %v3540 = vmul.f32 %v3536, %v3536
        %3541 = vadd.xlane.f32.xlu0 %v3540
        %v3542 = vpop.xlane.xlu0 %3541
        %v3543 = vmul.f32 %v3542, 0.03125
        %v3544 = vmul.f32 %v3539, %v3539
        %v3545 = vsub.f32 %v3543, %v3544
        %v3546 = vsub.f32 %v3536, %v3539
        %v3547 = vadd.f32 %v3545, 1e-05
        %v3548 = vrsqrt.pop %v3547
        %v3549 = vmul.f32 %v3546, %v3548
        %v3550 = vld [vmem:[#allocation28] sm:$0x1]
        %v3552 = vlaneseq
        %v3553 = vshrl.u32 %v3552, 7
        %v3554 = vsub.s32 0, %v3553
        %v3555 = vrot.slane %v3550, %v3554
        %v3557 = vmul.f32 %v3549, %v3555
        %v3558 = vld [vmem:[#allocation30] sm:$0x1]
        %v3560 = vlaneseq
        %v3561 = vshrl.u32 %v3560, 7
        %v3562 = vsub.s32 0, %v3561
        %v3563 = vrot.slane %v3558, %v3562
        %v3565 = vadd.f32 %v3557, %v3563
        %v3566 = vpack.c.bf16 %v3565, %v3565
        %v3567 = vld [vmem:[#allocation31] sm:$0xff]
        %v3568 = vld [vmem:[#allocation31 + $0x8] sm:$0xff]
        %v3569 = vld [vmem:[#allocation31 + $0x10] sm:$0xff]
        %v3570 = vld [vmem:[#allocation31 + $0x18] sm:$0xff]
        %v3571 = vld [vmem:[#allocation31 + $0x20] sm:$0xff]
        %v3572 = vld [vmem:[#allocation31 + $0x28] sm:$0xff]
        %v3573 = vld [vmem:[#allocation31 + $0x30] sm:$0xff]
        %v3574 = vld [vmem:[#allocation31 + $0x38] sm:$0xff]
        %v3575 = vld [vmem:[#allocation31 + $0x40] sm:$0xff]
        %v3576 = vld [vmem:[#allocation31 + $0x48] sm:$0xff]
        %v3577 = vld [vmem:[#allocation31 + $0x50] sm:$0xff]
        %v3578 = vld [vmem:[#allocation31 + $0x58] sm:$0xff]
        %v3579 = vld [vmem:[#allocation31 + $0x60] sm:$0xff]
        %v3580 = vld [vmem:[#allocation31 + $0x68] sm:$0xff]
        %v3581 = vld [vmem:[#allocation31 + $0x70] sm:$0xff]
        %v3582 = vld [vmem:[#allocation31 + $0x78] sm:$0xff]
        %v3583 = vld [vmem:[#allocation33] sm:$0x3]
        %v3585 = vlaneseq
        %v3586 = vshrl.u32 %v3585, 7
        %v3587 = vsub.s32 0, %v3586
        %v3588 = vrot.slane %v3583, %v3587
        %v3589 = vlaneseq
        %v3590 = vshrl.u32 %v3589, 7
        %v3591 = vsub.s32 1, %v3590
        %v3592 = vrot.slane %v3583, %v3591
        %v3611 = vunpack.c.l.b16 %v3567
        %v3612 = vunpack.c.h.b16 %v3567
        %v3613 = vunpack.c.l.b16 %v3568
        %v3614 = vunpack.c.h.b16 %v3568
        %v3615 = vunpack.c.l.b16 %v3569
        %v3616 = vunpack.c.h.b16 %v3569
        %v3617 = vunpack.c.l.b16 %v3570
        %v3618 = vunpack.c.h.b16 %v3570
        %v3619 = vunpack.c.l.b16 %v3571
        %v3620 = vunpack.c.h.b16 %v3571
        %v3621 = vunpack.c.l.b16 %v3572
        %v3622 = vunpack.c.h.b16 %v3572
        %v3623 = vunpack.c.l.b16 %v3573
        %v3624 = vunpack.c.h.b16 %v3573
        %v3625 = vunpack.c.l.b16 %v3574
        %v3626 = vunpack.c.h.b16 %v3574
        %v3627 = vunpack.c.l.b16 %v3575
        %v3628 = vunpack.c.h.b16 %v3575
        %v3629 = vunpack.c.l.b16 %v3576
        %v3630 = vunpack.c.h.b16 %v3576
        %v3631 = vunpack.c.l.b16 %v3577
        %v3632 = vunpack.c.h.b16 %v3577
        %v3633 = vunpack.c.l.b16 %v3578
        %v3634 = vunpack.c.h.b16 %v3578
        %v3635 = vunpack.c.l.b16 %v3579
        %v3636 = vunpack.c.h.b16 %v3579
        %v3637 = vunpack.c.l.b16 %v3580
        %v3638 = vunpack.c.h.b16 %v3580
        %v3639 = vunpack.c.l.b16 %v3581
        %v3640 = vunpack.c.h.b16 %v3581
        %v3641 = vunpack.c.l.b16 %v3582
        %v3642 = vunpack.c.h.b16 %v3582
        %v3643 = vpack.c.b16 %v3613, %v3611
        %v3644 = vpack.c.b16 %v3614, %v3612
        %v3645 = vpack.c.b16 %v3617, %v3615
        %v3646 = vpack.c.b16 %v3618, %v3616
        %v3647 = vpack.c.b16 %v3621, %v3619
        %v3648 = vpack.c.b16 %v3622, %v3620
        %v3649 = vpack.c.b16 %v3625, %v3623
        %v3650 = vpack.c.b16 %v3626, %v3624
        %v3651 = vpack.c.b16 %v3629, %v3627
        %v3652 = vpack.c.b16 %v3630, %v3628
        %v3653 = vpack.c.b16 %v3633, %v3631
        %v3654 = vpack.c.b16 %v3634, %v3632
        %v3655 = vpack.c.b16 %v3637, %v3635
        %v3656 = vpack.c.b16 %v3638, %v3636
        %v3657 = vpack.c.b16 %v3641, %v3639
        %v3658 = vpack.c.b16 %v3642, %v3640
        %3675 = vmatprep.subr.bf16.mxu0 %v3644
        %3676 = vmatpush1.bf16.msra.mxu0 %v3643
        %3677 = vmatprep.subr.bf16.mxu0 %v3646
        %3678 = vmatpush1.bf16.msra.mxu0 %v3645
        %3679 = vmatprep.subr.bf16.mxu0 %v3648
        %3680 = vmatpush1.bf16.msra.mxu0 %v3647
        %3681 = vmatprep.subr.bf16.mxu0 %v3650
        %3682 = vmatpush1.bf16.msra.mxu0 %v3649
        %3683 = vmatprep.subr.bf16.mxu0 %v3652
        %3684 = vmatpush1.bf16.msra.mxu0 %v3651
        %3685 = vmatprep.subr.bf16.mxu0 %v3654
        %3686 = vmatpush1.bf16.msra.mxu0 %v3653
        %3687 = vmatprep.subr.bf16.mxu0 %v3656
        %3688 = vmatpush1.bf16.msra.mxu0 %v3655
        %3689 = vmatprep.subr.bf16.mxu0 %v3658
        %3690 = vmatpush1.bf16.msra.mxu0 %v3657
        %3691 = vmatprep.subr.bf16.mxu0 0
        %3692 = vmatpush1.bf16.msra.mxu0 0
        %3693 = vmatprep.subr.bf16.mxu0 0
        %3694 = vmatpush1.bf16.msra.mxu0 0
        %3695 = vmatprep.subr.bf16.mxu0 0
        %3696 = vmatpush1.bf16.msra.mxu0 0
        %3697 = vmatprep.subr.bf16.mxu0 0
        %3698 = vmatpush1.bf16.msra.mxu0 0
        %3699 = vmatprep.subr.bf16.mxu0 0
        %3700 = vmatpush1.bf16.msra.mxu0 0
        %3701 = vmatprep.subr.bf16.mxu0 0
        %3702 = vmatpush1.bf16.msra.mxu0 0
        %3703 = vmatprep.subr.bf16.mxu0 0
        %3704 = vmatpush1.bf16.msra.mxu0 0
        %3705 = vmatprep.subr.bf16.mxu0 0
        %3706 = vmatpush1.bf16.msra.mxu0 0
        %3707 = vmatprep.mubr.bf16.mxu0 0
        %3708 = vmatmul.mubr.bf16.gmra.mrb[0].mxu0 %v3566
        %v3709 = vpop.f32.mrb[0].mxu0
        %v3710 = vadd.f32 %v3588, %v3709
        %v3711 = vpop.f32.mrb[0].mxu0
        %v3712 = vadd.f32 %v3592, %v3711
        %v3713 = vpop.f32.mrb[0].mxu0
        %v3714 = vpop.f32.mrb[0].mxu0
        %3715 = vdwg.mxu0
        %v3716 = vmax.f32 %v3710, 0.0
        %v3717 = vmax.f32 %v3712, 0.0
        %v3718 = vpack.c.bf16 %v3716, %v3716
        %v3719 = vpack.c.bf16 %v3717, %v3717
        %v3720 = vld [vmem:[#allocation34] sm:$0xf]
        %v3721 = vld [vmem:[#allocation34 + $0x4] sm:$0xf]
        %v3722 = vld [vmem:[#allocation34 + $0x8] sm:$0xf]
        %v3723 = vld [vmem:[#allocation34 + $0xc] sm:$0xf]
        %v3724 = vld [vmem:[#allocation34 + $0x10] sm:$0xf]
        %v3725 = vld [vmem:[#allocation34 + $0x14] sm:$0xf]
        %v3726 = vld [vmem:[#allocation34 + $0x18] sm:$0xf]
        %v3727 = vld [vmem:[#allocation34 + $0x1c] sm:$0xf]
        %v3728 = vld [vmem:[#allocation34 + $0x20] sm:$0xf]
        %v3729 = vld [vmem:[#allocation34 + $0x24] sm:$0xf]
        %v3730 = vld [vmem:[#allocation34 + $0x28] sm:$0xf]
        %v3731 = vld [vmem:[#allocation34 + $0x2c] sm:$0xf]
        %v3732 = vld [vmem:[#allocation34 + $0x30] sm:$0xf]
        %v3733 = vld [vmem:[#allocation34 + $0x34] sm:$0xf]
        %v3734 = vld [vmem:[#allocation34 + $0x38] sm:$0xf]
        %v3735 = vld [vmem:[#allocation34 + $0x3c] sm:$0xf]
        %v3736 = vld [vmem:[#allocation34 + $0x40] sm:$0xf]
        %v3737 = vld [vmem:[#allocation34 + $0x44] sm:$0xf]
        %v3738 = vld [vmem:[#allocation34 + $0x48] sm:$0xf]
        %v3739 = vld [vmem:[#allocation34 + $0x4c] sm:$0xf]
        %v3740 = vld [vmem:[#allocation34 + $0x50] sm:$0xf]
        %v3741 = vld [vmem:[#allocation34 + $0x54] sm:$0xf]
        %v3742 = vld [vmem:[#allocation34 + $0x58] sm:$0xf]
        %v3743 = vld [vmem:[#allocation34 + $0x5c] sm:$0xf]
        %v3744 = vld [vmem:[#allocation34 + $0x60] sm:$0xf]
        %v3745 = vld [vmem:[#allocation34 + $0x64] sm:$0xf]
        %v3746 = vld [vmem:[#allocation34 + $0x68] sm:$0xf]
        %v3747 = vld [vmem:[#allocation34 + $0x6c] sm:$0xf]
        %v3748 = vld [vmem:[#allocation34 + $0x70] sm:$0xf]
        %v3749 = vld [vmem:[#allocation34 + $0x74] sm:$0xf]
        %v3750 = vld [vmem:[#allocation34 + $0x78] sm:$0xf]
        %v3751 = vld [vmem:[#allocation34 + $0x7c] sm:$0xf]
        %v3752 = vld [vmem:[#allocation36] sm:$0x1]
        %v3754 = vlaneseq
        %v3755 = vshrl.u32 %v3754, 7
        %v3756 = vsub.s32 0, %v3755
        %v3757 = vrot.slane %v3752, %v3756
        %v3791 = vunpack.c.l.b16 %v3720
        %v3792 = vunpack.c.l.b16 %v3721
        %v3793 = vunpack.c.l.b16 %v3722
        %v3794 = vunpack.c.l.b16 %v3723
        %v3795 = vunpack.c.l.b16 %v3724
        %v3796 = vunpack.c.l.b16 %v3725
        %v3797 = vunpack.c.l.b16 %v3726
        %v3798 = vunpack.c.l.b16 %v3727
        %v3799 = vunpack.c.l.b16 %v3728
        %v3800 = vunpack.c.l.b16 %v3729
        %v3801 = vunpack.c.l.b16 %v3730
        %v3802 = vunpack.c.l.b16 %v3731
        %v3803 = vunpack.c.l.b16 %v3732
        %v3804 = vunpack.c.l.b16 %v3733
        %v3805 = vunpack.c.l.b16 %v3734
        %v3806 = vunpack.c.l.b16 %v3735
        %v3807 = vunpack.c.l.b16 %v3736
        %v3808 = vunpack.c.l.b16 %v3737
        %v3809 = vunpack.c.l.b16 %v3738
        %v3810 = vunpack.c.l.b16 %v3739
        %v3811 = vunpack.c.l.b16 %v3740
        %v3812 = vunpack.c.l.b16 %v3741
        %v3813 = vunpack.c.l.b16 %v3742
        %v3814 = vunpack.c.l.b16 %v3743
        %v3815 = vunpack.c.l.b16 %v3744
        %v3816 = vunpack.c.l.b16 %v3745
        %v3817 = vunpack.c.l.b16 %v3746
        %v3818 = vunpack.c.l.b16 %v3747
        %v3819 = vunpack.c.l.b16 %v3748
        %v3820 = vunpack.c.l.b16 %v3749
        %v3821 = vunpack.c.l.b16 %v3750
        %v3822 = vunpack.c.l.b16 %v3751
        %v3823 = vpack.c.b16 %v3792, %v3791
        %v3824 = vpack.c.b16 %v3794, %v3793
        %v3825 = vpack.c.b16 %v3796, %v3795
        %v3826 = vpack.c.b16 %v3798, %v3797
        %v3827 = vpack.c.b16 %v3800, %v3799
        %v3828 = vpack.c.b16 %v3802, %v3801
        %v3829 = vpack.c.b16 %v3804, %v3803
        %v3830 = vpack.c.b16 %v3806, %v3805
        %v3831 = vpack.c.b16 %v3808, %v3807
        %v3832 = vpack.c.b16 %v3810, %v3809
        %v3833 = vpack.c.b16 %v3812, %v3811
        %v3834 = vpack.c.b16 %v3814, %v3813
        %v3835 = vpack.c.b16 %v3816, %v3815
        %v3836 = vpack.c.b16 %v3818, %v3817
        %v3837 = vpack.c.b16 %v3820, %v3819
        %v3838 = vpack.c.b16 %v3822, %v3821
        %3855 = vmatprep.subr.bf16.mxu0 0
        %3856 = vmatpush1.bf16.msra.mxu0 %v3823
        %3857 = vmatprep.subr.bf16.mxu0 0
        %3858 = vmatpush1.bf16.msra.mxu0 %v3824
        %3859 = vmatprep.subr.bf16.mxu0 0
        %3860 = vmatpush1.bf16.msra.mxu0 %v3825
        %3861 = vmatprep.subr.bf16.mxu0 0
        %3862 = vmatpush1.bf16.msra.mxu0 %v3826
        %3863 = vmatprep.subr.bf16.mxu0 0
        %3864 = vmatpush1.bf16.msra.mxu0 %v3827
        %3865 = vmatprep.subr.bf16.mxu0 0
        %3866 = vmatpush1.bf16.msra.mxu0 %v3828
        %3867 = vmatprep.subr.bf16.mxu0 0
        %3868 = vmatpush1.bf16.msra.mxu0 %v3829
        %3869 = vmatprep.subr.bf16.mxu0 0
        %3870 = vmatpush1.bf16.msra.mxu0 %v3830
        %3871 = vmatprep.subr.bf16.mxu0 0
        %3872 = vmatpush1.bf16.msra.mxu0 %v3831
        %3873 = vmatprep.subr.bf16.mxu0 0
        %3874 = vmatpush1.bf16.msra.mxu0 %v3832
        %3875 = vmatprep.subr.bf16.mxu0 0
        %3876 = vmatpush1.bf16.msra.mxu0 %v3833
        %3877 = vmatprep.subr.bf16.mxu0 0
        %3878 = vmatpush1.bf16.msra.mxu0 %v3834
        %3879 = vmatprep.subr.bf16.mxu0 0
        %3880 = vmatpush1.bf16.msra.mxu0 %v3835
        %3881 = vmatprep.subr.bf16.mxu0 0
        %3882 = vmatpush1.bf16.msra.mxu0 %v3836
        %3883 = vmatprep.subr.bf16.mxu0 0
        %3884 = vmatpush1.bf16.msra.mxu0 %v3837
        %3885 = vmatprep.subr.bf16.mxu0 0
        %3886 = vmatpush1.bf16.msra.mxu0 %v3838
        %3887 = vmatprep.mubr.bf16.mxu0 %v3719
        %3888 = vmatmul.mubr.bf16.gmra.mrb[0].mxu0 %v3718
        %v3889 = vpop.f32.mrb[0].mxu0
        %v3890 = vadd.f32 %v3757, %v3889
        %v3891 = vpop.f32.mrb[0].mxu0
        %v3892 = vpop.f32.mrb[0].mxu0
        %v3893 = vpop.f32.mrb[0].mxu0
        %3894 = vdwg.mxu0
        %v3895 = vadd.f32 %v3565, %v3890
        %3896 = vadd.xlane.f32.xlu0 %v3895
        %v3897 = vpop.xlane.xlu0 %3896
        %v3898 = vmul.f32 %v3897, 0.03125
        %v3899 = vmul.f32 %v3895, %v3895
        %3900 = vadd.xlane.f32.xlu0 %v3899
        %v3901 = vpop.xlane.xlu0 %3900
        %v3902 = vmul.f32 %v3901, 0.03125
        %v3903 = vmul.f32 %v3898, %v3898
        %v3904 = vsub.f32 %v3902, %v3903
        %v3905 = vsub.f32 %v3895, %v3898
        %v3906 = vadd.f32 %v3904, 1e-05
        %v3907 = vrsqrt.pop %v3906
        %v3908 = vmul.f32 %v3905, %v3907
        %v3909 = vld [vmem:[#allocation37] sm:$0x1]
        %v3911 = vlaneseq
        %v3912 = vshrl.u32 %v3911, 7
        %v3913 = vsub.s32 0, %v3912
        %v3914 = vrot.slane %v3909, %v3913
        %v3916 = vmul.f32 %v3908, %v3914
        %v3917 = vld [vmem:[#allocation39] sm:$0x1]
        %v3919 = vlaneseq
        %v3920 = vshrl.u32 %v3919, 7
        %v3921 = vsub.s32 0, %v3920
        %v3922 = vrot.slane %v3917, %v3921
        %v3924 = vadd.f32 %v3916, %v3922
        %v3925 = vpack.c.bf16 %v3924, %v3924
        %v3926 = vld [vmem:[#allocation40] sm:$0xf]
        %v3927 = vld [vmem:[#allocation40 + $0x4] sm:$0xf]
        %v3928 = vld [vmem:[#allocation40 + $0x8] sm:$0xf]
        %v3929 = vld [vmem:[#allocation40 + $0xc] sm:$0xf]
        %v3930 = vld [vmem:[#allocation40 + $0x10] sm:$0xf]
        %v3931 = vld [vmem:[#allocation40 + $0x14] sm:$0xf]
        %v3932 = vld [vmem:[#allocation40 + $0x18] sm:$0xf]
        %v3933 = vld [vmem:[#allocation40 + $0x1c] sm:$0xf]
        %v3934 = vld [vmem:[#allocation40 + $0x20] sm:$0xf]
        %v3935 = vld [vmem:[#allocation40 + $0x24] sm:$0xf]
        %v3936 = vld [vmem:[#allocation40 + $0x28] sm:$0xf]
        %v3937 = vld [vmem:[#allocation40 + $0x2c] sm:$0xf]
        %v3938 = vld [vmem:[#allocation40 + $0x30] sm:$0xf]
        %v3939 = vld [vmem:[#allocation40 + $0x34] sm:$0xf]
        %v3940 = vld [vmem:[#allocation40 + $0x38] sm:$0xf]
        %v3941 = vld [vmem:[#allocation40 + $0x3c] sm:$0xf]
        %v3942 = vld [vmem:[#allocation42] sm:$0x1]
        %v3944 = vlaneseq
        %v3945 = vshrl.u32 %v3944, 7
        %v3946 = vsub.s32 0, %v3945
        %v3947 = vrot.slane %v3942, %v3946
        %v3965 = vunpack.c.l.b16 %v3926
        %v3966 = vunpack.c.l.b16 %v3927
        %v3967 = vunpack.c.l.b16 %v3928
        %v3968 = vunpack.c.l.b16 %v3929
        %v3969 = vunpack.c.l.b16 %v3930
        %v3970 = vunpack.c.l.b16 %v3931
        %v3971 = vunpack.c.l.b16 %v3932
        %v3972 = vunpack.c.l.b16 %v3933
        %v3973 = vunpack.c.l.b16 %v3934
        %v3974 = vunpack.c.l.b16 %v3935
        %v3975 = vunpack.c.l.b16 %v3936
        %v3976 = vunpack.c.l.b16 %v3937
        %v3977 = vunpack.c.l.b16 %v3938
        %v3978 = vunpack.c.l.b16 %v3939
        %v3979 = vunpack.c.l.b16 %v3940
        %v3980 = vunpack.c.l.b16 %v3941
        %v3981 = vpack.c.b16 %v3966, %v3965
        %v3982 = vpack.c.b16 %v3968, %v3967
        %v3983 = vpack.c.b16 %v3970, %v3969
        %v3984 = vpack.c.b16 %v3972, %v3971
        %v3985 = vpack.c.b16 %v3974, %v3973
        %v3986 = vpack.c.b16 %v3976, %v3975
        %v3987 = vpack.c.b16 %v3978, %v3977
        %v3988 = vpack.c.b16 %v3980, %v3979
        %3997 = vmatprep.subr.bf16.mxu0 0
        %3998 = vmatpush1.bf16.msra.mxu0 %v3981
        %3999 = vmatprep.subr.bf16.mxu0 0
        %4000 = vmatpush1.bf16.msra.mxu0 %v3982
        %4001 = vmatprep.subr.bf16.mxu0 0
        %4002 = vmatpush1.bf16.msra.mxu0 %v3983
        %4003 = vmatprep.subr.bf16.mxu0 0
        %4004 = vmatpush1.bf16.msra.mxu0 %v3984
        %4005 = vmatprep.subr.bf16.mxu0 0
        %4006 = vmatpush1.bf16.msra.mxu0 %v3985
        %4007 = vmatprep.subr.bf16.mxu0 0
        %4008 = vmatpush1.bf16.msra.mxu0 %v3986
        %4009 = vmatprep.subr.bf16.mxu0 0
        %4010 = vmatpush1.bf16.msra.mxu0 %v3987
        %4011 = vmatprep.subr.bf16.mxu0 0
        %4012 = vmatpush1.bf16.msra.mxu0 %v3988
        %4013 = vmatprep.subr.bf16.mxu0 0
        %4014 = vmatpush1.bf16.msra.mxu0 0
        %4015 = vmatprep.subr.bf16.mxu0 0
        %4016 = vmatpush1.bf16.msra.mxu0 0
        %4017 = vmatprep.subr.bf16.mxu0 0
        %4018 = vmatpush1.bf16.msra.mxu0 0
        %4019 = vmatprep.subr.bf16.mxu0 0
        %4020 = vmatpush1.bf16.msra.mxu0 0
        %4021 = vmatprep.subr.bf16.mxu0 0
        %4022 = vmatpush1.bf16.msra.mxu0 0
        %4023 = vmatprep.subr.bf16.mxu0 0
        %4024 = vmatpush1.bf16.msra.mxu0 0
        %4025 = vmatprep.subr.bf16.mxu0 0
        %4026 = vmatpush1.bf16.msra.mxu0 0
        %4027 = vmatprep.subr.bf16.mxu0 0
        %4028 = vmatpush1.bf16.msra.mxu0 0
        %4029 = vmatprep.mubr.bf16.mxu0 0
        %4030 = vmatmul.mubr.bf16.gmra.mrb[0].mxu0 %v3925
        %v4031 = vpop.f32.mrb[0].mxu0
        %v4032 = vadd.f32 %v3947, %v4031
        %v4033 = vpop.f32.mrb[0].mxu0
        %v4034 = vpop.f32.mrb[0].mxu0
        %v4035 = vpop.f32.mrb[0].mxu0
        %4036 = vdwg.mxu0
        %4037 = vst [vmem:[%s1257] sm:$0xff] %v4032
        %p4038 = scmp.lt.s32.totalorder %s84, 1
        %s4039 = scalar_select %p4038, %s84, 1
        %s4040 = smul.addr %s4039, 8
        %s4041 = scalar_lea.vmem %s59, %s4040
        // Predicated region
        $region245: #{transformer_forward.1} parent=135 // pred_check
          %p4042 = pneg %p716
        $region246: #{transformer_forward.1} parent=135 // pred_check_branch
          %4044 = sbr.rel (%p4042) target = $region248
        $region247: #{transformer_forward.1} parent=135 // pred_region
          _
        $region248: #{transformer_forward.1} parent=135 // pred_fallthru
          _
      $region136: #{transformer_forward.1} parent=5 // pred_fallthru
        _
      %p4045 = scmp.le.s32.totalorder 2, %s79
      // Predicated region
      $region249: #{transformer_forward.1} parent=5 // pred_check
        %p4046 = pneg %p4045
      $region250: #{transformer_forward.1} parent=5 // pred_check_branch
        %4048 = sbr.rel (%p4046) target = $region252
      $region251: #{transformer_forward.1} parent=5 // pred_region
        %s4049 = ssub.s32 %s79, 2
        // Predicated region
        $region253: #{transformer_forward.1} parent=251 // pred_check
          %p4050 = pneg %p722
        $region254: #{transformer_forward.1} parent=251 // pred_check_branch
          %4052 = sbr.rel (%p4050) target = $region256
        $region255: #{transformer_forward.1} parent=251 // pred_region
          %p4053 = scmp.lt.s32.totalorder %s85, 1
          %s4054 = scalar_select %p4053, %s85, 1
          %s4055 = smul.addr %s4054, 8
          %s4056 = scalar_lea.vmem %s59, %s4055
        $region256: #{transformer_forward.1} parent=251 // pred_fallthru
          _
      $region252: #{transformer_forward.1} parent=5 // pred_fallthru
        _
    $region6: #{transformer_forward.1} parent=1 // loop_footer
      %s83 = sadd.s32 1, %s79
    $region7: #{transformer_forward.1} parent=1 // loop_footer_branch
      %78 = sbr.rel target = $region3
    $region8: #{transformer_forward.1} parent=1 // loop_exit
      _
    %4057 = vsyncpa [#allocation3], 1
    %s4058 = scalar_lea.sflag [#allocation3], 1
    %4059 = vsyncpa %s4058, 1
    %4060 = vsyncpa [#allocation5], 1
    %4061 = vsyncpa [#allocation8], 1
    %4062 = vsyncpa [#allocation11], 1
    %4063 = vsyncpa [#allocation14], 1
    %4064 = vsyncpa [#allocation17], 1
    %4065 = vsyncpa [#allocation20], 1
    %4066 = vsyncpa [#allocation23], 1
    %4067 = vsyncpa [#allocation26], 1
    %4068 = vsyncpa [#allocation29], 1
    %4069 = vsyncpa [#allocation32], 1
    %4070 = vsyncpa [#allocation35], 1
    %4071 = vsyncpa [#allocation38], 1
    %4072 = vsyncpa [#allocation41], 1

</llo_original>
